<compile_context>
chip_gen: v7x
topology: tpu7x:2x2x1
jax: 0.10.0
libtpu: 0.0.40
codegen_flags: <defaults>
</compile_context>

<pallas_src>
import numpy as np

import jax
import jax.numpy as jnp
from jax import lax
from jax.experimental import pallas as pl
from jax.experimental.pallas import tpu as pltpu

# ---- small, deterministic shapes (stand-ins for resnet152 / embed_size=300) ----
H = W = 16                 # spatial
HW = H * W                 # 256
HP = WP = H + 2            # zero-padded spatial ('same' 3x3 conv)
PFLAT = HP * WP            # 324 flattened padded positions per image
PF_PAD = 328               # PFLAT rounded up to a multiple of 8 (matmul M dim)
MARGIN = 32                # leading zero rows per image block (>= 19 = max |shift|)
PBLK = 384                 # per-image row block = MARGIN + PFLAT + 28 trailing zeros
CIN = 3                    # RGB channels
CIN_PAD = 8                # channel lanes: RGB + bias-indicator + zero pad
K = 3                      # stand-in conv kernel size
CF = 128                   # backbone feature channels (stand-in for resnet fc.in_features=2048)
EMBED = 32                 # embed_size stand-in (module default is 300)
EMBED_PAD = 128            # lane-dense output slab width
BN_EPS = 1e-5              # nn.BatchNorm1d default eps


# ------------------------- fused Pallas kernel -------------------------

def _make_kernel(batch, out_rows):
    """Kernel closure over the static batch size / padded output row count."""
    shifts = [(dy - 1) * WP + (dx - 1) for dy in range(K) for dx in range(K)]
    inv_b = 1.0 / float(batch)

    def kernel(x_ref, pw_ref, cw_ref, lw_ref, hp_ref, o_ref, feats_ref):
        # x_ref:     (PBLK, CIN_PAD)        f32  one image: margin + padded-flat pixels
        # pw_ref:    (PF_PAD, 1)            f32  1/HW at valid conv-output rows, else 0
        # cw_ref:    (K*K*CIN_PAD, CF)      bf16 per-tap conv weights (+ bias in centre tap)
        # lw_ref:    (CF, EMBED_PAD)        bf16 linear weight (zero-padded cols)
        # hp_ref:    (8, EMBED_PAD)         f32  rows: 0=lin_b, 1=bn_gamma, 2=bn_beta
        # o_ref:     (out_rows, EMBED_PAD)  f32  output slab (real rows/cols sliced outside)
        # feats_ref: (out_rows, CF)         f32  VMEM scratch, pooled features per image
        b = pl.program_id(0)

        @pl.when(b == 0)
        def _init():
            feats_ref[...] = jnp.zeros_like(feats_ref)

        # ---- backbone: 3x3 'same' conv as 9 shifted-slab MXU matmuls + ReLU ----
        # Conv bias comes out of the MXU for free via the indicator lane; no bias add.
        acc = jnp.zeros((PF_PAD, CF), jnp.float32)
        for k, d in enumerate(shifts):
            s = MARGIN + d                                   # static, in [13, 51]
            slab = x_ref[s:s + PF_PAD, :].astype(jnp.bfloat16)        # (328, 8)
            acc = acc + jnp.dot(slab,
                                cw_ref[k * CIN_PAD:(k + 1) * CIN_PAD, :],
                                preferred_element_type=jnp.float32)
        act = jnp.maximum(acc, 0.0)                                    # (328, CF)

        # ---- per-image global average pool: masked weighted reduction ----
        pooled = jnp.sum(act * pw_ref[...], axis=0, keepdims=True)     # (1, CF)
        feats_ref[pl.ds(b, 1), :] = pooled

        # ---- head on the last grid step: Linear + BatchNorm1d (train stats) ----
        @pl.when(b == pl.num_programs(0) - 1)
        def _head():
            f = feats_ref[...].astype(jnp.bfloat16)                    # (out_rows, CF)
            y = jnp.dot(f, lw_ref[...],
                        preferred_element_type=jnp.float32) + hp_ref[0:1, :]
            rmask = (lax.broadcasted_iota(jnp.int32, (out_rows, 1), 0) < batch
                     ).astype(jnp.float32)
            mu = jnp.sum(y * rmask, axis=0, keepdims=True) * inv_b
            d = y - mu
            var = jnp.sum(d * d * rmask, axis=0, keepdims=True) * inv_b   # biased var
            o_ref[...] = (hp_ref[1:2, :] * d * lax.rsqrt(var + BN_EPS)
                          + hp_ref[2:3, :]) * rmask

    return kernel


# ------------------------- wrapper (minimal layout glue) -------------------------

def _preprocess(images_nchw):
    """NCHW -> one fused producer of the (B*PBLK, CIN_PAD) padded image slab."""
    b = images_nchw.shape[0]
    x = jnp.transpose(images_nchw.astype(jnp.float32), (0, 2, 3, 1))      # (B,H,W,3)
    ones = jnp.ones(x.shape[:-1] + (1,), jnp.float32)                     # bias indicator
    zeros = jnp.zeros(x.shape[:-1] + (CIN_PAD - CIN - 1,), jnp.float32)
    x = jnp.concatenate([x, ones, zeros], axis=-1)                        # (B,H,W,8)
    xpad = jnp.pad(x, ((0, 0), (1, 1), (1, 1), (0, 0)))                   # (B,18,18,8)
    xflat = xpad.reshape(b, PFLAT, CIN_PAD)                               # (B,324,8)
    xblk = jnp.pad(xflat, ((0, 0), (MARGIN, PBLK - MARGIN - PFLAT), (0, 0)))
    return xblk.reshape(b * PBLK, CIN_PAD)                                # (B*384,8)


def pack_params(params):
    """One-time parameter packing (done outside the jitted forward)."""
    # conv weights: per-tap blocks of 8 rows; bias folded into centre-tap row 3.
    w = params["conv_w2d"].reshape(K * K, CIN, CF)
    cw = jnp.zeros((K * K, CIN_PAD, CF), jnp.float32)
    cw = cw.at[:, :CIN, :].set(w)
    cw = cw.at[(K * K) // 2, CIN, :].set(params["conv_b"][0])
    cw = cw.reshape(K * K * CIN_PAD, CF).astype(jnp.bfloat16)

    lw = jnp.pad(params["lin_w"],
                 ((0, 0), (0, EMBED_PAD - EMBED))).astype(jnp.bfloat16)

    hp = jnp.zeros((8, EMBED_PAD), jnp.float32)
    hp = hp.at[0, :EMBED].set(params["lin_b"][0])
    hp = hp.at[1, :EMBED].set(params["bn_g"][0])
    hp = hp.at[2, :EMBED].set(params["bn_b"][0])

    # pooling weights: 1/HW at valid (interior) conv-output rows, else 0.
    yy, xx = np.meshgrid(np.arange(HP), np.arange(WP), indexing="ij")
    valid = ((yy >= 1) & (yy < HP - 1) & (xx >= 1) & (xx < WP - 1)).reshape(-1)
    pw = np.zeros((PF_PAD, 1), np.float32)
    pw[:PFLAT, 0] = valid.astype(np.float32) / float(HW)

    return {"cw": cw, "lw": lw, "hp": hp, "pw": jnp.asarray(pw)}


def encoder_cnn_forward(images_nchw, packed):
    """images_nchw: (B, CIN, H, W) float32  ->  (B, EMBED) float32"""
    b = images_nchw.shape[0]
    out_rows = max(8, -(-b // 8) * 8)
    ximg = _preprocess(images_nchw)
    operands = (ximg, packed["pw"], packed["cw"], packed["lw"], packed["hp"])

    cost = pl.CostEstimate(
        flops=b * (2 * K * K * PF_PAD * CIN_PAD * CF)
              + 2 * out_rows * CF * EMBED_PAD,
        transcendentals=0,
        bytes_accessed=sum(int(a.size) * a.dtype.itemsize for a in operands)
                       + out_rows * EMBED_PAD * 4,
    )

    out_pad = pl.pallas_call(
        _make_kernel(b, out_rows),
        out_shape=jax.ShapeDtypeStruct((out_rows, EMBED_PAD), jnp.float32),
        grid=(b,),
        in_specs=[
            pl.BlockSpec((PBLK, CIN_PAD), lambda i: (i, 0)),          # per-image slab
            pl.BlockSpec((PF_PAD, 1), lambda i: (0, 0)),              # pool weights
            pl.BlockSpec((K * K * CIN_PAD, CF), lambda i: (0, 0)),    # conv weights
            pl.BlockSpec((CF, EMBED_PAD), lambda i: (0, 0)),          # linear weight
            pl.BlockSpec((8, EMBED_PAD), lambda i: (0, 0)),           # lin_b/gamma/beta
        ],
        out_specs=pl.BlockSpec((out_rows, EMBED_PAD), lambda i: (0, 0)),
        scratch_shapes=[pltpu.VMEM((out_rows, CF), jnp.float32)],
        compiler_params=pltpu.CompilerParams(dimension_semantics=("arbitrary",)),
        cost_estimate=cost,
    )(*operands)
    return out_pad[:b, :EMBED]


# ------------------------- references -------------------------

def _reference_forward(images_nchw, packed):
    """Pure-JAX mirror of the kernel's exact math (same padding / bf16 operands)."""
    b = images_nchw.shape[0]
    xblk = _preprocess(images_nchw).reshape(b, PBLK, CIN_PAD)
    shifts = [(dy - 1) * WP + (dx - 1) for dy in range(K) for dx in range(K)]
    feats = []
    for bi in range(b):
        acc = jnp.zeros((PF_PAD, CF), jnp.float32)
        for k, d in enumerate(shifts):
            s = MARGIN + d
            slab = xblk[bi, s:s + PF_PAD, :].astype(jnp.bfloat16)
            acc = acc + jnp.dot(slab, packed["cw"][k * CIN_PAD:(k + 1) * CIN_PAD, :],
                                preferred_element_type=jnp.float32)
        act = jnp.maximum(acc, 0.0)
        feats.append(jnp.sum(act * packed["pw"], axis=0))
    f = jnp.stack(feats, axis=0).astype(jnp.bfloat16)
    y = jnp.dot(f, packed["lw"], preferred_element_type=jnp.float32) + packed["hp"][0:1, :]
    mu = jnp.mean(y, axis=0, keepdims=True)
    var = jnp.mean(jnp.square(y - mu), axis=0, keepdims=True)
    out = packed["hp"][1:2, :] * (y - mu) * lax.rsqrt(var + BN_EPS) + packed["hp"][2:3, :]
    return out[:, :EMBED]


def _reference_conv_forward(images_nchw, params):
    """Structurally independent reference: lax.conv + mean pool + Linear + BN."""
    x = jnp.transpose(images_nchw.astype(jnp.float32), (0, 2, 3, 1))
    xpad = jnp.pad(x, ((0, 0), (1, 1), (1, 1), (0, 0))).astype(jnp.bfloat16)
    wk = params["conv_w2d"].reshape(K, K, CIN, CF).astype(jnp.bfloat16)
    conv = lax.conv_general_dilated(xpad, wk, (1, 1), "VALID",
                                    dimension_numbers=("NHWC", "HWIO", "NHWC"),
                                    preferred_element_type=jnp.float32)
    act = jnp.maximum(conv + params["conv_b"].reshape(1, 1, 1, CF), 0.0)
    feats = jnp.mean(act, axis=(1, 2)).astype(jnp.bfloat16)
    y = jnp.dot(feats, params["lin_w"].astype(jnp.bfloat16),
                preferred_element_type=jnp.float32) + params["lin_b"]
    mu = jnp.mean(y, axis=0, keepdims=True)
    var = jnp.mean(jnp.square(y - mu), axis=0, keepdims=True)
    return params["bn_g"] * (y - mu) * lax.rsqrt(var + BN_EPS) + params["bn_b"]


def init_params(key):
    k1, k2, k3, k4 = jax.random.split(key, 4)
    conv_w = 0.05 * jax.random.normal(k1, (K, K, CIN, CF), jnp.float32)
    return {
        "conv_w2d": conv_w.reshape(K * K * CIN, CF),             # (27, CF), (dy,dx,c) order
        "conv_b": 0.01 * jax.random.normal(k2, (1, CF), jnp.float32),
        "lin_w": 0.05 * jax.random.normal(k3, (CF, EMBED), jnp.float32),
        "lin_b": 0.01 * jax.random.normal(k4, (1, EMBED), jnp.float32),
        "bn_g": jnp.ones((1, EMBED), jnp.float32),               # BatchNorm1d weight init
        "bn_b": jnp.zeros((1, EMBED), jnp.float32),              # BatchNorm1d bias init
    }


if __name__ == "__main__":
    key = jax.random.PRNGKey(0)
    kp, kx = jax.random.split(key)
    params = init_params(kp)
    packed = pack_params(params)
    images = jax.random.normal(kx, (2, CIN, H, W), jnp.float32)   # NCHW like PyTorch

    out = jax.jit(encoder_cnn_forward)(images, packed)
    out = jax.block_until_ready(out)
    assert out.shape == (2, EMBED), out.shape

    ref = _reference_forward(images, packed)
    assert jnp.allclose(out, ref, atol=1e-2, rtol=1e-2), "mismatch vs mirrored reference"

    ref_conv = _reference_conv_forward(images, params)
    assert jnp.allclose(out, ref_conv, atol=5e-2, rtol=5e-2), "mismatch vs lax.conv reference"

    print("KERNEL_OK")
</pallas_src>

<mosaic_0001>
module attributes {stable_mosaic.version = 11 : i64} {
  func.func @kernel(%arg0: i32, %arg1: memref<384x8xf32, #tpu.memory_space<vmem>>, %arg2: memref<328x1xf32, #tpu.memory_space<vmem>>, %arg3: memref<72x128xbf16, #tpu.memory_space<vmem>>, %arg4: memref<128x128xbf16, #tpu.memory_space<vmem>>, %arg5: memref<8x128xf32, #tpu.memory_space<vmem>>, %arg6: memref<8x128xf32, #tpu.memory_space<vmem>>, %arg7: memref<8x128xf32, #tpu.memory_space<vmem>>) attributes {dimension_semantics = [#tpu.dimension_semantics<arbitrary>], iteration_bounds = array<i64: 2>, scalar_prefetch = 0 : i64, scratch_operands = 1 : i64, tpu.core_type = #tpu.core_type<tc>, window_params = [{transform_indices = @transform_0, window_bounds = array<i64: 384, 8>}, {pipeline_mode = #tpu.pipeline_mode<synchronous>, transform_indices = @transform_1, window_bounds = array<i64: 328, 1>}, {pipeline_mode = #tpu.pipeline_mode<synchronous>, transform_indices = @transform_2, window_bounds = array<i64: 72, 128>}, {pipeline_mode = #tpu.pipeline_mode<synchronous>, transform_indices = @transform_3, window_bounds = array<i64: 128, 128>}, {pipeline_mode = #tpu.pipeline_mode<synchronous>, transform_indices = @transform_4, window_bounds = array<i64: 8, 128>}, {pipeline_mode = #tpu.pipeline_mode<synchronous>, transform_indices = @transform_5, window_bounds = array<i64: 8, 128>}]} {
    %c0_i32 = arith.constant 0 : i32
    %0 = arith.cmpi eq, %arg0, %c0_i32 : i32
    %1 = arith.extui %0 : i1 to i32
    %c0_i32_0 = arith.constant 0 : i32
    %2 = arith.cmpi ne, %1, %c0_i32_0 : i32
    scf.if %2 {
      %cst_35 = arith.constant 0.000000e+00 : f32
      %61 = vector.broadcast %cst_35 : f32 to vector<8x128xf32>
      %c0_36 = arith.constant 0 : index
      %c0_37 = arith.constant 0 : index
      %62 = vector.load %arg7[%c0_36, %c0_37] : memref<8x128xf32, #tpu.memory_space<vmem>>, vector<8x128xf32>
      tpu.vector_store %arg7[%c0_36, %c0_37], %61 {strides = array<i32>} : memref<8x128xf32, #tpu.memory_space<vmem>>, vector<8x128xf32>,
    } else {
    }
    %cst = arith.constant 0.000000e+00 : f32
    %3 = vector.broadcast %cst : f32 to vector<328x128xf32>
    %c13 = arith.constant 13 : index
    %c0 = arith.constant 0 : index
    %4 = vector.load %arg1[%c13, %c0] : memref<384x8xf32, #tpu.memory_space<vmem>>, vector<328x8xf32>
    %5 = arith.truncf %4 : vector<328x8xf32> to vector<328x8xbf16>
    %c0_1 = arith.constant 0 : index
    %c0_2 = arith.constant 0 : index
    %6 = vector.load %arg3[%c0_1, %c0_2] : memref<72x128xbf16, #tpu.memory_space<vmem>>, vector<8x128xbf16>
    %cst_3 = arith.constant dense<0.000000e+00> : vector<328x128xf32>
    %7 = tpu.matmul %5, %6, %cst_3 {dimension_numbers = #tpu.dot_dimension_numbers<[1], [0], [0], [1], [0, 0, 1, 1], [], []>} : vector<328x8xbf16>, vector<8x128xbf16>, vector<328x128xf32> -> vector<328x128xf32>
    %8 = arith.addf %3, %7 : vector<328x128xf32>
    %c14 = arith.constant 14 : index
    %c0_4 = arith.constant 0 : index
    %9 = vector.load %arg1[%c14, %c0_4] : memref<384x8xf32, #tpu.memory_space<vmem>>, vector<328x8xf32>
    %10 = arith.truncf %9 : vector<328x8xf32> to vector<328x8xbf16>
    %c8 = arith.constant 8 : index
    %c0_5 = arith.constant 0 : index
    %11 = vector.load %arg3[%c8, %c0_5] : memref<72x128xbf16, #tpu.memory_space<vmem>>, vector<8x128xbf16>
    %cst_6 = arith.constant dense<0.000000e+00> : vector<328x128xf32>
    %12 = tpu.matmul %10, %11, %cst_6 {dimension_numbers = #tpu.dot_dimension_numbers<[1], [0], [0], [1], [0, 0, 1, 1], [], []>} : vector<328x8xbf16>, vector<8x128xbf16>, vector<328x128xf32> -> vector<328x128xf32>
    %13 = arith.addf %8, %12 : vector<328x128xf32>
    %c15 = arith.constant 15 : index
    %c0_7 = arith.constant 0 : index
    %14 = vector.load %arg1[%c15, %c0_7] : memref<384x8xf32, #tpu.memory_space<vmem>>, vector<328x8xf32>
    %15 = arith.truncf %14 : vector<328x8xf32> to vector<328x8xbf16>
    %c16 = arith.constant 16 : index
    %c0_8 = arith.constant 0 : index
    %16 = vector.load %arg3[%c16, %c0_8] : memref<72x128xbf16, #tpu.memory_space<vmem>>, vector<8x128xbf16>
    %cst_9 = arith.constant dense<0.000000e+00> : vector<328x128xf32>
    %17 = tpu.matmul %15, %16, %cst_9 {dimension_numbers = #tpu.dot_dimension_numbers<[1], [0], [0], [1], [0, 0, 1, 1], [], []>} : vector<328x8xbf16>, vector<8x128xbf16>, vector<328x128xf32> -> vector<328x128xf32>
    %18 = arith.addf %13, %17 : vector<328x128xf32>
    %c31 = arith.constant 31 : index
    %c0_10 = arith.constant 0 : index
    %19 = vector.load %arg1[%c31, %c0_10] : memref<384x8xf32, #tpu.memory_space<vmem>>, vector<328x8xf32>
    %20 = arith.truncf %19 : vector<328x8xf32> to vector<328x8xbf16>
    %c24 = arith.constant 24 : index
    %c0_11 = arith.constant 0 : index
    %21 = vector.load %arg3[%c24, %c0_11] : memref<72x128xbf16, #tpu.memory_space<vmem>>, vector<8x128xbf16>
    %cst_12 = arith.constant dense<0.000000e+00> : vector<328x128xf32>
    %22 = tpu.matmul %20, %21, %cst_12 {dimension_numbers = #tpu.dot_dimension_numbers<[1], [0], [0], [1], [0, 0, 1, 1], [], []>} : vector<328x8xbf16>, vector<8x128xbf16>, vector<328x128xf32> -> vector<328x128xf32>
    %23 = arith.addf %18, %22 : vector<328x128xf32>
    %c32 = arith.constant 32 : index
    %c0_13 = arith.constant 0 : index
    %24 = vector.load %arg1[%c32, %c0_13] : memref<384x8xf32, #tpu.memory_space<vmem>>, vector<328x8xf32>
    %25 = arith.truncf %24 : vector<328x8xf32> to vector<328x8xbf16>
    %c32_14 = arith.constant 32 : index
    %c0_15 = arith.constant 0 : index
    %26 = vector.load %arg3[%c32_14, %c0_15] : memref<72x128xbf16, #tpu.memory_space<vmem>>, vector<8x128xbf16>
    %cst_16 = arith.constant dense<0.000000e+00> : vector<328x128xf32>
    %27 = tpu.matmul %25, %26, %cst_16 {dimension_numbers = #tpu.dot_dimension_numbers<[1], [0], [0], [1], [0, 0, 1, 1], [], []>} : vector<328x8xbf16>, vector<8x128xbf16>, vector<328x128xf32> -> vector<328x128xf32>
    %28 = arith.addf %23, %27 : vector<328x128xf32>
    %c33 = arith.constant 33 : index
    %c0_17 = arith.constant 0 : index
    %29 = vector.load %arg1[%c33, %c0_17] : memref<384x8xf32, #tpu.memory_space<vmem>>, vector<328x8xf32>
    %30 = arith.truncf %29 : vector<328x8xf32> to vector<328x8xbf16>
    %c40 = arith.constant 40 : index
    %c0_18 = arith.constant 0 : index
    %31 = vector.load %arg3[%c40, %c0_18] : memref<72x128xbf16, #tpu.memory_space<vmem>>, vector<8x128xbf16>
    %cst_19 = arith.constant dense<0.000000e+00> : vector<328x128xf32>
    %32 = tpu.matmul %30, %31, %cst_19 {dimension_numbers = #tpu.dot_dimension_numbers<[1], [0], [0], [1], [0, 0, 1, 1], [], []>} : vector<328x8xbf16>, vector<8x128xbf16>, vector<328x128xf32> -> vector<328x128xf32>
    %33 = arith.addf %28, %32 : vector<328x128xf32>
    %c49 = arith.constant 49 : index
    %c0_20 = arith.constant 0 : index
    %34 = vector.load %arg1[%c49, %c0_20] : memref<384x8xf32, #tpu.memory_space<vmem>>, vector<328x8xf32>
    %35 = arith.truncf %34 : vector<328x8xf32> to vector<328x8xbf16>
    %c48 = arith.constant 48 : index
    %c0_21 = arith.constant 0 : index
    %36 = vector.load %arg3[%c48, %c0_21] : memref<72x128xbf16, #tpu.memory_space<vmem>>, vector<8x128xbf16>
    %cst_22 = arith.constant dense<0.000000e+00> : vector<328x128xf32>
    %37 = tpu.matmul %35, %36, %cst_22 {dimension_numbers = #tpu.dot_dimension_numbers<[1], [0], [0], [1], [0, 0, 1, 1], [], []>} : vector<328x8xbf16>, vector<8x128xbf16>, vector<328x128xf32> -> vector<328x128xf32>
    %38 = arith.addf %33, %37 : vector<328x128xf32>
    %c50 = arith.constant 50 : index
    %c0_23 = arith.constant 0 : index
    %39 = vector.load %arg1[%c50, %c0_23] : memref<384x8xf32, #tpu.memory_space<vmem>>, vector<328x8xf32>
    %40 = arith.truncf %39 : vector<328x8xf32> to vector<328x8xbf16>
    %c56 = arith.constant 56 : index
    %c0_24 = arith.constant 0 : index
    %41 = vector.load %arg3[%c56, %c0_24] : memref<72x128xbf16, #tpu.memory_space<vmem>>, vector<8x128xbf16>
    %cst_25 = arith.constant dense<0.000000e+00> : vector<328x128xf32>
    %42 = tpu.matmul %40, %41, %cst_25 {dimension_numbers = #tpu.dot_dimension_numbers<[1], [0], [0], [1], [0, 0, 1, 1], [], []>} : vector<328x8xbf16>, vector<8x128xbf16>, vector<328x128xf32> -> vector<328x128xf32>
    %43 = arith.addf %38, %42 : vector<328x128xf32>
    %c51 = arith.constant 51 : index
    %c0_26 = arith.constant 0 : index
    %44 = vector.load %arg1[%c51, %c0_26] : memref<384x8xf32, #tpu.memory_space<vmem>>, vector<328x8xf32>
    %45 = arith.truncf %44 : vector<328x8xf32> to vector<328x8xbf16>
    %c64 = arith.constant 64 : index
    %c0_27 = arith.constant 0 : index
    %46 = vector.load %arg3[%c64, %c0_27] : memref<72x128xbf16, #tpu.memory_space<vmem>>, vector<8x128xbf16>
    %cst_28 = arith.constant dense<0.000000e+00> : vector<328x128xf32>
    %47 = tpu.matmul %45, %46, %cst_28 {dimension_numbers = #tpu.dot_dimension_numbers<[1], [0], [0], [1], [0, 0, 1, 1], [], []>} : vector<328x8xbf16>, vector<8x128xbf16>, vector<328x128xf32> -> vector<328x128xf32>
    %48 = arith.addf %43, %47 : vector<328x128xf32>
    %cst_29 = arith.constant 0.000000e+00 : f32
    %49 = vector.broadcast %cst_29 : f32 to vector<328x128xf32>
    %50 = arith.maximumf %48, %49 : vector<328x128xf32>
    %c0_30 = arith.constant 0 : index
    %c0_31 = arith.constant 0 : index
    %51 = vector.load %arg2[%c0_30, %c0_31] : memref<328x1xf32, #tpu.memory_space<vmem>>, vector<328x1xf32>
    %52 = vector.broadcast %51 : vector<328x1xf32> to vector<328x128xf32>
    %53 = arith.mulf %50, %52 : vector<328x128xf32>
    %cst_32 = arith.constant dense<0.000000e+00> : vector<128xf32>
    %54 = vector.multi_reduction <add>, %53, %cst_32 [0] : vector<328x128xf32> to vector<128xf32>
    %55 = vector.shape_cast %54 : vector<128xf32> to vector<1x128xf32>
    %56 = arith.index_cast %arg0 : i32 to index
    %c0_33 = arith.constant 0 : index
    %57 = vector.load %arg7[%56, %c0_33] : memref<8x128xf32, #tpu.memory_space<vmem>>, vector<1x128xf32>
    tpu.vector_store %arg7[%56, %c0_33], %55 {strides = array<i32>} : memref<8x128xf32, #tpu.memory_space<vmem>>, vector<1x128xf32>,
    %c1_i32 = arith.constant 1 : i32
    %58 = arith.cmpi eq, %arg0, %c1_i32 : i32
    %59 = arith.extui %58 : i1 to i32
    %c0_i32_34 = arith.constant 0 : i32
    %60 = arith.cmpi ne, %59, %c0_i32_34 : i32
    scf.if %60 {
      %c0_35 = arith.constant 0 : index
      %c0_36 = arith.constant 0 : index
      %61 = vector.load %arg7[%c0_35, %c0_36] : memref<8x128xf32, #tpu.memory_space<vmem>>, vector<8x128xf32>
      %62 = arith.truncf %61 : vector<8x128xf32> to vector<8x128xbf16>
      %c0_37 = arith.constant 0 : index
      %c0_38 = arith.constant 0 : index
      %63 = vector.load %arg4[%c0_37, %c0_38] : memref<128x128xbf16, #tpu.memory_space<vmem>>, vector<128x128xbf16>
      %cst_39 = arith.constant dense<0.000000e+00> : vector<8x128xf32>
      %64 = tpu.matmul %62, %63, %cst_39 {dimension_numbers = #tpu.dot_dimension_numbers<[1], [0], [0], [1], [0, 0, 1, 1], [], []>} : vector<8x128xbf16>, vector<128x128xbf16>, vector<8x128xf32> -> vector<8x128xf32>
      %c0_40 = arith.constant 0 : index
      %c0_41 = arith.constant 0 : index
      %65 = vector.load %arg5[%c0_40, %c0_41] : memref<8x128xf32, #tpu.memory_space<vmem>>, vector<1x128xf32>
      %66 = vector.broadcast %65 : vector<1x128xf32> to vector<8x128xf32>
      %67 = arith.addf %64, %66 : vector<8x128xf32>
      %68 = tpu.iota {dimensions = array<i32: 0>} : vector<8x1xi32>
      %c2_i32 = arith.constant 2 : i32
      %69 = vector.broadcast %c2_i32 : i32 to vector<8x1xi32>
      %70 = arith.cmpi slt, %68, %69 : vector<8x1xi32>
      %71 = arith.extui %70 : vector<8x1xi1> to vector<8x1xi32>
      %72 = arith.sitofp %71 : vector<8x1xi32> to vector<8x1xf32>
      %73 = vector.broadcast %72 : vector<8x1xf32> to vector<8x128xf32>
      %74 = arith.mulf %67, %73 : vector<8x128xf32>
      %cst_42 = arith.constant dense<0.000000e+00> : vector<128xf32>
      %75 = vector.multi_reduction <add>, %74, %cst_42 [0] : vector<8x128xf32> to vector<128xf32>
      %76 = vector.shape_cast %75 : vector<128xf32> to vector<1x128xf32>
      %cst_43 = arith.constant 5.000000e-01 : f32
      %77 = vector.broadcast %cst_43 : f32 to vector<1x128xf32>
      %78 = arith.mulf %76, %77 : vector<1x128xf32>
      %79 = vector.broadcast %78 : vector<1x128xf32> to vector<8x128xf32>
      %80 = arith.subf %67, %79 : vector<8x128xf32>
      %81 = arith.mulf %80, %80 : vector<8x128xf32>
      %82 = vector.broadcast %72 : vector<8x1xf32> to vector<8x128xf32>
      %83 = arith.mulf %81, %82 : vector<8x128xf32>
      %cst_44 = arith.constant dense<0.000000e+00> : vector<128xf32>
      %84 = vector.multi_reduction <add>, %83, %cst_44 [0] : vector<8x128xf32> to vector<128xf32>
      %85 = vector.shape_cast %84 : vector<128xf32> to vector<1x128xf32>
      %cst_45 = arith.constant 5.000000e-01 : f32
      %86 = vector.broadcast %cst_45 : f32 to vector<1x128xf32>
      %87 = arith.mulf %85, %86 : vector<1x128xf32>
      %c1 = arith.constant 1 : index
      %c0_46 = arith.constant 0 : index
      %88 = vector.load %arg5[%c1, %c0_46] : memref<8x128xf32, #tpu.memory_space<vmem>>, vector<1x128xf32>
      %89 = vector.broadcast %88 : vector<1x128xf32> to vector<8x128xf32>
      %90 = arith.mulf %89, %80 : vector<8x128xf32>
      %cst_47 = arith.constant 9.99999974E-6 : f32
      %91 = vector.broadcast %cst_47 : f32 to vector<1x128xf32>
      %92 = arith.addf %87, %91 : vector<1x128xf32>
      %93 = math.rsqrt %92 : vector<1x128xf32>
      %94 = vector.broadcast %93 : vector<1x128xf32> to vector<8x128xf32>
      %95 = arith.mulf %90, %94 : vector<8x128xf32>
      %c2 = arith.constant 2 : index
      %c0_48 = arith.constant 0 : index
      %96 = vector.load %arg5[%c2, %c0_48] : memref<8x128xf32, #tpu.memory_space<vmem>>, vector<1x128xf32>
      %97 = vector.broadcast %96 : vector<1x128xf32> to vector<8x128xf32>
      %98 = arith.addf %95, %97 : vector<8x128xf32>
      %99 = vector.broadcast %72 : vector<8x1xf32> to vector<8x128xf32>
      %100 = arith.mulf %98, %99 : vector<8x128xf32>
      %c0_49 = arith.constant 0 : index
      %c0_50 = arith.constant 0 : index
      %101 = vector.load %arg6[%c0_49, %c0_50] : memref<8x128xf32, #tpu.memory_space<vmem>>, vector<8x128xf32>
      tpu.vector_store %arg6[%c0_49, %c0_50], %100 {strides = array<i32>} : memref<8x128xf32, #tpu.memory_space<vmem>>, vector<8x128xf32>,
    } else {
    }
    return
  }
  func.func @transform_0(%arg0: i32) -> (i32, i32) {
    %c0_i32 = arith.constant 0 : i32
    %c0_i32_0 = arith.constant 0 : i32
    return %arg0, %c0_i32 : i32, i32
  }
  func.func @transform_1(%arg0: i32) -> (i32, i32) {
    %c0_i32 = arith.constant 0 : i32
    %c0_i32_0 = arith.constant 0 : i32
    %c0_i32_1 = arith.constant 0 : i32
    return %c0_i32, %c0_i32_0 : i32, i32
  }
  func.func @transform_2(%arg0: i32) -> (i32, i32) {
    %c0_i32 = arith.constant 0 : i32
    %c0_i32_0 = arith.constant 0 : i32
    %c0_i32_1 = arith.constant 0 : i32
    return %c0_i32, %c0_i32_0 : i32, i32
  }
  func.func @transform_3(%arg0: i32) -> (i32, i32) {
    %c0_i32 = arith.constant 0 : i32
    %c0_i32_0 = arith.constant 0 : i32
    %c0_i32_1 = arith.constant 0 : i32
    return %c0_i32, %c0_i32_0 : i32, i32
  }
  func.func @transform_4(%arg0: i32) -> (i32, i32) {
    %c0_i32 = arith.constant 0 : i32
    %c0_i32_0 = arith.constant 0 : i32
    %c0_i32_1 = arith.constant 0 : i32
    return %c0_i32, %c0_i32_0 : i32, i32
  }
  func.func @transform_5(%arg0: i32) -> (i32, i32) {
    %c0_i32 = arith.constant 0 : i32
    %c0_i32_0 = arith.constant 0 : i32
    %c0_i32_1 = arith.constant 0 : i32
    return %c0_i32, %c0_i32_0 : i32, i32
  }
}

</mosaic_0001>

<llo_original>
// kernel: encoder_cnn_forward.1
$region0: #{encoder_cnn_forward.1}
  #allocation0 [shape = 'u32[]', space=smem, size = 0x4, offset = 0x4, fixed_abs, tag = 'smem constant byte address 0x4 - core index']
  #allocation1 [shape = 'u32[144,128]{1,0:T(1,128)}', space=vmem, size = 0x12000, scoped, tag = 'internal scratch']
  #allocation2 [shape = 'f32[8,128]{1,0:T(8,128)}', space=vmem, size = 0x1000, scoped, tag = 'scratch operand']
  %s0 = inlined_call_operand.vmem [shape: f32[768,8], index: 0, kind: input, shape index: {}]
  %s1 = inlined_call_operand.vmem [shape: f32[328,1], index: 1, kind: input, shape index: {}]
  %s2 = inlined_call_operand.vmem [shape: bf16[72,128], index: 2, kind: input, shape index: {}]
  %s3 = inlined_call_operand.vmem [shape: bf16[128,128], index: 3, kind: input, shape index: {}]
  %s4 = inlined_call_operand.vmem [shape: f32[8,128], index: 4, kind: input, shape index: {}]
  %s5 = inlined_call_operand.vmem [shape: f32[8,128], index: 5, kind: output, shape index: {}]
  %s6 = sld [smem:[#allocation0]]
  $region61: #{encoder_cnn_forward.1} parent=0
    _
  %s8 = ssub.s32 1, %s6
  %s9 = scalar_select 0, %s8, %s6
  loop: start=0, step=1, limit=4
  $region2: #{encoder_cnn_forward.1} parent=0 // loop_pre_header
    _
  $region3: #{encoder_cnn_forward.1} parent=0 // loop_header
    %s11 = sphi 0, %s15
    %p12 = scmp.ge.s32.totalorder %s11, 4
    %s21 = sphi 0, %s23
    %s24 = sphi 0, %s21
    %s25 = sphi 0, %s24
    %s41 = sphi 0, %s25
    %s45 = sphi 0, %s45
    %s47 = sphi 0, %s45
    %s48 = sphi 0, %s47
    %s62 = sphi 0, %s48
    %s66 = sphi 0, %s66
    %s68 = sphi 0, %s66
    %s69 = sphi 0, %s68
    %s83 = sphi 0, %s69
    %s87 = sphi 0, %s87
    %s89 = sphi 0, %s87
    %s90 = sphi 0, %s89
    %s104 = sphi 0, %s90
    %s108 = sphi 0, %s108
    %s110 = sphi 0, %s108
    %s111 = sphi 0, %s110
    %s125 = sphi 0, %s111
    %s129 = sphi 0, %s129
    %s131 = sphi 0, %s129
    %s132 = sphi 0, %s131
    %s146 = sphi 0, %s132
  $region4: #{encoder_cnn_forward.1} parent=0 // loop_header_branch
    %14 = sbr.rel (%p12) target = $region8
  $region5: #{encoder_cnn_forward.1} parent=0 // loop_body
    %s16 = ssub.s32 %s11, 1
    %s17 = ssub.s32 %s11, 2
    %s18 = sadd.s32 %s11, 1
    %s19 = ssub.s32 %s11, %s18
    %p20 = scmp.eq.s32.totalorder %s19, 0
    %s22 = sadd.s32 %s21, 1
    %s23 = scalar_select %p20, %s21, %s22
    %p26 = pneg %p20
    %p27 = scmp.eq.s32.totalorder %s11, 1
    %p28 = por %p26, %p27
    %p29 = scmp.ne.s32.totalorder %s21, %s24
    %p30 = scmp.eq.s32.totalorder %s11, 0
    %p31 = por %p29, %p30
    %p32 = scmp.ne.s32.totalorder %s21, %s24
    %p33 = scmp.eq.s32.totalorder %s16, 1
    %p34 = por %p32, %p33
    %p35 = scmp.ne.s32.totalorder %s24, %s25
    %p36 = scmp.eq.s32.totalorder %s16, 0
    %p37 = por %p35, %p36
    %p38 = scmp.ne.s32.totalorder %s24, %s25
    %p39 = scmp.eq.s32.totalorder %s17, 1
    %p40 = por %p38, %p39
    %p42 = scmp.ne.s32.totalorder %s25, %s41
    %p43 = scmp.eq.s32.totalorder %s17, 0
    %p44 = por %p42, %p43
    %s46 = sadd.s32 %s45, 1
    %p49 = scmp.eq.s32.totalorder %s11, 1
    %p50 = scmp.ne.s32.totalorder %s45, %s47
    %p51 = scmp.eq.s32.totalorder %s11, 0
    %p52 = por %p50, %p51
    %p53 = scmp.ne.s32.totalorder %s45, %s47
    %p54 = scmp.eq.s32.totalorder %s16, 1
    %p55 = por %p53, %p54
    %p56 = scmp.ne.s32.totalorder %s47, %s48
    %p57 = scmp.eq.s32.totalorder %s16, 0
    %p58 = por %p56, %p57
    %p59 = scmp.ne.s32.totalorder %s47, %s48
    %p60 = scmp.eq.s32.totalorder %s17, 1
    %p61 = por %p59, %p60
    %p63 = scmp.ne.s32.totalorder %s48, %s62
    %p64 = scmp.eq.s32.totalorder %s17, 0
    %p65 = por %p63, %p64
    %s67 = sadd.s32 %s66, 1
    %p70 = scmp.eq.s32.totalorder %s11, 1
    %p71 = scmp.ne.s32.totalorder %s66, %s68
    %p72 = scmp.eq.s32.totalorder %s11, 0
    %p73 = por %p71, %p72
    %p74 = scmp.ne.s32.totalorder %s66, %s68
    %p75 = scmp.eq.s32.totalorder %s16, 1
    %p76 = por %p74, %p75
    %p77 = scmp.ne.s32.totalorder %s68, %s69
    %p78 = scmp.eq.s32.totalorder %s16, 0
    %p79 = por %p77, %p78
    %p80 = scmp.ne.s32.totalorder %s68, %s69
    %p81 = scmp.eq.s32.totalorder %s17, 1
    %p82 = por %p80, %p81
    %p84 = scmp.ne.s32.totalorder %s69, %s83
    %p85 = scmp.eq.s32.totalorder %s17, 0
    %p86 = por %p84, %p85
    %s88 = sadd.s32 %s87, 1
    %p91 = scmp.eq.s32.totalorder %s11, 1
    %p92 = scmp.ne.s32.totalorder %s87, %s89
    %p93 = scmp.eq.s32.totalorder %s11, 0
    %p94 = por %p92, %p93
    %p95 = scmp.ne.s32.totalorder %s87, %s89
    %p96 = scmp.eq.s32.totalorder %s16, 1
    %p97 = por %p95, %p96
    %p98 = scmp.ne.s32.totalorder %s89, %s90
    %p99 = scmp.eq.s32.totalorder %s16, 0
    %p100 = por %p98, %p99
    %p101 = scmp.ne.s32.totalorder %s89, %s90
    %p102 = scmp.eq.s32.totalorder %s17, 1
    %p103 = por %p101, %p102
    %p105 = scmp.ne.s32.totalorder %s90, %s104
    %p106 = scmp.eq.s32.totalorder %s17, 0
    %p107 = por %p105, %p106
    %s109 = sadd.s32 %s108, 1
    %p112 = scmp.eq.s32.totalorder %s11, 1
    %p113 = scmp.ne.s32.totalorder %s108, %s110
    %p114 = scmp.eq.s32.totalorder %s11, 0
    %p115 = por %p113, %p114
    %p116 = scmp.ne.s32.totalorder %s108, %s110
    %p117 = scmp.eq.s32.totalorder %s16, 1
    %p118 = por %p116, %p117
    %p119 = scmp.ne.s32.totalorder %s110, %s111
    %p120 = scmp.eq.s32.totalorder %s16, 0
    %p121 = por %p119, %p120
    %p122 = scmp.ne.s32.totalorder %s110, %s111
    %p123 = scmp.eq.s32.totalorder %s17, 1
    %p124 = por %p122, %p123
    %p126 = scmp.ne.s32.totalorder %s111, %s125
    %p127 = scmp.eq.s32.totalorder %s17, 0
    %p128 = por %p126, %p127
    %s130 = sadd.s32 %s129, 1
    %p133 = scmp.eq.s32.totalorder %s11, 1
    %p134 = scmp.ne.s32.totalorder %s129, %s131
    %p135 = scmp.eq.s32.totalorder %s11, 0
    %p136 = por %p134, %p135
    %p137 = scmp.ne.s32.totalorder %s129, %s131
    %p138 = scmp.eq.s32.totalorder %s16, 1
    %p139 = por %p137, %p138
    %p140 = scmp.ne.s32.totalorder %s131, %s132
    %p141 = scmp.eq.s32.totalorder %s16, 0
    %p142 = por %p140, %p141
    %p143 = scmp.ne.s32.totalorder %s131, %s132
    %p144 = scmp.eq.s32.totalorder %s17, 1
    %p145 = por %p143, %p144
    %p147 = scmp.ne.s32.totalorder %s132, %s146
    %p148 = scmp.eq.s32.totalorder %s17, 0
    %p149 = por %p147, %p148
    %p150 = scmp.le.s32.totalorder 1, %s11
    %p151 = scmp.lt.s32.totalorder %s11, 3
    %p152 = pnand %p150, %p151
    %p153 = pneg %p152
    // Predicated region
    $region9: #{encoder_cnn_forward.1} parent=5 // pred_check
      _
    $region10: #{encoder_cnn_forward.1} parent=5 // pred_check_branch
      %155 = sbr.rel (%p152) target = $region12
    $region11: #{encoder_cnn_forward.1} parent=5 // pred_region
      %s156 = ssub.s32 %s11, 1
      // Predicated region
      $region13: #{encoder_cnn_forward.1} parent=11 // pred_check
        %p157 = pneg %p58
      $region14: #{encoder_cnn_forward.1} parent=11 // pred_check_branch
        %159 = sbr.rel (%p157) target = $region16
      $region15: #{encoder_cnn_forward.1} parent=11 // pred_region
        _
      $region16: #{encoder_cnn_forward.1} parent=11 // pred_fallthru
        _
      // Predicated region
      $region17: #{encoder_cnn_forward.1} parent=11 // pred_check
        %p160 = pneg %p79
      $region18: #{encoder_cnn_forward.1} parent=11 // pred_check_branch
        %162 = sbr.rel (%p160) target = $region20
      $region19: #{encoder_cnn_forward.1} parent=11 // pred_region
        _
      $region20: #{encoder_cnn_forward.1} parent=11 // pred_fallthru
        _
      // Predicated region
      $region21: #{encoder_cnn_forward.1} parent=11 // pred_check
        %p163 = pneg %p100
      $region22: #{encoder_cnn_forward.1} parent=11 // pred_check_branch
        %165 = sbr.rel (%p163) target = $region24
      $region23: #{encoder_cnn_forward.1} parent=11 // pred_region
        _
      $region24: #{encoder_cnn_forward.1} parent=11 // pred_fallthru
        _
      // Predicated region
      $region25: #{encoder_cnn_forward.1} parent=11 // pred_check
        %p166 = pneg %p121
      $region26: #{encoder_cnn_forward.1} parent=11 // pred_check_branch
        %168 = sbr.rel (%p166) target = $region28
      $region27: #{encoder_cnn_forward.1} parent=11 // pred_region
        _
      $region28: #{encoder_cnn_forward.1} parent=11 // pred_fallthru
        _
    $region12: #{encoder_cnn_forward.1} parent=5 // pred_fallthru
      _
    %p169 = scmp.lt.s32.totalorder %s11, 2
    // Predicated region
    $region29: #{encoder_cnn_forward.1} parent=5 // pred_check
      %p170 = pneg %p169
    $region30: #{encoder_cnn_forward.1} parent=5 // pred_check_branch
      %172 = sbr.rel (%p170) target = $region32
    $region31: #{encoder_cnn_forward.1} parent=5 // pred_region
      // Predicated region
      $region33: #{encoder_cnn_forward.1} parent=31 // pred_check
        %p173 = pneg %p31
      $region34: #{encoder_cnn_forward.1} parent=31 // pred_check_branch
        %175 = sbr.rel (%p173) target = $region36
      $region35: #{encoder_cnn_forward.1} parent=31 // pred_region
        %s176 = smul.u32 48, %s11
        %p177 = scmp.lt.s32.totalorder %s176, 95
        %s178 = scalar_select %p177, %s176, 95
        %s179 = smul.addr %s178, 8
        %s180 = scalar_lea.vmem %s0, %s179
        %s181 = smul.u32 48, %s11
      $region36: #{encoder_cnn_forward.1} parent=31 // pred_fallthru
        _
    $region32: #{encoder_cnn_forward.1} parent=5 // pred_fallthru
      _
    %p182 = scmp.le.s32.totalorder 1, %s11
    %p183 = scmp.lt.s32.totalorder %s11, 3
    %p184 = pnand %p182, %p183
    %p185 = pneg %p184
    // Predicated region
    $region37: #{encoder_cnn_forward.1} parent=5 // pred_check
      _
    $region38: #{encoder_cnn_forward.1} parent=5 // pred_check_branch
      %187 = sbr.rel (%p184) target = $region40
    $region39: #{encoder_cnn_forward.1} parent=5 // pred_region
      %s188 = ssub.s32 %s11, 1
      %s189 = smul.u32 48, %s16
      %p190 = scmp.lt.s32.totalorder %s189, 95
      %s191 = scalar_select %p190, %s189, 95
      %s192 = smul.addr %s191, 8
      %s193 = scalar_lea.vmem %s0, %s192
      %p194 = pneg %p37
      %p195 = pneg %p34
      %p196 = pneg %p58
      %p197 = pneg %p55
      %p198 = pneg %p79
      %p199 = pneg %p76
      %p200 = pneg %p100
      %p201 = pneg %p97
      %p202 = pneg %p121
      %p203 = pneg %p118
      %p204 = pneg %p142
      %p205 = pneg %p139
      %s206 = smul.u32 48, %s16
      %p207 = scmp.lt.s32.totalorder %s206, 95
      %s208 = scalar_select %p207, %s206, 95
      %s209 = smul.addr %s208, 8
      %s210 = scalar_lea.vmem %s0, %s209
      %s211 = smul.u32 48, %s16
      %p213 = scmp.eq.s32.totalorder %s16, 0
      // Predicated region
      $region41: #{encoder_cnn_forward.1} parent=39 // pred_check
        %p214 = pneg %p213
      $region42: #{encoder_cnn_forward.1} parent=39 // pred_check_branch
        %216 = sbr.rel (%p214) target = $region44
      $region43: #{encoder_cnn_forward.1} parent=39 // pred_region
        %217 = vst [vmem:[#allocation2] sm:$0xff] 0.0
      $region44: #{encoder_cnn_forward.1} parent=39 // pred_fallthru
        _
      %v218 = vld [vmem:[%s210 + $0xd] sm:$0xff]
      %v219 = vld [vmem:[%s210 + $0x15] sm:$0xff]
      %v220 = vld [vmem:[%s210 + $0x1d] sm:$0xff]
      %v221 = vld [vmem:[%s210 + $0x25] sm:$0xff]
      %v222 = vld [vmem:[%s210 + $0x2d] sm:$0xff]
      %v223 = vld [vmem:[%s210 + $0x35] sm:$0xff]
      %v224 = vld [vmem:[%s210 + $0x3d] sm:$0xff]
      %v225 = vld [vmem:[%s210 + $0x45] sm:$0xff]
      %v226 = vld [vmem:[%s210 + $0x4d] sm:$0xff]
      %v227 = vld [vmem:[%s210 + $0x55] sm:$0xff]
      %v228 = vld [vmem:[%s210 + $0x5d] sm:$0xff]
      %v229 = vld [vmem:[%s210 + $0x65] sm:$0xff]
      %v230 = vld [vmem:[%s210 + $0x6d] sm:$0xff]
      %v231 = vld [vmem:[%s210 + $0x75] sm:$0xff]
      %v232 = vld [vmem:[%s210 + $0x7d] sm:$0xff]
      %v233 = vld [vmem:[%s210 + $0x85] sm:$0xff]
      %v234 = vld [vmem:[%s210 + $0x8d] sm:$0xff]
      %v235 = vld [vmem:[%s210 + $0x95] sm:$0xff]
      %v236 = vld [vmem:[%s210 + $0x9d] sm:$0xff]
      %v237 = vld [vmem:[%s210 + $0xa5] sm:$0xff]
      %v238 = vld [vmem:[%s210 + $0xad] sm:$0xff]
      %v239 = vld [vmem:[%s210 + $0xb5] sm:$0xff]
      %v240 = vld [vmem:[%s210 + $0xbd] sm:$0xff]
      %v241 = vld [vmem:[%s210 + $0xc5] sm:$0xff]
      %v242 = vld [vmem:[%s210 + $0xcd] sm:$0xff]
      %v243 = vld [vmem:[%s210 + $0xd5] sm:$0xff]
      %v244 = vld [vmem:[%s210 + $0xdd] sm:$0xff]
      %v245 = vld [vmem:[%s210 + $0xe5] sm:$0xff]
      %v246 = vld [vmem:[%s210 + $0xed] sm:$0xff]
      %v247 = vld [vmem:[%s210 + $0xf5] sm:$0xff]
      %v248 = vld [vmem:[%s210 + $0xfd] sm:$0xff]
      %v249 = vld [vmem:[%s210 + $0x105] sm:$0xff]
      %v250 = vld [vmem:[%s210 + $0x10d] sm:$0xff]
      %v251 = vld [vmem:[%s210 + $0x115] sm:$0xff]
      %v252 = vld [vmem:[%s210 + $0x11d] sm:$0xff]
      %v253 = vld [vmem:[%s210 + $0x125] sm:$0xff]
      %v254 = vld [vmem:[%s210 + $0x12d] sm:$0xff]
      %v255 = vld [vmem:[%s210 + $0x135] sm:$0xff]
      %v256 = vld [vmem:[%s210 + $0x13d] sm:$0xff]
      %v257 = vld [vmem:[%s210 + $0x145] sm:$0xff]
      %v258 = vld [vmem:[%s210 + $0x14d] sm:$0xff]
      %v259 = vpack.c.bf16 %v219, %v218
      %v260 = vpack.c.bf16 %v221, %v220
      %v261 = vpack.c.bf16 %v223, %v222
      %v262 = vpack.c.bf16 %v225, %v224
      %v263 = vpack.c.bf16 %v227, %v226
      %v264 = vpack.c.bf16 %v229, %v228
      %v265 = vpack.c.bf16 %v231, %v230
      %v266 = vpack.c.bf16 %v233, %v232
      %v267 = vpack.c.bf16 %v235, %v234
      %v268 = vpack.c.bf16 %v237, %v236
      %v269 = vpack.c.bf16 %v239, %v238
      %v270 = vpack.c.bf16 %v241, %v240
      %v271 = vpack.c.bf16 %v243, %v242
      %v272 = vpack.c.bf16 %v245, %v244
      %v273 = vpack.c.bf16 %v247, %v246
      %v274 = vpack.c.bf16 %v249, %v248
      %v275 = vpack.c.bf16 %v251, %v250
      %v276 = vpack.c.bf16 %v253, %v252
      %v277 = vpack.c.bf16 %v255, %v254
      %v278 = vpack.c.bf16 %v257, %v256
      %v279 = vpack.c.bf16 %v258, %v258
      %v280 = vld [vmem:[%s2] sm:$0xf]
      %v281 = vld [vmem:[%s210 + $0xe] sm:$0xff]
      %v282 = vld [vmem:[%s210 + $0x16] sm:$0xff]
      %v283 = vld [vmem:[%s210 + $0x1e] sm:$0xff]
      %v284 = vld [vmem:[%s210 + $0x26] sm:$0xff]
      %v285 = vld [vmem:[%s210 + $0x2e] sm:$0xff]
      %v286 = vld [vmem:[%s210 + $0x36] sm:$0xff]
      %v287 = vld [vmem:[%s210 + $0x3e] sm:$0xff]
      %v288 = vld [vmem:[%s210 + $0x46] sm:$0xff]
      %v289 = vld [vmem:[%s210 + $0x4e] sm:$0xff]
      %v290 = vld [vmem:[%s210 + $0x56] sm:$0xff]
      %v291 = vld [vmem:[%s210 + $0x5e] sm:$0xff]
      %v292 = vld [vmem:[%s210 + $0x66] sm:$0xff]
      %v293 = vld [vmem:[%s210 + $0x6e] sm:$0xff]
      %v294 = vld [vmem:[%s210 + $0x76] sm:$0xff]
      %v295 = vld [vmem:[%s210 + $0x7e] sm:$0xff]
      %v296 = vld [vmem:[%s210 + $0x86] sm:$0xff]
      %v297 = vld [vmem:[%s210 + $0x8e] sm:$0xff]
      %v298 = vld [vmem:[%s210 + $0x96] sm:$0xff]
      %v299 = vld [vmem:[%s210 + $0x9e] sm:$0xff]
      %v300 = vld [vmem:[%s210 + $0xa6] sm:$0xff]
      %v301 = vld [vmem:[%s210 + $0xae] sm:$0xff]
      %v302 = vld [vmem:[%s210 + $0xb6] sm:$0xff]
      %v303 = vld [vmem:[%s210 + $0xbe] sm:$0xff]
      %v304 = vld [vmem:[%s210 + $0xc6] sm:$0xff]
      %v305 = vld [vmem:[%s210 + $0xce] sm:$0xff]
      %v306 = vld [vmem:[%s210 + $0xd6] sm:$0xff]
      %v307 = vld [vmem:[%s210 + $0xde] sm:$0xff]
      %v308 = vld [vmem:[%s210 + $0xe6] sm:$0xff]
      %v309 = vld [vmem:[%s210 + $0xee] sm:$0xff]
      %v310 = vld [vmem:[%s210 + $0xf6] sm:$0xff]
      %v311 = vld [vmem:[%s210 + $0xfe] sm:$0xff]
      %v312 = vld [vmem:[%s210 + $0x106] sm:$0xff]
      %v313 = vld [vmem:[%s210 + $0x10e] sm:$0xff]
      %v314 = vld [vmem:[%s210 + $0x116] sm:$0xff]
      %v315 = vld [vmem:[%s210 + $0x11e] sm:$0xff]
      %v316 = vld [vmem:[%s210 + $0x126] sm:$0xff]
      %v317 = vld [vmem:[%s210 + $0x12e] sm:$0xff]
      %v318 = vld [vmem:[%s210 + $0x136] sm:$0xff]
      %v319 = vld [vmem:[%s210 + $0x13e] sm:$0xff]
      %v320 = vld [vmem:[%s210 + $0x146] sm:$0xff]
      %v321 = vld [vmem:[%s210 + $0x14e] sm:$0xff]
      %v322 = vpack.c.bf16 %v282, %v281
      %v323 = vpack.c.bf16 %v284, %v283
      %v324 = vpack.c.bf16 %v286, %v285
      %v325 = vpack.c.bf16 %v288, %v287
      %v326 = vpack.c.bf16 %v290, %v289
      %v327 = vpack.c.bf16 %v292, %v291
      %v328 = vpack.c.bf16 %v294, %v293
      %v329 = vpack.c.bf16 %v296, %v295
      %v330 = vpack.c.bf16 %v298, %v297
      %v331 = vpack.c.bf16 %v300, %v299
      %v332 = vpack.c.bf16 %v302, %v301
      %v333 = vpack.c.bf16 %v304, %v303
      %v334 = vpack.c.bf16 %v306, %v305
      %v335 = vpack.c.bf16 %v308, %v307
      %v336 = vpack.c.bf16 %v310, %v309
      %v337 = vpack.c.bf16 %v312, %v311
      %v338 = vpack.c.bf16 %v314, %v313
      %v339 = vpack.c.bf16 %v316, %v315
      %v340 = vpack.c.bf16 %v318, %v317
      %v341 = vpack.c.bf16 %v320, %v319
      %v342 = vpack.c.bf16 %v321, %v321
      %v343 = vld [vmem:[%s2 + $0x4] sm:$0xf]
      %vm344 = vcmask 64512
      %v346 = vsel %vm344, %v322, 0
      %v349 = vsel %vm344, %v323, 0
      %v352 = vsel %vm344, %v324, 0
      %v355 = vsel %vm344, %v325, 0
      %v358 = vsel %vm344, %v326, 0
      %v361 = vsel %vm344, %v327, 0
      %v364 = vsel %vm344, %v328, 0
      %v367 = vsel %vm344, %v329, 0
      %v370 = vsel %vm344, %v330, 0
      %v373 = vsel %vm344, %v331, 0
      %v376 = vsel %vm344, %v332, 0
      %v379 = vsel %vm344, %v333, 0
      %v382 = vsel %vm344, %v334, 0
      %v385 = vsel %vm344, %v335, 0
      %v388 = vsel %vm344, %v336, 0
      %v391 = vsel %vm344, %v337, 0
      %v394 = vsel %vm344, %v338, 0
      %v397 = vsel %vm344, %v339, 0
      %v400 = vsel %vm344, %v340, 0
      %v403 = vsel %vm344, %v341, 0
      %v406 = vsel %vm344, %v342, 0
      %vm408 = vcmask 1043456
      %v410 = vsel %vm408, %v343, 0
      %412 = vmatprep.subr.bf16.mxu0 0
      %413 = vmatpush1.bf16.msra.mxu0 %v410
      %414 = vmatprep.subr.bf16.mxu0 0
      %415 = vmatpush1.bf16.msra.mxu0 0
      %416 = vmatprep.subr.bf16.mxu0 0
      %417 = vmatpush1.bf16.msra.mxu0 0
      %418 = vmatprep.subr.bf16.mxu0 0
      %419 = vmatpush1.bf16.msra.mxu0 0
      %420 = vmatprep.subr.bf16.mxu0 0
      %421 = vmatpush1.bf16.msra.mxu0 0
      %422 = vmatprep.subr.bf16.mxu0 0
      %423 = vmatpush1.bf16.msra.mxu0 0
      %424 = vmatprep.subr.bf16.mxu0 0
      %425 = vmatpush1.bf16.msra.mxu0 0
      %426 = vmatprep.subr.bf16.mxu0 0
      %427 = vmatpush1.bf16.msra.mxu0 0
      %428 = vmatprep.subr.bf16.mxu0 0
      %429 = vmatpush1.bf16.msra.mxu0 0
      %430 = vmatprep.subr.bf16.mxu0 0
      %431 = vmatpush1.bf16.msra.mxu0 0
      %432 = vmatprep.subr.bf16.mxu0 0
      %433 = vmatpush1.bf16.msra.mxu0 0
      %434 = vmatprep.subr.bf16.mxu0 0
      %435 = vmatpush1.bf16.msra.mxu0 0
      %436 = vmatprep.subr.bf16.mxu0 0
      %437 = vmatpush1.bf16.msra.mxu0 0
      %438 = vmatprep.subr.bf16.mxu0 0
      %439 = vmatpush1.bf16.msra.mxu0 0
      %440 = vmatprep.subr.bf16.mxu0 0
      %441 = vmatpush1.bf16.msra.mxu0 0
      %442 = vmatprep.subr.bf16.mxu0 0
      %443 = vmatpush1.bf16.msra.mxu0 0
      %444 = vmatprep.mubr.bf16.mxu0 0
      %445 = vmatmul.mubr.bf16.gmra.mrb[0].mxu0 %v346
      %v446 = vpop.f32.mrb[0].mxu0
      %v447 = vadd.f32 0.0, %v446
      %v448 = vpop.f32.mrb[0].mxu0
      %v449 = vpop.f32.mrb[0].mxu0
      %v450 = vadd.f32 0.0, %v449
      %v451 = vpop.f32.mrb[0].mxu0
      %452 = vmatprep.mubr.bf16.mxu0 0
      %453 = vmatmul.mubr.bf16.gmra.mrb[0].mxu0 %v349
      %v454 = vpop.f32.mrb[0].mxu0
      %v455 = vadd.f32 0.0, %v454
      %v456 = vpop.f32.mrb[0].mxu0
      %v457 = vpop.f32.mrb[0].mxu0
      %v458 = vadd.f32 0.0, %v457
      %v459 = vpop.f32.mrb[0].mxu0
      %460 = vmatprep.mubr.bf16.mxu0 0
      %461 = vmatmul.mubr.bf16.gmra.mrb[0].mxu0 %v352
      %v462 = vpop.f32.mrb[0].mxu0
      %v463 = vadd.f32 0.0, %v462
      %v464 = vpop.f32.mrb[0].mxu0
      %v465 = vpop.f32.mrb[0].mxu0
      %v466 = vadd.f32 0.0, %v465
      %v467 = vpop.f32.mrb[0].mxu0
      %468 = vmatprep.mubr.bf16.mxu0 0
      %469 = vmatmul.mubr.bf16.gmra.mrb[0].mxu0 %v355
      %v470 = vpop.f32.mrb[0].mxu0
      %v471 = vadd.f32 0.0, %v470
      %v472 = vpop.f32.mrb[0].mxu0
      %v473 = vpop.f32.mrb[0].mxu0
      %v474 = vadd.f32 0.0, %v473
      %v475 = vpop.f32.mrb[0].mxu0
      %476 = vmatprep.mubr.bf16.mxu0 0
      %477 = vmatmul.mubr.bf16.gmra.mrb[0].mxu0 %v358
      %v478 = vpop.f32.mrb[0].mxu0
      %v479 = vadd.f32 0.0, %v478
      %v480 = vpop.f32.mrb[0].mxu0
      %v481 = vpop.f32.mrb[0].mxu0
      %v482 = vadd.f32 0.0, %v481
      %v483 = vpop.f32.mrb[0].mxu0
      %484 = vmatprep.mubr.bf16.mxu0 0
      %485 = vmatmul.mubr.bf16.gmra.mrb[0].mxu0 %v361
      %v486 = vpop.f32.mrb[0].mxu0
      %v487 = vadd.f32 0.0, %v486
      %v488 = vpop.f32.mrb[0].mxu0
      %v489 = vpop.f32.mrb[0].mxu0
      %v490 = vadd.f32 0.0, %v489
      %v491 = vpop.f32.mrb[0].mxu0
      %492 = vmatprep.mubr.bf16.mxu0 0
      %493 = vmatmul.mubr.bf16.gmra.mrb[0].mxu0 %v364
      %v494 = vpop.f32.mrb[0].mxu0
      %v495 = vadd.f32 0.0, %v494
      %v496 = vpop.f32.mrb[0].mxu0
      %v497 = vpop.f32.mrb[0].mxu0
      %v498 = vadd.f32 0.0, %v497
      %v499 = vpop.f32.mrb[0].mxu0
      %500 = vmatprep.mubr.bf16.mxu0 0
      %501 = vmatmul.mubr.bf16.gmra.mrb[0].mxu0 %v367
      %v502 = vpop.f32.mrb[0].mxu0
      %v503 = vadd.f32 0.0, %v502
      %v504 = vpop.f32.mrb[0].mxu0
      %v505 = vpop.f32.mrb[0].mxu0
      %v506 = vadd.f32 0.0, %v505
      %v507 = vpop.f32.mrb[0].mxu0
      %508 = vmatprep.mubr.bf16.mxu0 0
      %509 = vmatmul.mubr.bf16.gmra.mrb[0].mxu0 %v370
      %v510 = vpop.f32.mrb[0].mxu0
      %v511 = vadd.f32 0.0, %v510
      %v512 = vpop.f32.mrb[0].mxu0
      %v513 = vpop.f32.mrb[0].mxu0
      %v514 = vadd.f32 0.0, %v513
      %v515 = vpop.f32.mrb[0].mxu0
      %516 = vmatprep.mubr.bf16.mxu0 0
      %517 = vmatmul.mubr.bf16.gmra.mrb[0].mxu0 %v373
      %v518 = vpop.f32.mrb[0].mxu0
      %v519 = vadd.f32 0.0, %v518
      %v520 = vpop.f32.mrb[0].mxu0
      %v521 = vpop.f32.mrb[0].mxu0
      %v522 = vadd.f32 0.0, %v521
      %v523 = vpop.f32.mrb[0].mxu0
      %524 = vmatprep.mubr.bf16.mxu0 0
      %525 = vmatmul.mubr.bf16.gmra.mrb[0].mxu0 %v376
      %v526 = vpop.f32.mrb[0].mxu0
      %v527 = vadd.f32 0.0, %v526
      %v528 = vpop.f32.mrb[0].mxu0
      %v529 = vpop.f32.mrb[0].mxu0
      %v530 = vadd.f32 0.0, %v529
      %v531 = vpop.f32.mrb[0].mxu0
      %532 = vmatprep.mubr.bf16.mxu0 0
      %533 = vmatmul.mubr.bf16.gmra.mrb[0].mxu0 %v379
      %v534 = vpop.f32.mrb[0].mxu0
      %v535 = vadd.f32 0.0, %v534
      %v536 = vpop.f32.mrb[0].mxu0
      %v537 = vpop.f32.mrb[0].mxu0
      %v538 = vadd.f32 0.0, %v537
      %v539 = vpop.f32.mrb[0].mxu0
      %540 = vmatprep.mubr.bf16.mxu0 0
      %541 = vmatmul.mubr.bf16.gmra.mrb[0].mxu0 %v382
      %v542 = vpop.f32.mrb[0].mxu0
      %v543 = vadd.f32 0.0, %v542
      %v544 = vpop.f32.mrb[0].mxu0
      %v545 = vpop.f32.mrb[0].mxu0
      %v546 = vadd.f32 0.0, %v545
      %v547 = vpop.f32.mrb[0].mxu0
      %548 = vmatprep.mubr.bf16.mxu0 0
      %549 = vmatmul.mubr.bf16.gmra.mrb[0].mxu0 %v385
      %v550 = vpop.f32.mrb[0].mxu0
      %v551 = vadd.f32 0.0, %v550
      %v552 = vpop.f32.mrb[0].mxu0
      %v553 = vpop.f32.mrb[0].mxu0
      %v554 = vadd.f32 0.0, %v553
      %v555 = vpop.f32.mrb[0].mxu0
      %556 = vmatprep.mubr.bf16.mxu0 0
      %557 = vmatmul.mubr.bf16.gmra.mrb[0].mxu0 %v388
      %v558 = vpop.f32.mrb[0].mxu0
      %v559 = vadd.f32 0.0, %v558
      %v560 = vpop.f32.mrb[0].mxu0
      %v561 = vpop.f32.mrb[0].mxu0
      %v562 = vadd.f32 0.0, %v561
      %v563 = vpop.f32.mrb[0].mxu0
      %564 = vmatprep.mubr.bf16.mxu0 0
      %565 = vmatmul.mubr.bf16.gmra.mrb[0].mxu0 %v391
      %v566 = vpop.f32.mrb[0].mxu0
      %v567 = vadd.f32 0.0, %v566
      %v568 = vpop.f32.mrb[0].mxu0
      %v569 = vpop.f32.mrb[0].mxu0
      %v570 = vadd.f32 0.0, %v569
      %v571 = vpop.f32.mrb[0].mxu0
      %572 = vmatprep.mubr.bf16.mxu0 0
      %573 = vmatmul.mubr.bf16.gmra.mrb[0].mxu0 %v394
      %v574 = vpop.f32.mrb[0].mxu0
      %v575 = vadd.f32 0.0, %v574
      %v576 = vpop.f32.mrb[0].mxu0
      %v577 = vpop.f32.mrb[0].mxu0
      %v578 = vadd.f32 0.0, %v577
      %v579 = vpop.f32.mrb[0].mxu0
      %580 = vmatprep.mubr.bf16.mxu0 0
      %581 = vmatmul.mubr.bf16.gmra.mrb[0].mxu0 %v397
      %v582 = vpop.f32.mrb[0].mxu0
      %v583 = vadd.f32 0.0, %v582
      %v584 = vpop.f32.mrb[0].mxu0
      %v585 = vpop.f32.mrb[0].mxu0
      %v586 = vadd.f32 0.0, %v585
      %v587 = vpop.f32.mrb[0].mxu0
      %588 = vmatprep.mubr.bf16.mxu0 0
      %589 = vmatmul.mubr.bf16.gmra.mrb[0].mxu0 %v400
      %v590 = vpop.f32.mrb[0].mxu0
      %v591 = vadd.f32 0.0, %v590
      %v592 = vpop.f32.mrb[0].mxu0
      %v593 = vpop.f32.mrb[0].mxu0
      %v594 = vadd.f32 0.0, %v593
      %v595 = vpop.f32.mrb[0].mxu0
      %596 = vmatprep.mubr.bf16.mxu0 0
      %597 = vmatmul.mubr.bf16.gmra.mrb[0].mxu0 %v403
      %v598 = vpop.f32.mrb[0].mxu0
      %v599 = vadd.f32 0.0, %v598
      %v600 = vpop.f32.mrb[0].mxu0
      %v601 = vpop.f32.mrb[0].mxu0
      %v602 = vadd.f32 0.0, %v601
      %v603 = vpop.f32.mrb[0].mxu0
      %604 = vmatprep.mubr.bf16.mxu0 0
      %605 = vmatmul.mubr.bf16.gmra.mrb[0].mxu0 %v406
      %v606 = vpop.f32.mrb[0].mxu0
      %v607 = vadd.f32 0.0, %v606
      %v608 = vpop.f32.mrb[0].mxu0
      %v609 = vpop.f32.mrb[0].mxu0
      %v610 = vpop.f32.mrb[0].mxu0
      %611 = vdwg.mxu0
      %v613 = vsel %vm344, %v259, 0
      %v616 = vsel %vm344, %v260, 0
      %v619 = vsel %vm344, %v261, 0
      %v622 = vsel %vm344, %v262, 0
      %v625 = vsel %vm344, %v263, 0
      %v628 = vsel %vm344, %v264, 0
      %v631 = vsel %vm344, %v265, 0
      %v634 = vsel %vm344, %v266, 0
      %v637 = vsel %vm344, %v267, 0
      %v640 = vsel %vm344, %v268, 0
      %v643 = vsel %vm344, %v269, 0
      %v646 = vsel %vm344, %v270, 0
      %v649 = vsel %vm344, %v271, 0
      %v652 = vsel %vm344, %v272, 0
      %v655 = vsel %vm344, %v273, 0
      %v658 = vsel %vm344, %v274, 0
      %v661 = vsel %vm344, %v275, 0
      %v664 = vsel %vm344, %v276, 0
      %v667 = vsel %vm344, %v277, 0
      %v670 = vsel %vm344, %v278, 0
      %v673 = vsel %vm344, %v279, 0
      %v676 = vsel %vm408, %v280, 0
      %678 = vmatprep.subr.bf16.mxu0 0
      %679 = vmatpush1.bf16.msra.mxu0 %v676
      %680 = vmatprep.subr.bf16.mxu0 0
      %681 = vmatpush1.bf16.msra.mxu0 0
      %682 = vmatprep.subr.bf16.mxu0 0
      %683 = vmatpush1.bf16.msra.mxu0 0
      %684 = vmatprep.subr.bf16.mxu0 0
      %685 = vmatpush1.bf16.msra.mxu0 0
      %686 = vmatprep.subr.bf16.mxu0 0
      %687 = vmatpush1.bf16.msra.mxu0 0
      %688 = vmatprep.subr.bf16.mxu0 0
      %689 = vmatpush1.bf16.msra.mxu0 0
      %690 = vmatprep.subr.bf16.mxu0 0
      %691 = vmatpush1.bf16.msra.mxu0 0
      %692 = vmatprep.subr.bf16.mxu0 0
      %693 = vmatpush1.bf16.msra.mxu0 0
      %694 = vmatprep.subr.bf16.mxu0 0
      %695 = vmatpush1.bf16.msra.mxu0 0
      %696 = vmatprep.subr.bf16.mxu0 0
      %697 = vmatpush1.bf16.msra.mxu0 0
      %698 = vmatprep.subr.bf16.mxu0 0
      %699 = vmatpush1.bf16.msra.mxu0 0
      %700 = vmatprep.subr.bf16.mxu0 0
      %701 = vmatpush1.bf16.msra.mxu0 0
      %702 = vmatprep.subr.bf16.mxu0 0
      %703 = vmatpush1.bf16.msra.mxu0 0
      %704 = vmatprep.subr.bf16.mxu0 0
      %705 = vmatpush1.bf16.msra.mxu0 0
      %706 = vmatprep.subr.bf16.mxu0 0
      %707 = vmatpush1.bf16.msra.mxu0 0
      %708 = vmatprep.subr.bf16.mxu0 0
      %709 = vmatpush1.bf16.msra.mxu0 0
      %710 = vmatprep.mubr.bf16.mxu0 0
      %711 = vmatmul.mubr.bf16.gmra.mrb[0].mxu0 %v613
      %v712 = vpop.f32.mrb[0].mxu0
      %v713 = vadd.f32 %v447, %v712
      %v714 = vpop.f32.mrb[0].mxu0
      %v715 = vpop.f32.mrb[0].mxu0
      %v716 = vadd.f32 %v450, %v715
      %v717 = vpop.f32.mrb[0].mxu0
      %718 = vmatprep.mubr.bf16.mxu0 0
      %719 = vmatmul.mubr.bf16.gmra.mrb[0].mxu0 %v616
      %v720 = vpop.f32.mrb[0].mxu0
      %v721 = vadd.f32 %v455, %v720
      %v722 = vpop.f32.mrb[0].mxu0
      %v723 = vpop.f32.mrb[0].mxu0
      %v724 = vadd.f32 %v458, %v723
      %v725 = vpop.f32.mrb[0].mxu0
      %726 = vmatprep.mubr.bf16.mxu0 0
      %727 = vmatmul.mubr.bf16.gmra.mrb[0].mxu0 %v619
      %v728 = vpop.f32.mrb[0].mxu0
      %v729 = vadd.f32 %v463, %v728
      %v730 = vpop.f32.mrb[0].mxu0
      %v731 = vpop.f32.mrb[0].mxu0
      %v732 = vadd.f32 %v466, %v731
      %v733 = vpop.f32.mrb[0].mxu0
      %734 = vmatprep.mubr.bf16.mxu0 0
      %735 = vmatmul.mubr.bf16.gmra.mrb[0].mxu0 %v622
      %v736 = vpop.f32.mrb[0].mxu0
      %v737 = vadd.f32 %v471, %v736
      %v738 = vpop.f32.mrb[0].mxu0
      %v739 = vpop.f32.mrb[0].mxu0
      %v740 = vadd.f32 %v474, %v739
      %v741 = vpop.f32.mrb[0].mxu0
      %742 = vmatprep.mubr.bf16.mxu0 0
      %743 = vmatmul.mubr.bf16.gmra.mrb[0].mxu0 %v625
      %v744 = vpop.f32.mrb[0].mxu0
      %v745 = vadd.f32 %v479, %v744
      %v746 = vpop.f32.mrb[0].mxu0
      %v747 = vpop.f32.mrb[0].mxu0
      %v748 = vadd.f32 %v482, %v747
      %v749 = vpop.f32.mrb[0].mxu0
      %750 = vmatprep.mubr.bf16.mxu0 0
      %751 = vmatmul.mubr.bf16.gmra.mrb[0].mxu0 %v628
      %v752 = vpop.f32.mrb[0].mxu0
      %v753 = vadd.f32 %v487, %v752
      %v754 = vpop.f32.mrb[0].mxu0
      %v755 = vpop.f32.mrb[0].mxu0
      %v756 = vadd.f32 %v490, %v755
      %v757 = vpop.f32.mrb[0].mxu0
      %758 = vmatprep.mubr.bf16.mxu0 0
      %759 = vmatmul.mubr.bf16.gmra.mrb[0].mxu0 %v631
      %v760 = vpop.f32.mrb[0].mxu0
      %v761 = vadd.f32 %v495, %v760
      %v762 = vpop.f32.mrb[0].mxu0
      %v763 = vpop.f32.mrb[0].mxu0
      %v764 = vadd.f32 %v498, %v763
      %v765 = vpop.f32.mrb[0].mxu0
      %766 = vmatprep.mubr.bf16.mxu0 0
      %767 = vmatmul.mubr.bf16.gmra.mrb[0].mxu0 %v634
      %v768 = vpop.f32.mrb[0].mxu0
      %v769 = vadd.f32 %v503, %v768
      %v770 = vpop.f32.mrb[0].mxu0
      %v771 = vpop.f32.mrb[0].mxu0
      %v772 = vadd.f32 %v506, %v771
      %v773 = vpop.f32.mrb[0].mxu0
      %774 = vmatprep.mubr.bf16.mxu0 0
      %775 = vmatmul.mubr.bf16.gmra.mrb[0].mxu0 %v637
      %v776 = vpop.f32.mrb[0].mxu0
      %v777 = vadd.f32 %v511, %v776
      %v778 = vpop.f32.mrb[0].mxu0
      %v779 = vpop.f32.mrb[0].mxu0
      %v780 = vadd.f32 %v514, %v779
      %v781 = vpop.f32.mrb[0].mxu0
      %782 = vmatprep.mubr.bf16.mxu0 0
      %783 = vmatmul.mubr.bf16.gmra.mrb[0].mxu0 %v640
      %v784 = vpop.f32.mrb[0].mxu0
      %v785 = vadd.f32 %v519, %v784
      %v786 = vpop.f32.mrb[0].mxu0
      %v787 = vpop.f32.mrb[0].mxu0
      %v788 = vadd.f32 %v522, %v787
      %v789 = vpop.f32.mrb[0].mxu0
      %790 = vmatprep.mubr.bf16.mxu0 0
      %791 = vmatmul.mubr.bf16.gmra.mrb[0].mxu0 %v643
      %v792 = vpop.f32.mrb[0].mxu0
      %v793 = vadd.f32 %v527, %v792
      %v794 = vpop.f32.mrb[0].mxu0
      %v795 = vpop.f32.mrb[0].mxu0
      %v796 = vadd.f32 %v530, %v795
      %v797 = vpop.f32.mrb[0].mxu0
      %798 = vmatprep.mubr.bf16.mxu0 0
      %799 = vmatmul.mubr.bf16.gmra.mrb[0].mxu0 %v646
      %v800 = vpop.f32.mrb[0].mxu0
      %v801 = vadd.f32 %v535, %v800
      %v802 = vpop.f32.mrb[0].mxu0
      %v803 = vpop.f32.mrb[0].mxu0
      %v804 = vadd.f32 %v538, %v803
      %v805 = vpop.f32.mrb[0].mxu0
      %806 = vmatprep.mubr.bf16.mxu0 0
      %807 = vmatmul.mubr.bf16.gmra.mrb[0].mxu0 %v649
      %v808 = vpop.f32.mrb[0].mxu0
      %v809 = vadd.f32 %v543, %v808
      %v810 = vpop.f32.mrb[0].mxu0
      %v811 = vpop.f32.mrb[0].mxu0
      %v812 = vadd.f32 %v546, %v811
      %v813 = vpop.f32.mrb[0].mxu0
      %814 = vmatprep.mubr.bf16.mxu0 0
      %815 = vmatmul.mubr.bf16.gmra.mrb[0].mxu0 %v652
      %v816 = vpop.f32.mrb[0].mxu0
      %v817 = vadd.f32 %v551, %v816
      %v818 = vpop.f32.mrb[0].mxu0
      %v819 = vpop.f32.mrb[0].mxu0
      %v820 = vadd.f32 %v554, %v819
      %v821 = vpop.f32.mrb[0].mxu0
      %822 = vmatprep.mubr.bf16.mxu0 0
      %823 = vmatmul.mubr.bf16.gmra.mrb[0].mxu0 %v655
      %v824 = vpop.f32.mrb[0].mxu0
      %v825 = vadd.f32 %v559, %v824
      %v826 = vpop.f32.mrb[0].mxu0
      %v827 = vpop.f32.mrb[0].mxu0
      %v828 = vadd.f32 %v562, %v827
      %v829 = vpop.f32.mrb[0].mxu0
      %830 = vmatprep.mubr.bf16.mxu0 0
      %831 = vmatmul.mubr.bf16.gmra.mrb[0].mxu0 %v658
      %v832 = vpop.f32.mrb[0].mxu0
      %v833 = vadd.f32 %v567, %v832
      %v834 = vpop.f32.mrb[0].mxu0
      %v835 = vpop.f32.mrb[0].mxu0
      %v836 = vadd.f32 %v570, %v835
      %v837 = vpop.f32.mrb[0].mxu0
      %838 = vmatprep.mubr.bf16.mxu0 0
      %839 = vmatmul.mubr.bf16.gmra.mrb[0].mxu0 %v661
      %v840 = vpop.f32.mrb[0].mxu0
      %v841 = vadd.f32 %v575, %v840
      %v842 = vpop.f32.mrb[0].mxu0
      %v843 = vpop.f32.mrb[0].mxu0
      %v844 = vadd.f32 %v578, %v843
      %v845 = vpop.f32.mrb[0].mxu0
      %846 = vmatprep.mubr.bf16.mxu0 0
      %847 = vmatmul.mubr.bf16.gmra.mrb[0].mxu0 %v664
      %v848 = vpop.f32.mrb[0].mxu0
      %v849 = vadd.f32 %v583, %v848
      %v850 = vpop.f32.mrb[0].mxu0
      %v851 = vpop.f32.mrb[0].mxu0
      %v852 = vadd.f32 %v586, %v851
      %v853 = vpop.f32.mrb[0].mxu0
      %854 = vmatprep.mubr.bf16.mxu0 0
      %855 = vmatmul.mubr.bf16.gmra.mrb[0].mxu0 %v667
      %v856 = vpop.f32.mrb[0].mxu0
      %v857 = vadd.f32 %v591, %v856
      %v858 = vpop.f32.mrb[0].mxu0
      %v859 = vpop.f32.mrb[0].mxu0
      %v860 = vadd.f32 %v594, %v859
      %v861 = vpop.f32.mrb[0].mxu0
      %862 = vmatprep.mubr.bf16.mxu0 0
      %863 = vmatmul.mubr.bf16.gmra.mrb[0].mxu0 %v670
      %v864 = vpop.f32.mrb[0].mxu0
      %v865 = vadd.f32 %v599, %v864
      %v866 = vpop.f32.mrb[0].mxu0
      %v867 = vpop.f32.mrb[0].mxu0
      %v868 = vadd.f32 %v602, %v867
      %v869 = vpop.f32.mrb[0].mxu0
      %870 = vmatprep.mubr.bf16.mxu0 0
      %871 = vmatmul.mubr.bf16.gmra.mrb[0].mxu0 %v673
      %v872 = vpop.f32.mrb[0].mxu0
      %v873 = vadd.f32 %v607, %v872
      %v874 = vpop.f32.mrb[0].mxu0
      %v875 = vpop.f32.mrb[0].mxu0
      %v876 = vpop.f32.mrb[0].mxu0
      %877 = vdwg.mxu0
      %v878 = vld [vmem:[%s210 + $0xf] sm:$0xff]
      %v879 = vld [vmem:[%s210 + $0x17] sm:$0xff]
      %v880 = vld [vmem:[%s210 + $0x1f] sm:$0xff]
      %v881 = vld [vmem:[%s210 + $0x27] sm:$0xff]
      %v882 = vld [vmem:[%s210 + $0x2f] sm:$0xff]
      %v883 = vld [vmem:[%s210 + $0x37] sm:$0xff]
      %v884 = vld [vmem:[%s210 + $0x3f] sm:$0xff]
      %v885 = vld [vmem:[%s210 + $0x47] sm:$0xff]
      %v886 = vld [vmem:[%s210 + $0x4f] sm:$0xff]
      %v887 = vld [vmem:[%s210 + $0x57] sm:$0xff]
      %v888 = vld [vmem:[%s210 + $0x5f] sm:$0xff]
      %v889 = vld [vmem:[%s210 + $0x67] sm:$0xff]
      %v890 = vld [vmem:[%s210 + $0x6f] sm:$0xff]
      %v891 = vld [vmem:[%s210 + $0x77] sm:$0xff]
      %v892 = vld [vmem:[%s210 + $0x7f] sm:$0xff]
      %v893 = vld [vmem:[%s210 + $0x87] sm:$0xff]
      %v894 = vld [vmem:[%s210 + $0x8f] sm:$0xff]
      %v895 = vld [vmem:[%s210 + $0x97] sm:$0xff]
      %v896 = vld [vmem:[%s210 + $0x9f] sm:$0xff]
      %v897 = vld [vmem:[%s210 + $0xa7] sm:$0xff]
      %v898 = vld [vmem:[%s210 + $0xaf] sm:$0xff]
      %v899 = vld [vmem:[%s210 + $0xb7] sm:$0xff]
      %v900 = vld [vmem:[%s210 + $0xbf] sm:$0xff]
      %v901 = vld [vmem:[%s210 + $0xc7] sm:$0xff]
      %v902 = vld [vmem:[%s210 + $0xcf] sm:$0xff]
      %v903 = vld [vmem:[%s210 + $0xd7] sm:$0xff]
      %v904 = vld [vmem:[%s210 + $0xdf] sm:$0xff]
      %v905 = vld [vmem:[%s210 + $0xe7] sm:$0xff]
      %v906 = vld [vmem:[%s210 + $0xef] sm:$0xff]
      %v907 = vld [vmem:[%s210 + $0xf7] sm:$0xff]
      %v908 = vld [vmem:[%s210 + $0xff] sm:$0xff]
      %v909 = vld [vmem:[%s210 + $0x107] sm:$0xff]
      %v910 = vld [vmem:[%s210 + $0x10f] sm:$0xff]
      %v911 = vld [vmem:[%s210 + $0x117] sm:$0xff]
      %v912 = vld [vmem:[%s210 + $0x11f] sm:$0xff]
      %v913 = vld [vmem:[%s210 + $0x127] sm:$0xff]
      %v914 = vld [vmem:[%s210 + $0x12f] sm:$0xff]
      %v915 = vld [vmem:[%s210 + $0x137] sm:$0xff]
      %v916 = vld [vmem:[%s210 + $0x13f] sm:$0xff]
      %v917 = vld [vmem:[%s210 + $0x147] sm:$0xff]
      %v918 = vld [vmem:[%s210 + $0x14f] sm:$0xff]
      %v919 = vpack.c.bf16 %v879, %v878
      %v920 = vpack.c.bf16 %v881, %v880
      %v921 = vpack.c.bf16 %v883, %v882
      %v922 = vpack.c.bf16 %v885, %v884
      %v923 = vpack.c.bf16 %v887, %v886
      %v924 = vpack.c.bf16 %v889, %v888
      %v925 = vpack.c.bf16 %v891, %v890
      %v926 = vpack.c.bf16 %v893, %v892
      %v927 = vpack.c.bf16 %v895, %v894
      %v928 = vpack.c.bf16 %v897, %v896
      %v929 = vpack.c.bf16 %v899, %v898
      %v930 = vpack.c.bf16 %v901, %v900
      %v931 = vpack.c.bf16 %v903, %v902
      %v932 = vpack.c.bf16 %v905, %v904
      %v933 = vpack.c.bf16 %v907, %v906
      %v934 = vpack.c.bf16 %v909, %v908
      %v935 = vpack.c.bf16 %v911, %v910
      %v936 = vpack.c.bf16 %v913, %v912
      %v937 = vpack.c.bf16 %v915, %v914
      %v938 = vpack.c.bf16 %v917, %v916
      %v939 = vpack.c.bf16 %v918, %v918
      %v940 = vld [vmem:[%s2 + $0x8] sm:$0xf]
      %v942 = vsel %vm344, %v919, 0
      %v945 = vsel %vm344, %v920, 0
      %v948 = vsel %vm344, %v921, 0
      %v951 = vsel %vm344, %v922, 0
      %v954 = vsel %vm344, %v923, 0
      %v957 = vsel %vm344, %v924, 0
      %v960 = vsel %vm344, %v925, 0
      %v963 = vsel %vm344, %v926, 0
      %v966 = vsel %vm344, %v927, 0
      %v969 = vsel %vm344, %v928, 0
      %v972 = vsel %vm344, %v929, 0
      %v975 = vsel %vm344, %v930, 0
      %v978 = vsel %vm344, %v931, 0
      %v981 = vsel %vm344, %v932, 0
      %v984 = vsel %vm344, %v933, 0
      %v987 = vsel %vm344, %v934, 0
      %v990 = vsel %vm344, %v935, 0
      %v993 = vsel %vm344, %v936, 0
      %v996 = vsel %vm344, %v937, 0
      %v999 = vsel %vm344, %v938, 0
      %v1002 = vsel %vm344, %v939, 0
      %v1005 = vsel %vm408, %v940, 0
      %1007 = vmatprep.subr.bf16.mxu0 0
      %1008 = vmatpush1.bf16.msra.mxu0 %v1005
      %1009 = vmatprep.subr.bf16.mxu0 0
      %1010 = vmatpush1.bf16.msra.mxu0 0
      %1011 = vmatprep.subr.bf16.mxu0 0
      %1012 = vmatpush1.bf16.msra.mxu0 0
      %1013 = vmatprep.subr.bf16.mxu0 0
      %1014 = vmatpush1.bf16.msra.mxu0 0
      %1015 = vmatprep.subr.bf16.mxu0 0
      %1016 = vmatpush1.bf16.msra.mxu0 0
      %1017 = vmatprep.subr.bf16.mxu0 0
      %1018 = vmatpush1.bf16.msra.mxu0 0
      %1019 = vmatprep.subr.bf16.mxu0 0
      %1020 = vmatpush1.bf16.msra.mxu0 0
      %1021 = vmatprep.subr.bf16.mxu0 0
      %1022 = vmatpush1.bf16.msra.mxu0 0
      %1023 = vmatprep.subr.bf16.mxu0 0
      %1024 = vmatpush1.bf16.msra.mxu0 0
      %1025 = vmatprep.subr.bf16.mxu0 0
      %1026 = vmatpush1.bf16.msra.mxu0 0
      %1027 = vmatprep.subr.bf16.mxu0 0
      %1028 = vmatpush1.bf16.msra.mxu0 0
      %1029 = vmatprep.subr.bf16.mxu0 0
      %1030 = vmatpush1.bf16.msra.mxu0 0
      %1031 = vmatprep.subr.bf16.mxu0 0
      %1032 = vmatpush1.bf16.msra.mxu0 0
      %1033 = vmatprep.subr.bf16.mxu0 0
      %1034 = vmatpush1.bf16.msra.mxu0 0
      %1035 = vmatprep.subr.bf16.mxu0 0
      %1036 = vmatpush1.bf16.msra.mxu0 0
      %1037 = vmatprep.subr.bf16.mxu0 0
      %1038 = vmatpush1.bf16.msra.mxu0 0
      %1039 = vmatprep.mubr.bf16.mxu0 0
      %1040 = vmatmul.mubr.bf16.gmra.mrb[0].mxu0 %v942
      %v1041 = vpop.f32.mrb[0].mxu0
      %v1042 = vadd.f32 0.0, %v1041
      %v1043 = vpop.f32.mrb[0].mxu0
      %v1044 = vpop.f32.mrb[0].mxu0
      %v1045 = vadd.f32 0.0, %v1044
      %v1046 = vpop.f32.mrb[0].mxu0
      %1047 = vmatprep.mubr.bf16.mxu0 0
      %1048 = vmatmul.mubr.bf16.gmra.mrb[0].mxu0 %v945
      %v1049 = vpop.f32.mrb[0].mxu0
      %v1050 = vadd.f32 0.0, %v1049
      %v1051 = vpop.f32.mrb[0].mxu0
      %v1052 = vpop.f32.mrb[0].mxu0
      %v1053 = vadd.f32 0.0, %v1052
      %v1054 = vpop.f32.mrb[0].mxu0
      %1055 = vmatprep.mubr.bf16.mxu0 0
      %1056 = vmatmul.mubr.bf16.gmra.mrb[0].mxu0 %v948
      %v1057 = vpop.f32.mrb[0].mxu0
      %v1058 = vadd.f32 0.0, %v1057
      %v1059 = vpop.f32.mrb[0].mxu0
      %v1060 = vpop.f32.mrb[0].mxu0
      %v1061 = vadd.f32 0.0, %v1060
      %v1062 = vpop.f32.mrb[0].mxu0
      %1063 = vmatprep.mubr.bf16.mxu0 0
      %1064 = vmatmul.mubr.bf16.gmra.mrb[0].mxu0 %v951
      %v1065 = vpop.f32.mrb[0].mxu0
      %v1066 = vadd.f32 0.0, %v1065
      %v1067 = vpop.f32.mrb[0].mxu0
      %v1068 = vpop.f32.mrb[0].mxu0
      %v1069 = vadd.f32 0.0, %v1068
      %v1070 = vpop.f32.mrb[0].mxu0
      %1071 = vmatprep.mubr.bf16.mxu0 0
      %1072 = vmatmul.mubr.bf16.gmra.mrb[0].mxu0 %v954
      %v1073 = vpop.f32.mrb[0].mxu0
      %v1074 = vadd.f32 0.0, %v1073
      %v1075 = vpop.f32.mrb[0].mxu0
      %v1076 = vpop.f32.mrb[0].mxu0
      %v1077 = vadd.f32 0.0, %v1076
      %v1078 = vpop.f32.mrb[0].mxu0
      %1079 = vmatprep.mubr.bf16.mxu0 0
      %1080 = vmatmul.mubr.bf16.gmra.mrb[0].mxu0 %v957
      %v1081 = vpop.f32.mrb[0].mxu0
      %v1082 = vadd.f32 0.0, %v1081
      %v1083 = vpop.f32.mrb[0].mxu0
      %v1084 = vpop.f32.mrb[0].mxu0
      %v1085 = vadd.f32 0.0, %v1084
      %v1086 = vpop.f32.mrb[0].mxu0
      %1087 = vmatprep.mubr.bf16.mxu0 0
      %1088 = vmatmul.mubr.bf16.gmra.mrb[0].mxu0 %v960
      %v1089 = vpop.f32.mrb[0].mxu0
      %v1090 = vadd.f32 0.0, %v1089
      %v1091 = vpop.f32.mrb[0].mxu0
      %v1092 = vpop.f32.mrb[0].mxu0
      %v1093 = vadd.f32 0.0, %v1092
      %v1094 = vpop.f32.mrb[0].mxu0
      %1095 = vmatprep.mubr.bf16.mxu0 0
      %1096 = vmatmul.mubr.bf16.gmra.mrb[0].mxu0 %v963
      %v1097 = vpop.f32.mrb[0].mxu0
      %v1098 = vadd.f32 0.0, %v1097
      %v1099 = vpop.f32.mrb[0].mxu0
      %v1100 = vpop.f32.mrb[0].mxu0
      %v1101 = vadd.f32 0.0, %v1100
      %v1102 = vpop.f32.mrb[0].mxu0
      %1103 = vmatprep.mubr.bf16.mxu0 0
      %1104 = vmatmul.mubr.bf16.gmra.mrb[0].mxu0 %v966
      %v1105 = vpop.f32.mrb[0].mxu0
      %v1106 = vadd.f32 0.0, %v1105
      %v1107 = vpop.f32.mrb[0].mxu0
      %v1108 = vpop.f32.mrb[0].mxu0
      %v1109 = vadd.f32 0.0, %v1108
      %v1110 = vpop.f32.mrb[0].mxu0
      %1111 = vmatprep.mubr.bf16.mxu0 0
      %1112 = vmatmul.mubr.bf16.gmra.mrb[0].mxu0 %v969
      %v1113 = vpop.f32.mrb[0].mxu0
      %v1114 = vadd.f32 0.0, %v1113
      %v1115 = vpop.f32.mrb[0].mxu0
      %v1116 = vpop.f32.mrb[0].mxu0
      %v1117 = vadd.f32 0.0, %v1116
      %v1118 = vpop.f32.mrb[0].mxu0
      %1119 = vmatprep.mubr.bf16.mxu0 0
      %1120 = vmatmul.mubr.bf16.gmra.mrb[0].mxu0 %v972
      %v1121 = vpop.f32.mrb[0].mxu0
      %v1122 = vadd.f32 0.0, %v1121
      %v1123 = vpop.f32.mrb[0].mxu0
      %v1124 = vpop.f32.mrb[0].mxu0
      %v1125 = vadd.f32 0.0, %v1124
      %v1126 = vpop.f32.mrb[0].mxu0
      %1127 = vmatprep.mubr.bf16.mxu0 0
      %1128 = vmatmul.mubr.bf16.gmra.mrb[0].mxu0 %v975
      %v1129 = vpop.f32.mrb[0].mxu0
      %v1130 = vadd.f32 0.0, %v1129
      %v1131 = vpop.f32.mrb[0].mxu0
      %v1132 = vpop.f32.mrb[0].mxu0
      %v1133 = vadd.f32 0.0, %v1132
      %v1134 = vpop.f32.mrb[0].mxu0
      %1135 = vmatprep.mubr.bf16.mxu0 0
      %1136 = vmatmul.mubr.bf16.gmra.mrb[0].mxu0 %v978
      %v1137 = vpop.f32.mrb[0].mxu0
      %v1138 = vadd.f32 0.0, %v1137
      %v1139 = vpop.f32.mrb[0].mxu0
      %v1140 = vpop.f32.mrb[0].mxu0
      %v1141 = vadd.f32 0.0, %v1140
      %v1142 = vpop.f32.mrb[0].mxu0
      %1143 = vmatprep.mubr.bf16.mxu0 0
      %1144 = vmatmul.mubr.bf16.gmra.mrb[0].mxu0 %v981
      %v1145 = vpop.f32.mrb[0].mxu0
      %v1146 = vadd.f32 0.0, %v1145
      %v1147 = vpop.f32.mrb[0].mxu0
      %v1148 = vpop.f32.mrb[0].mxu0
      %v1149 = vadd.f32 0.0, %v1148
      %v1150 = vpop.f32.mrb[0].mxu0
      %1151 = vmatprep.mubr.bf16.mxu0 0
      %1152 = vmatmul.mubr.bf16.gmra.mrb[0].mxu0 %v984
      %v1153 = vpop.f32.mrb[0].mxu0
      %v1154 = vadd.f32 0.0, %v1153
      %v1155 = vpop.f32.mrb[0].mxu0
      %v1156 = vpop.f32.mrb[0].mxu0
      %v1157 = vadd.f32 0.0, %v1156
      %v1158 = vpop.f32.mrb[0].mxu0
      %1159 = vmatprep.mubr.bf16.mxu0 0
      %1160 = vmatmul.mubr.bf16.gmra.mrb[0].mxu0 %v987
      %v1161 = vpop.f32.mrb[0].mxu0
      %v1162 = vadd.f32 0.0, %v1161
      %v1163 = vpop.f32.mrb[0].mxu0
      %v1164 = vpop.f32.mrb[0].mxu0
      %v1165 = vadd.f32 0.0, %v1164
      %v1166 = vpop.f32.mrb[0].mxu0
      %1167 = vmatprep.mubr.bf16.mxu0 0
      %1168 = vmatmul.mubr.bf16.gmra.mrb[0].mxu0 %v990
      %v1169 = vpop.f32.mrb[0].mxu0
      %v1170 = vadd.f32 0.0, %v1169
      %v1171 = vpop.f32.mrb[0].mxu0
      %v1172 = vpop.f32.mrb[0].mxu0
      %v1173 = vadd.f32 0.0, %v1172
      %v1174 = vpop.f32.mrb[0].mxu0
      %1175 = vmatprep.mubr.bf16.mxu0 0
      %1176 = vmatmul.mubr.bf16.gmra.mrb[0].mxu0 %v993
      %v1177 = vpop.f32.mrb[0].mxu0
      %v1178 = vadd.f32 0.0, %v1177
      %v1179 = vpop.f32.mrb[0].mxu0
      %v1180 = vpop.f32.mrb[0].mxu0
      %v1181 = vadd.f32 0.0, %v1180
      %v1182 = vpop.f32.mrb[0].mxu0
      %1183 = vmatprep.mubr.bf16.mxu0 0
      %1184 = vmatmul.mubr.bf16.gmra.mrb[0].mxu0 %v996
      %v1185 = vpop.f32.mrb[0].mxu0
      %v1186 = vadd.f32 0.0, %v1185
      %v1187 = vpop.f32.mrb[0].mxu0
      %v1188 = vpop.f32.mrb[0].mxu0
      %v1189 = vadd.f32 0.0, %v1188
      %v1190 = vpop.f32.mrb[0].mxu0
      %1191 = vmatprep.mubr.bf16.mxu0 0
      %1192 = vmatmul.mubr.bf16.gmra.mrb[0].mxu0 %v999
      %v1193 = vpop.f32.mrb[0].mxu0
      %v1194 = vadd.f32 0.0, %v1193
      %v1195 = vpop.f32.mrb[0].mxu0
      %v1196 = vpop.f32.mrb[0].mxu0
      %v1197 = vadd.f32 0.0, %v1196
      %v1198 = vpop.f32.mrb[0].mxu0
      %1199 = vmatprep.mubr.bf16.mxu0 0
      %1200 = vmatmul.mubr.bf16.gmra.mrb[0].mxu0 %v1002
      %v1201 = vpop.f32.mrb[0].mxu0
      %v1202 = vadd.f32 0.0, %v1201
      %v1203 = vpop.f32.mrb[0].mxu0
      %v1204 = vpop.f32.mrb[0].mxu0
      %v1205 = vpop.f32.mrb[0].mxu0
      %1206 = vdwg.mxu0
      %v1207 = vadd.f32 %v713, %v1042
      %v1208 = vadd.f32 %v716, %v1045
      %v1209 = vadd.f32 %v721, %v1050
      %v1210 = vadd.f32 %v724, %v1053
      %v1211 = vadd.f32 %v729, %v1058
      %v1212 = vadd.f32 %v732, %v1061
      %v1213 = vadd.f32 %v737, %v1066
      %v1214 = vadd.f32 %v740, %v1069
      %v1215 = vadd.f32 %v745, %v1074
      %v1216 = vadd.f32 %v748, %v1077
      %v1217 = vadd.f32 %v753, %v1082
      %v1218 = vadd.f32 %v756, %v1085
      %v1219 = vadd.f32 %v761, %v1090
      %v1220 = vadd.f32 %v764, %v1093
      %v1221 = vadd.f32 %v769, %v1098
      %v1222 = vadd.f32 %v772, %v1101
      %v1223 = vadd.f32 %v777, %v1106
      %v1224 = vadd.f32 %v780, %v1109
      %v1225 = vadd.f32 %v785, %v1114
      %v1226 = vadd.f32 %v788, %v1117
      %v1227 = vadd.f32 %v793, %v1122
      %v1228 = vadd.f32 %v796, %v1125
      %v1229 = vadd.f32 %v801, %v1130
      %v1230 = vadd.f32 %v804, %v1133
      %v1231 = vadd.f32 %v809, %v1138
      %v1232 = vadd.f32 %v812, %v1141
      %v1233 = vadd.f32 %v817, %v1146
      %v1234 = vadd.f32 %v820, %v1149
      %v1235 = vadd.f32 %v825, %v1154
      %v1236 = vadd.f32 %v828, %v1157
      %v1237 = vadd.f32 %v833, %v1162
      %v1238 = vadd.f32 %v836, %v1165
      %v1239 = vadd.f32 %v841, %v1170
      %v1240 = vadd.f32 %v844, %v1173
      %v1241 = vadd.f32 %v849, %v1178
      %v1242 = vadd.f32 %v852, %v1181
      %v1243 = vadd.f32 %v857, %v1186
      %v1244 = vadd.f32 %v860, %v1189
      %v1245 = vadd.f32 %v865, %v1194
      %v1246 = vadd.f32 %v868, %v1197
      %v1247 = vadd.f32 %v873, %v1202
      %v1248 = vld [vmem:[%s210 + $0x1f] sm:$0xff]
      %v1249 = vld [vmem:[%s210 + $0x27] sm:$0xff]
      %v1250 = vld [vmem:[%s210 + $0x2f] sm:$0xff]
      %v1251 = vld [vmem:[%s210 + $0x37] sm:$0xff]
      %v1252 = vld [vmem:[%s210 + $0x3f] sm:$0xff]
      %v1253 = vld [vmem:[%s210 + $0x47] sm:$0xff]
      %v1254 = vld [vmem:[%s210 + $0x4f] sm:$0xff]
      %v1255 = vld [vmem:[%s210 + $0x57] sm:$0xff]
      %v1256 = vld [vmem:[%s210 + $0x5f] sm:$0xff]
      %v1257 = vld [vmem:[%s210 + $0x67] sm:$0xff]
      %v1258 = vld [vmem:[%s210 + $0x6f] sm:$0xff]
      %v1259 = vld [vmem:[%s210 + $0x77] sm:$0xff]
      %v1260 = vld [vmem:[%s210 + $0x7f] sm:$0xff]
      %v1261 = vld [vmem:[%s210 + $0x87] sm:$0xff]
      %v1262 = vld [vmem:[%s210 + $0x8f] sm:$0xff]
      %v1263 = vld [vmem:[%s210 + $0x97] sm:$0xff]
      %v1264 = vld [vmem:[%s210 + $0x9f] sm:$0xff]
      %v1265 = vld [vmem:[%s210 + $0xa7] sm:$0xff]
      %v1266 = vld [vmem:[%s210 + $0xaf] sm:$0xff]
      %v1267 = vld [vmem:[%s210 + $0xb7] sm:$0xff]
      %v1268 = vld [vmem:[%s210 + $0xbf] sm:$0xff]
      %v1269 = vld [vmem:[%s210 + $0xc7] sm:$0xff]
      %v1270 = vld [vmem:[%s210 + $0xcf] sm:$0xff]
      %v1271 = vld [vmem:[%s210 + $0xd7] sm:$0xff]
      %v1272 = vld [vmem:[%s210 + $0xdf] sm:$0xff]
      %v1273 = vld [vmem:[%s210 + $0xe7] sm:$0xff]
      %v1274 = vld [vmem:[%s210 + $0xef] sm:$0xff]
      %v1275 = vld [vmem:[%s210 + $0xf7] sm:$0xff]
      %v1276 = vld [vmem:[%s210 + $0xff] sm:$0xff]
      %v1277 = vld [vmem:[%s210 + $0x107] sm:$0xff]
      %v1278 = vld [vmem:[%s210 + $0x10f] sm:$0xff]
      %v1279 = vld [vmem:[%s210 + $0x117] sm:$0xff]
      %v1280 = vld [vmem:[%s210 + $0x11f] sm:$0xff]
      %v1281 = vld [vmem:[%s210 + $0x127] sm:$0xff]
      %v1282 = vld [vmem:[%s210 + $0x12f] sm:$0xff]
      %v1283 = vld [vmem:[%s210 + $0x137] sm:$0xff]
      %v1284 = vld [vmem:[%s210 + $0x13f] sm:$0xff]
      %v1285 = vld [vmem:[%s210 + $0x147] sm:$0xff]
      %v1286 = vld [vmem:[%s210 + $0x14f] sm:$0xff]
      %v1287 = vld [vmem:[%s210 + $0x157] sm:$0xff]
      %v1288 = vld [vmem:[%s210 + $0x15f] sm:$0xff]
      %v1289 = vpack.c.bf16 %v1249, %v1248
      %v1290 = vpack.c.bf16 %v1251, %v1250
      %v1291 = vpack.c.bf16 %v1253, %v1252
      %v1292 = vpack.c.bf16 %v1255, %v1254
      %v1293 = vpack.c.bf16 %v1257, %v1256
      %v1294 = vpack.c.bf16 %v1259, %v1258
      %v1295 = vpack.c.bf16 %v1261, %v1260
      %v1296 = vpack.c.bf16 %v1263, %v1262
      %v1297 = vpack.c.bf16 %v1265, %v1264
      %v1298 = vpack.c.bf16 %v1267, %v1266
      %v1299 = vpack.c.bf16 %v1269, %v1268
      %v1300 = vpack.c.bf16 %v1271, %v1270
      %v1301 = vpack.c.bf16 %v1273, %v1272
      %v1302 = vpack.c.bf16 %v1275, %v1274
      %v1303 = vpack.c.bf16 %v1277, %v1276
      %v1304 = vpack.c.bf16 %v1279, %v1278
      %v1305 = vpack.c.bf16 %v1281, %v1280
      %v1306 = vpack.c.bf16 %v1283, %v1282
      %v1307 = vpack.c.bf16 %v1285, %v1284
      %v1308 = vpack.c.bf16 %v1287, %v1286
      %v1309 = vpack.c.bf16 %v1288, %v1288
      %v1310 = vld [vmem:[%s2 + $0xc] sm:$0xf]
      %v1312 = vsel %vm344, %v1289, 0
      %v1315 = vsel %vm344, %v1290, 0
      %v1318 = vsel %vm344, %v1291, 0
      %v1321 = vsel %vm344, %v1292, 0
      %v1324 = vsel %vm344, %v1293, 0
      %v1327 = vsel %vm344, %v1294, 0
      %v1330 = vsel %vm344, %v1295, 0
      %v1333 = vsel %vm344, %v1296, 0
      %v1336 = vsel %vm344, %v1297, 0
      %v1339 = vsel %vm344, %v1298, 0
      %v1342 = vsel %vm344, %v1299, 0
      %v1345 = vsel %vm344, %v1300, 0
      %v1348 = vsel %vm344, %v1301, 0
      %v1351 = vsel %vm344, %v1302, 0
      %v1354 = vsel %vm344, %v1303, 0
      %v1357 = vsel %vm344, %v1304, 0
      %v1360 = vsel %vm344, %v1305, 0
      %v1363 = vsel %vm344, %v1306, 0
      %v1366 = vsel %vm344, %v1307, 0
      %v1369 = vsel %vm344, %v1308, 0
      %v1372 = vsel %vm344, %v1309, 0
      %v1375 = vsel %vm408, %v1310, 0
      %1377 = vmatprep.subr.bf16.mxu0 0
      %1378 = vmatpush1.bf16.msra.mxu0 %v1375
      %1379 = vmatprep.subr.bf16.mxu0 0
      %1380 = vmatpush1.bf16.msra.mxu0 0
      %1381 = vmatprep.subr.bf16.mxu0 0
      %1382 = vmatpush1.bf16.msra.mxu0 0
      %1383 = vmatprep.subr.bf16.mxu0 0
      %1384 = vmatpush1.bf16.msra.mxu0 0
      %1385 = vmatprep.subr.bf16.mxu0 0
      %1386 = vmatpush1.bf16.msra.mxu0 0
      %1387 = vmatprep.subr.bf16.mxu0 0
      %1388 = vmatpush1.bf16.msra.mxu0 0
      %1389 = vmatprep.subr.bf16.mxu0 0
      %1390 = vmatpush1.bf16.msra.mxu0 0
      %1391 = vmatprep.subr.bf16.mxu0 0
      %1392 = vmatpush1.bf16.msra.mxu0 0
      %1393 = vmatprep.subr.bf16.mxu0 0
      %1394 = vmatpush1.bf16.msra.mxu0 0
      %1395 = vmatprep.subr.bf16.mxu0 0
      %1396 = vmatpush1.bf16.msra.mxu0 0
      %1397 = vmatprep.subr.bf16.mxu0 0
      %1398 = vmatpush1.bf16.msra.mxu0 0
      %1399 = vmatprep.subr.bf16.mxu0 0
      %1400 = vmatpush1.bf16.msra.mxu0 0
      %1401 = vmatprep.subr.bf16.mxu0 0
      %1402 = vmatpush1.bf16.msra.mxu0 0
      %1403 = vmatprep.subr.bf16.mxu0 0
      %1404 = vmatpush1.bf16.msra.mxu0 0
      %1405 = vmatprep.subr.bf16.mxu0 0
      %1406 = vmatpush1.bf16.msra.mxu0 0
      %1407 = vmatprep.subr.bf16.mxu0 0
      %1408 = vmatpush1.bf16.msra.mxu0 0
      %1409 = vmatprep.mubr.bf16.mxu0 0
      %1410 = vmatmul.mubr.bf16.gmra.mrb[0].mxu0 %v1312
      %v1411 = vpop.f32.mrb[0].mxu0
      %v1412 = vadd.f32 0.0, %v1411
      %v1413 = vpop.f32.mrb[0].mxu0
      %v1414 = vpop.f32.mrb[0].mxu0
      %v1415 = vadd.f32 0.0, %v1414
      %v1416 = vpop.f32.mrb[0].mxu0
      %1417 = vmatprep.mubr.bf16.mxu0 0
      %1418 = vmatmul.mubr.bf16.gmra.mrb[0].mxu0 %v1315
      %v1419 = vpop.f32.mrb[0].mxu0
      %v1420 = vadd.f32 0.0, %v1419
      %v1421 = vpop.f32.mrb[0].mxu0
      %v1422 = vpop.f32.mrb[0].mxu0
      %v1423 = vadd.f32 0.0, %v1422
      %v1424 = vpop.f32.mrb[0].mxu0
      %1425 = vmatprep.mubr.bf16.mxu0 0
      %1426 = vmatmul.mubr.bf16.gmra.mrb[0].mxu0 %v1318
      %v1427 = vpop.f32.mrb[0].mxu0
      %v1428 = vadd.f32 0.0, %v1427
      %v1429 = vpop.f32.mrb[0].mxu0
      %v1430 = vpop.f32.mrb[0].mxu0
      %v1431 = vadd.f32 0.0, %v1430
      %v1432 = vpop.f32.mrb[0].mxu0
      %1433 = vmatprep.mubr.bf16.mxu0 0
      %1434 = vmatmul.mubr.bf16.gmra.mrb[0].mxu0 %v1321
      %v1435 = vpop.f32.mrb[0].mxu0
      %v1436 = vadd.f32 0.0, %v1435
      %v1437 = vpop.f32.mrb[0].mxu0
      %v1438 = vpop.f32.mrb[0].mxu0
      %v1439 = vadd.f32 0.0, %v1438
      %v1440 = vpop.f32.mrb[0].mxu0
      %1441 = vmatprep.mubr.bf16.mxu0 0
      %1442 = vmatmul.mubr.bf16.gmra.mrb[0].mxu0 %v1324
      %v1443 = vpop.f32.mrb[0].mxu0
      %v1444 = vadd.f32 0.0, %v1443
      %v1445 = vpop.f32.mrb[0].mxu0
      %v1446 = vpop.f32.mrb[0].mxu0
      %v1447 = vadd.f32 0.0, %v1446
      %v1448 = vpop.f32.mrb[0].mxu0
      %1449 = vmatprep.mubr.bf16.mxu0 0
      %1450 = vmatmul.mubr.bf16.gmra.mrb[0].mxu0 %v1327
      %v1451 = vpop.f32.mrb[0].mxu0
      %v1452 = vadd.f32 0.0, %v1451
      %v1453 = vpop.f32.mrb[0].mxu0
      %v1454 = vpop.f32.mrb[0].mxu0
      %v1455 = vadd.f32 0.0, %v1454
      %v1456 = vpop.f32.mrb[0].mxu0
      %1457 = vmatprep.mubr.bf16.mxu0 0
      %1458 = vmatmul.mubr.bf16.gmra.mrb[0].mxu0 %v1330
      %v1459 = vpop.f32.mrb[0].mxu0
      %v1460 = vadd.f32 0.0, %v1459
      %v1461 = vpop.f32.mrb[0].mxu0
      %v1462 = vpop.f32.mrb[0].mxu0
      %v1463 = vadd.f32 0.0, %v1462
      %v1464 = vpop.f32.mrb[0].mxu0
      %1465 = vmatprep.mubr.bf16.mxu0 0
      %1466 = vmatmul.mubr.bf16.gmra.mrb[0].mxu0 %v1333
      %v1467 = vpop.f32.mrb[0].mxu0
      %v1468 = vadd.f32 0.0, %v1467
      %v1469 = vpop.f32.mrb[0].mxu0
      %v1470 = vpop.f32.mrb[0].mxu0
      %v1471 = vadd.f32 0.0, %v1470
      %v1472 = vpop.f32.mrb[0].mxu0
      %1473 = vmatprep.mubr.bf16.mxu0 0
      %1474 = vmatmul.mubr.bf16.gmra.mrb[0].mxu0 %v1336
      %v1475 = vpop.f32.mrb[0].mxu0
      %v1476 = vadd.f32 0.0, %v1475
      %v1477 = vpop.f32.mrb[0].mxu0
      %v1478 = vpop.f32.mrb[0].mxu0
      %v1479 = vadd.f32 0.0, %v1478
      %v1480 = vpop.f32.mrb[0].mxu0
      %1481 = vmatprep.mubr.bf16.mxu0 0
      %1482 = vmatmul.mubr.bf16.gmra.mrb[0].mxu0 %v1339
      %v1483 = vpop.f32.mrb[0].mxu0
      %v1484 = vadd.f32 0.0, %v1483
      %v1485 = vpop.f32.mrb[0].mxu0
      %v1486 = vpop.f32.mrb[0].mxu0
      %v1487 = vadd.f32 0.0, %v1486
      %v1488 = vpop.f32.mrb[0].mxu0
      %1489 = vmatprep.mubr.bf16.mxu0 0
      %1490 = vmatmul.mubr.bf16.gmra.mrb[0].mxu0 %v1342
      %v1491 = vpop.f32.mrb[0].mxu0
      %v1492 = vadd.f32 0.0, %v1491
      %v1493 = vpop.f32.mrb[0].mxu0
      %v1494 = vpop.f32.mrb[0].mxu0
      %v1495 = vadd.f32 0.0, %v1494
      %v1496 = vpop.f32.mrb[0].mxu0
      %1497 = vmatprep.mubr.bf16.mxu0 0
      %1498 = vmatmul.mubr.bf16.gmra.mrb[0].mxu0 %v1345
      %v1499 = vpop.f32.mrb[0].mxu0
      %v1500 = vadd.f32 0.0, %v1499
      %v1501 = vpop.f32.mrb[0].mxu0
      %v1502 = vpop.f32.mrb[0].mxu0
      %v1503 = vadd.f32 0.0, %v1502
      %v1504 = vpop.f32.mrb[0].mxu0
      %1505 = vmatprep.mubr.bf16.mxu0 0
      %1506 = vmatmul.mubr.bf16.gmra.mrb[0].mxu0 %v1348
      %v1507 = vpop.f32.mrb[0].mxu0
      %v1508 = vadd.f32 0.0, %v1507
      %v1509 = vpop.f32.mrb[0].mxu0
      %v1510 = vpop.f32.mrb[0].mxu0
      %v1511 = vadd.f32 0.0, %v1510
      %v1512 = vpop.f32.mrb[0].mxu0
      %1513 = vmatprep.mubr.bf16.mxu0 0
      %1514 = vmatmul.mubr.bf16.gmra.mrb[0].mxu0 %v1351
      %v1515 = vpop.f32.mrb[0].mxu0
      %v1516 = vadd.f32 0.0, %v1515
      %v1517 = vpop.f32.mrb[0].mxu0
      %v1518 = vpop.f32.mrb[0].mxu0
      %v1519 = vadd.f32 0.0, %v1518
      %v1520 = vpop.f32.mrb[0].mxu0
      %1521 = vmatprep.mubr.bf16.mxu0 0
      %1522 = vmatmul.mubr.bf16.gmra.mrb[0].mxu0 %v1354
      %v1523 = vpop.f32.mrb[0].mxu0
      %v1524 = vadd.f32 0.0, %v1523
      %v1525 = vpop.f32.mrb[0].mxu0
      %v1526 = vpop.f32.mrb[0].mxu0
      %v1527 = vadd.f32 0.0, %v1526
      %v1528 = vpop.f32.mrb[0].mxu0
      %1529 = vmatprep.mubr.bf16.mxu0 0
      %1530 = vmatmul.mubr.bf16.gmra.mrb[0].mxu0 %v1357
      %v1531 = vpop.f32.mrb[0].mxu0
      %v1532 = vadd.f32 0.0, %v1531
      %v1533 = vpop.f32.mrb[0].mxu0
      %v1534 = vpop.f32.mrb[0].mxu0
      %v1535 = vadd.f32 0.0, %v1534
      %v1536 = vpop.f32.mrb[0].mxu0
      %1537 = vmatprep.mubr.bf16.mxu0 0
      %1538 = vmatmul.mubr.bf16.gmra.mrb[0].mxu0 %v1360
      %v1539 = vpop.f32.mrb[0].mxu0
      %v1540 = vadd.f32 0.0, %v1539
      %v1541 = vpop.f32.mrb[0].mxu0
      %v1542 = vpop.f32.mrb[0].mxu0
      %v1543 = vadd.f32 0.0, %v1542
      %v1544 = vpop.f32.mrb[0].mxu0
      %1545 = vmatprep.mubr.bf16.mxu0 0
      %1546 = vmatmul.mubr.bf16.gmra.mrb[0].mxu0 %v1363
      %v1547 = vpop.f32.mrb[0].mxu0
      %v1548 = vadd.f32 0.0, %v1547
      %v1549 = vpop.f32.mrb[0].mxu0
      %v1550 = vpop.f32.mrb[0].mxu0
      %v1551 = vadd.f32 0.0, %v1550
      %v1552 = vpop.f32.mrb[0].mxu0
      %1553 = vmatprep.mubr.bf16.mxu0 0
      %1554 = vmatmul.mubr.bf16.gmra.mrb[0].mxu0 %v1366
      %v1555 = vpop.f32.mrb[0].mxu0
      %v1556 = vadd.f32 0.0, %v1555
      %v1557 = vpop.f32.mrb[0].mxu0
      %v1558 = vpop.f32.mrb[0].mxu0
      %v1559 = vadd.f32 0.0, %v1558
      %v1560 = vpop.f32.mrb[0].mxu0
      %1561 = vmatprep.mubr.bf16.mxu0 0
      %1562 = vmatmul.mubr.bf16.gmra.mrb[0].mxu0 %v1369
      %v1563 = vpop.f32.mrb[0].mxu0
      %v1564 = vadd.f32 0.0, %v1563
      %v1565 = vpop.f32.mrb[0].mxu0
      %v1566 = vpop.f32.mrb[0].mxu0
      %v1567 = vadd.f32 0.0, %v1566
      %v1568 = vpop.f32.mrb[0].mxu0
      %1569 = vmatprep.mubr.bf16.mxu0 0
      %1570 = vmatmul.mubr.bf16.gmra.mrb[0].mxu0 %v1372
      %v1571 = vpop.f32.mrb[0].mxu0
      %v1572 = vadd.f32 0.0, %v1571
      %v1573 = vpop.f32.mrb[0].mxu0
      %v1574 = vpop.f32.mrb[0].mxu0
      %v1575 = vpop.f32.mrb[0].mxu0
      %1576 = vdwg.mxu0
      %v1577 = vadd.f32 %v1207, %v1412
      %v1578 = vadd.f32 %v1208, %v1415
      %v1579 = vadd.f32 %v1209, %v1420
      %v1580 = vadd.f32 %v1210, %v1423
      %v1581 = vadd.f32 %v1211, %v1428
      %v1582 = vadd.f32 %v1212, %v1431
      %v1583 = vadd.f32 %v1213, %v1436
      %v1584 = vadd.f32 %v1214, %v1439
      %v1585 = vadd.f32 %v1215, %v1444
      %v1586 = vadd.f32 %v1216, %v1447
      %v1587 = vadd.f32 %v1217, %v1452
      %v1588 = vadd.f32 %v1218, %v1455
      %v1589 = vadd.f32 %v1219, %v1460
      %v1590 = vadd.f32 %v1220, %v1463
      %v1591 = vadd.f32 %v1221, %v1468
      %v1592 = vadd.f32 %v1222, %v1471
      %v1593 = vadd.f32 %v1223, %v1476
      %v1594 = vadd.f32 %v1224, %v1479
      %v1595 = vadd.f32 %v1225, %v1484
      %v1596 = vadd.f32 %v1226, %v1487
      %v1597 = vadd.f32 %v1227, %v1492
      %v1598 = vadd.f32 %v1228, %v1495
      %v1599 = vadd.f32 %v1229, %v1500
      %v1600 = vadd.f32 %v1230, %v1503
      %v1601 = vadd.f32 %v1231, %v1508
      %v1602 = vadd.f32 %v1232, %v1511
      %v1603 = vadd.f32 %v1233, %v1516
      %v1604 = vadd.f32 %v1234, %v1519
      %v1605 = vadd.f32 %v1235, %v1524
      %v1606 = vadd.f32 %v1236, %v1527
      %v1607 = vadd.f32 %v1237, %v1532
      %v1608 = vadd.f32 %v1238, %v1535
      %v1609 = vadd.f32 %v1239, %v1540
      %v1610 = vadd.f32 %v1240, %v1543
      %v1611 = vadd.f32 %v1241, %v1548
      %v1612 = vadd.f32 %v1242, %v1551
      %v1613 = vadd.f32 %v1243, %v1556
      %v1614 = vadd.f32 %v1244, %v1559
      %v1615 = vadd.f32 %v1245, %v1564
      %v1616 = vadd.f32 %v1246, %v1567
      %v1617 = vadd.f32 %v1247, %v1572
      %v1618 = vld [vmem:[%s210 + $0x20] sm:$0xff]
      %v1619 = vld [vmem:[%s210 + $0x28] sm:$0xff]
      %v1620 = vld [vmem:[%s210 + $0x30] sm:$0xff]
      %v1621 = vld [vmem:[%s210 + $0x38] sm:$0xff]
      %v1622 = vld [vmem:[%s210 + $0x40] sm:$0xff]
      %v1623 = vld [vmem:[%s210 + $0x48] sm:$0xff]
      %v1624 = vld [vmem:[%s210 + $0x50] sm:$0xff]
      %v1625 = vld [vmem:[%s210 + $0x58] sm:$0xff]
      %v1626 = vld [vmem:[%s210 + $0x60] sm:$0xff]
      %v1627 = vld [vmem:[%s210 + $0x68] sm:$0xff]
      %v1628 = vld [vmem:[%s210 + $0x70] sm:$0xff]
      %v1629 = vld [vmem:[%s210 + $0x78] sm:$0xff]
      %v1630 = vld [vmem:[%s210 + $0x80] sm:$0xff]
      %v1631 = vld [vmem:[%s210 + $0x88] sm:$0xff]
      %v1632 = vld [vmem:[%s210 + $0x90] sm:$0xff]
      %v1633 = vld [vmem:[%s210 + $0x98] sm:$0xff]
      %v1634 = vld [vmem:[%s210 + $0xa0] sm:$0xff]
      %v1635 = vld [vmem:[%s210 + $0xa8] sm:$0xff]
      %v1636 = vld [vmem:[%s210 + $0xb0] sm:$0xff]
      %v1637 = vld [vmem:[%s210 + $0xb8] sm:$0xff]
      %v1638 = vld [vmem:[%s210 + $0xc0] sm:$0xff]
      %v1639 = vld [vmem:[%s210 + $0xc8] sm:$0xff]
      %v1640 = vld [vmem:[%s210 + $0xd0] sm:$0xff]
      %v1641 = vld [vmem:[%s210 + $0xd8] sm:$0xff]
      %v1642 = vld [vmem:[%s210 + $0xe0] sm:$0xff]
      %v1643 = vld [vmem:[%s210 + $0xe8] sm:$0xff]
      %v1644 = vld [vmem:[%s210 + $0xf0] sm:$0xff]
      %v1645 = vld [vmem:[%s210 + $0xf8] sm:$0xff]
      %v1646 = vld [vmem:[%s210 + $0x100] sm:$0xff]
      %v1647 = vld [vmem:[%s210 + $0x108] sm:$0xff]
      %v1648 = vld [vmem:[%s210 + $0x110] sm:$0xff]
      %v1649 = vld [vmem:[%s210 + $0x118] sm:$0xff]
      %v1650 = vld [vmem:[%s210 + $0x120] sm:$0xff]
      %v1651 = vld [vmem:[%s210 + $0x128] sm:$0xff]
      %v1652 = vld [vmem:[%s210 + $0x130] sm:$0xff]
      %v1653 = vld [vmem:[%s210 + $0x138] sm:$0xff]
      %v1654 = vld [vmem:[%s210 + $0x140] sm:$0xff]
      %v1655 = vld [vmem:[%s210 + $0x148] sm:$0xff]
      %v1656 = vld [vmem:[%s210 + $0x150] sm:$0xff]
      %v1657 = vld [vmem:[%s210 + $0x158] sm:$0xff]
      %v1658 = vld [vmem:[%s210 + $0x160] sm:$0xff]
      %v1659 = vpack.c.bf16 %v1619, %v1618
      %v1660 = vpack.c.bf16 %v1621, %v1620
      %v1661 = vpack.c.bf16 %v1623, %v1622
      %v1662 = vpack.c.bf16 %v1625, %v1624
      %v1663 = vpack.c.bf16 %v1627, %v1626
      %v1664 = vpack.c.bf16 %v1629, %v1628
      %v1665 = vpack.c.bf16 %v1631, %v1630
      %v1666 = vpack.c.bf16 %v1633, %v1632
      %v1667 = vpack.c.bf16 %v1635, %v1634
      %v1668 = vpack.c.bf16 %v1637, %v1636
      %v1669 = vpack.c.bf16 %v1639, %v1638
      %v1670 = vpack.c.bf16 %v1641, %v1640
      %v1671 = vpack.c.bf16 %v1643, %v1642
      %v1672 = vpack.c.bf16 %v1645, %v1644
      %v1673 = vpack.c.bf16 %v1647, %v1646
      %v1674 = vpack.c.bf16 %v1649, %v1648
      %v1675 = vpack.c.bf16 %v1651, %v1650
      %v1676 = vpack.c.bf16 %v1653, %v1652
      %v1677 = vpack.c.bf16 %v1655, %v1654
      %v1678 = vpack.c.bf16 %v1657, %v1656
      %v1679 = vpack.c.bf16 %v1658, %v1658
      %v1680 = vld [vmem:[%s2 + $0x10] sm:$0xf]
      %v1682 = vsel %vm344, %v1659, 0
      %v1685 = vsel %vm344, %v1660, 0
      %v1688 = vsel %vm344, %v1661, 0
      %v1691 = vsel %vm344, %v1662, 0
      %v1694 = vsel %vm344, %v1663, 0
      %v1697 = vsel %vm344, %v1664, 0
      %v1700 = vsel %vm344, %v1665, 0
      %v1703 = vsel %vm344, %v1666, 0
      %v1706 = vsel %vm344, %v1667, 0
      %v1709 = vsel %vm344, %v1668, 0
      %v1712 = vsel %vm344, %v1669, 0
      %v1715 = vsel %vm344, %v1670, 0
      %v1718 = vsel %vm344, %v1671, 0
      %v1721 = vsel %vm344, %v1672, 0
      %v1724 = vsel %vm344, %v1673, 0
      %v1727 = vsel %vm344, %v1674, 0
      %v1730 = vsel %vm344, %v1675, 0
      %v1733 = vsel %vm344, %v1676, 0
      %v1736 = vsel %vm344, %v1677, 0
      %v1739 = vsel %vm344, %v1678, 0
      %v1742 = vsel %vm344, %v1679, 0
      %v1745 = vsel %vm408, %v1680, 0
      %1747 = vmatprep.subr.bf16.mxu0 0
      %1748 = vmatpush1.bf16.msra.mxu0 %v1745
      %1749 = vmatprep.subr.bf16.mxu0 0
      %1750 = vmatpush1.bf16.msra.mxu0 0
      %1751 = vmatprep.subr.bf16.mxu0 0
      %1752 = vmatpush1.bf16.msra.mxu0 0
      %1753 = vmatprep.subr.bf16.mxu0 0
      %1754 = vmatpush1.bf16.msra.mxu0 0
      %1755 = vmatprep.subr.bf16.mxu0 0
      %1756 = vmatpush1.bf16.msra.mxu0 0
      %1757 = vmatprep.subr.bf16.mxu0 0
      %1758 = vmatpush1.bf16.msra.mxu0 0
      %1759 = vmatprep.subr.bf16.mxu0 0
      %1760 = vmatpush1.bf16.msra.mxu0 0
      %1761 = vmatprep.subr.bf16.mxu0 0
      %1762 = vmatpush1.bf16.msra.mxu0 0
      %1763 = vmatprep.subr.bf16.mxu0 0
      %1764 = vmatpush1.bf16.msra.mxu0 0
      %1765 = vmatprep.subr.bf16.mxu0 0
      %1766 = vmatpush1.bf16.msra.mxu0 0
      %1767 = vmatprep.subr.bf16.mxu0 0
      %1768 = vmatpush1.bf16.msra.mxu0 0
      %1769 = vmatprep.subr.bf16.mxu0 0
      %1770 = vmatpush1.bf16.msra.mxu0 0
      %1771 = vmatprep.subr.bf16.mxu0 0
      %1772 = vmatpush1.bf16.msra.mxu0 0
      %1773 = vmatprep.subr.bf16.mxu0 0
      %1774 = vmatpush1.bf16.msra.mxu0 0
      %1775 = vmatprep.subr.bf16.mxu0 0
      %1776 = vmatpush1.bf16.msra.mxu0 0
      %1777 = vmatprep.subr.bf16.mxu0 0
      %1778 = vmatpush1.bf16.msra.mxu0 0
      %1779 = vmatprep.mubr.bf16.mxu0 0
      %1780 = vmatmul.mubr.bf16.gmra.mrb[0].mxu0 %v1682
      %v1781 = vpop.f32.mrb[0].mxu0
      %v1782 = vadd.f32 0.0, %v1781
      %v1783 = vpop.f32.mrb[0].mxu0
      %v1784 = vpop.f32.mrb[0].mxu0
      %v1785 = vadd.f32 0.0, %v1784
      %v1786 = vpop.f32.mrb[0].mxu0
      %1787 = vmatprep.mubr.bf16.mxu0 0
      %1788 = vmatmul.mubr.bf16.gmra.mrb[0].mxu0 %v1685
      %v1789 = vpop.f32.mrb[0].mxu0
      %v1790 = vadd.f32 0.0, %v1789
      %v1791 = vpop.f32.mrb[0].mxu0
      %v1792 = vpop.f32.mrb[0].mxu0
      %v1793 = vadd.f32 0.0, %v1792
      %v1794 = vpop.f32.mrb[0].mxu0
      %1795 = vmatprep.mubr.bf16.mxu0 0
      %1796 = vmatmul.mubr.bf16.gmra.mrb[0].mxu0 %v1688
      %v1797 = vpop.f32.mrb[0].mxu0
      %v1798 = vadd.f32 0.0, %v1797
      %v1799 = vpop.f32.mrb[0].mxu0
      %v1800 = vpop.f32.mrb[0].mxu0
      %v1801 = vadd.f32 0.0, %v1800
      %v1802 = vpop.f32.mrb[0].mxu0
      %1803 = vmatprep.mubr.bf16.mxu0 0
      %1804 = vmatmul.mubr.bf16.gmra.mrb[0].mxu0 %v1691
      %v1805 = vpop.f32.mrb[0].mxu0
      %v1806 = vadd.f32 0.0, %v1805
      %v1807 = vpop.f32.mrb[0].mxu0
      %v1808 = vpop.f32.mrb[0].mxu0
      %v1809 = vadd.f32 0.0, %v1808
      %v1810 = vpop.f32.mrb[0].mxu0
      %1811 = vmatprep.mubr.bf16.mxu0 0
      %1812 = vmatmul.mubr.bf16.gmra.mrb[0].mxu0 %v1694
      %v1813 = vpop.f32.mrb[0].mxu0
      %v1814 = vadd.f32 0.0, %v1813
      %v1815 = vpop.f32.mrb[0].mxu0
      %v1816 = vpop.f32.mrb[0].mxu0
      %v1817 = vadd.f32 0.0, %v1816
      %v1818 = vpop.f32.mrb[0].mxu0
      %1819 = vmatprep.mubr.bf16.mxu0 0
      %1820 = vmatmul.mubr.bf16.gmra.mrb[0].mxu0 %v1697
      %v1821 = vpop.f32.mrb[0].mxu0
      %v1822 = vadd.f32 0.0, %v1821
      %v1823 = vpop.f32.mrb[0].mxu0
      %v1824 = vpop.f32.mrb[0].mxu0
      %v1825 = vadd.f32 0.0, %v1824
      %v1826 = vpop.f32.mrb[0].mxu0
      %1827 = vmatprep.mubr.bf16.mxu0 0
      %1828 = vmatmul.mubr.bf16.gmra.mrb[0].mxu0 %v1700
      %v1829 = vpop.f32.mrb[0].mxu0
      %v1830 = vadd.f32 0.0, %v1829
      %v1831 = vpop.f32.mrb[0].mxu0
      %v1832 = vpop.f32.mrb[0].mxu0
      %v1833 = vadd.f32 0.0, %v1832
      %v1834 = vpop.f32.mrb[0].mxu0
      %1835 = vmatprep.mubr.bf16.mxu0 0
      %1836 = vmatmul.mubr.bf16.gmra.mrb[0].mxu0 %v1703
      %v1837 = vpop.f32.mrb[0].mxu0
      %v1838 = vadd.f32 0.0, %v1837
      %v1839 = vpop.f32.mrb[0].mxu0
      %v1840 = vpop.f32.mrb[0].mxu0
      %v1841 = vadd.f32 0.0, %v1840
      %v1842 = vpop.f32.mrb[0].mxu0
      %1843 = vmatprep.mubr.bf16.mxu0 0
      %1844 = vmatmul.mubr.bf16.gmra.mrb[0].mxu0 %v1706
      %v1845 = vpop.f32.mrb[0].mxu0
      %v1846 = vadd.f32 0.0, %v1845
      %v1847 = vpop.f32.mrb[0].mxu0
      %v1848 = vpop.f32.mrb[0].mxu0
      %v1849 = vadd.f32 0.0, %v1848
      %v1850 = vpop.f32.mrb[0].mxu0
      %1851 = vmatprep.mubr.bf16.mxu0 0
      %1852 = vmatmul.mubr.bf16.gmra.mrb[0].mxu0 %v1709
      %v1853 = vpop.f32.mrb[0].mxu0
      %v1854 = vadd.f32 0.0, %v1853
      %v1855 = vpop.f32.mrb[0].mxu0
      %v1856 = vpop.f32.mrb[0].mxu0
      %v1857 = vadd.f32 0.0, %v1856
      %v1858 = vpop.f32.mrb[0].mxu0
      %1859 = vmatprep.mubr.bf16.mxu0 0
      %1860 = vmatmul.mubr.bf16.gmra.mrb[0].mxu0 %v1712
      %v1861 = vpop.f32.mrb[0].mxu0
      %v1862 = vadd.f32 0.0, %v1861
      %v1863 = vpop.f32.mrb[0].mxu0
      %v1864 = vpop.f32.mrb[0].mxu0
      %v1865 = vadd.f32 0.0, %v1864
      %v1866 = vpop.f32.mrb[0].mxu0
      %1867 = vmatprep.mubr.bf16.mxu0 0
      %1868 = vmatmul.mubr.bf16.gmra.mrb[0].mxu0 %v1715
      %v1869 = vpop.f32.mrb[0].mxu0
      %v1870 = vadd.f32 0.0, %v1869
      %v1871 = vpop.f32.mrb[0].mxu0
      %v1872 = vpop.f32.mrb[0].mxu0
      %v1873 = vadd.f32 0.0, %v1872
      %v1874 = vpop.f32.mrb[0].mxu0
      %1875 = vmatprep.mubr.bf16.mxu0 0
      %1876 = vmatmul.mubr.bf16.gmra.mrb[0].mxu0 %v1718
      %v1877 = vpop.f32.mrb[0].mxu0
      %v1878 = vadd.f32 0.0, %v1877
      %v1879 = vpop.f32.mrb[0].mxu0
      %v1880 = vpop.f32.mrb[0].mxu0
      %v1881 = vadd.f32 0.0, %v1880
      %v1882 = vpop.f32.mrb[0].mxu0
      %1883 = vmatprep.mubr.bf16.mxu0 0
      %1884 = vmatmul.mubr.bf16.gmra.mrb[0].mxu0 %v1721
      %v1885 = vpop.f32.mrb[0].mxu0
      %v1886 = vadd.f32 0.0, %v1885
      %v1887 = vpop.f32.mrb[0].mxu0
      %v1888 = vpop.f32.mrb[0].mxu0
      %v1889 = vadd.f32 0.0, %v1888
      %v1890 = vpop.f32.mrb[0].mxu0
      %1891 = vmatprep.mubr.bf16.mxu0 0
      %1892 = vmatmul.mubr.bf16.gmra.mrb[0].mxu0 %v1724
      %v1893 = vpop.f32.mrb[0].mxu0
      %v1894 = vadd.f32 0.0, %v1893
      %v1895 = vpop.f32.mrb[0].mxu0
      %v1896 = vpop.f32.mrb[0].mxu0
      %v1897 = vadd.f32 0.0, %v1896
      %v1898 = vpop.f32.mrb[0].mxu0
      %1899 = vmatprep.mubr.bf16.mxu0 0
      %1900 = vmatmul.mubr.bf16.gmra.mrb[0].mxu0 %v1727
      %v1901 = vpop.f32.mrb[0].mxu0
      %v1902 = vadd.f32 0.0, %v1901
      %v1903 = vpop.f32.mrb[0].mxu0
      %v1904 = vpop.f32.mrb[0].mxu0
      %v1905 = vadd.f32 0.0, %v1904
      %v1906 = vpop.f32.mrb[0].mxu0
      %1907 = vmatprep.mubr.bf16.mxu0 0
      %1908 = vmatmul.mubr.bf16.gmra.mrb[0].mxu0 %v1730
      %v1909 = vpop.f32.mrb[0].mxu0
      %v1910 = vadd.f32 0.0, %v1909
      %v1911 = vpop.f32.mrb[0].mxu0
      %v1912 = vpop.f32.mrb[0].mxu0
      %v1913 = vadd.f32 0.0, %v1912
      %v1914 = vpop.f32.mrb[0].mxu0
      %1915 = vmatprep.mubr.bf16.mxu0 0
      %1916 = vmatmul.mubr.bf16.gmra.mrb[0].mxu0 %v1733
      %v1917 = vpop.f32.mrb[0].mxu0
      %v1918 = vadd.f32 0.0, %v1917
      %v1919 = vpop.f32.mrb[0].mxu0
      %v1920 = vpop.f32.mrb[0].mxu0
      %v1921 = vadd.f32 0.0, %v1920
      %v1922 = vpop.f32.mrb[0].mxu0
      %1923 = vmatprep.mubr.bf16.mxu0 0
      %1924 = vmatmul.mubr.bf16.gmra.mrb[0].mxu0 %v1736
      %v1925 = vpop.f32.mrb[0].mxu0
      %v1926 = vadd.f32 0.0, %v1925
      %v1927 = vpop.f32.mrb[0].mxu0
      %v1928 = vpop.f32.mrb[0].mxu0
      %v1929 = vadd.f32 0.0, %v1928
      %v1930 = vpop.f32.mrb[0].mxu0
      %1931 = vmatprep.mubr.bf16.mxu0 0
      %1932 = vmatmul.mubr.bf16.gmra.mrb[0].mxu0 %v1739
      %v1933 = vpop.f32.mrb[0].mxu0
      %v1934 = vadd.f32 0.0, %v1933
      %v1935 = vpop.f32.mrb[0].mxu0
      %v1936 = vpop.f32.mrb[0].mxu0
      %v1937 = vadd.f32 0.0, %v1936
      %v1938 = vpop.f32.mrb[0].mxu0
      %1939 = vmatprep.mubr.bf16.mxu0 0
      %1940 = vmatmul.mubr.bf16.gmra.mrb[0].mxu0 %v1742
      %v1941 = vpop.f32.mrb[0].mxu0
      %v1942 = vadd.f32 0.0, %v1941
      %v1943 = vpop.f32.mrb[0].mxu0
      %v1944 = vpop.f32.mrb[0].mxu0
      %v1945 = vpop.f32.mrb[0].mxu0
      %1946 = vdwg.mxu0
      %v1947 = vadd.f32 %v1577, %v1782
      %v1948 = vadd.f32 %v1578, %v1785
      %v1949 = vadd.f32 %v1579, %v1790
      %v1950 = vadd.f32 %v1580, %v1793
      %v1951 = vadd.f32 %v1581, %v1798
      %v1952 = vadd.f32 %v1582, %v1801
      %v1953 = vadd.f32 %v1583, %v1806
      %v1954 = vadd.f32 %v1584, %v1809
      %v1955 = vadd.f32 %v1585, %v1814
      %v1956 = vadd.f32 %v1586, %v1817
      %v1957 = vadd.f32 %v1587, %v1822
      %v1958 = vadd.f32 %v1588, %v1825
      %v1959 = vadd.f32 %v1589, %v1830
      %v1960 = vadd.f32 %v1590, %v1833
      %v1961 = vadd.f32 %v1591, %v1838
      %v1962 = vadd.f32 %v1592, %v1841
      %v1963 = vadd.f32 %v1593, %v1846
      %v1964 = vadd.f32 %v1594, %v1849
      %v1965 = vadd.f32 %v1595, %v1854
      %v1966 = vadd.f32 %v1596, %v1857
      %v1967 = vadd.f32 %v1597, %v1862
      %v1968 = vadd.f32 %v1598, %v1865
      %v1969 = vadd.f32 %v1599, %v1870
      %v1970 = vadd.f32 %v1600, %v1873
      %v1971 = vadd.f32 %v1601, %v1878
      %v1972 = vadd.f32 %v1602, %v1881
      %v1973 = vadd.f32 %v1603, %v1886
      %v1974 = vadd.f32 %v1604, %v1889
      %v1975 = vadd.f32 %v1605, %v1894
      %v1976 = vadd.f32 %v1606, %v1897
      %v1977 = vadd.f32 %v1607, %v1902
      %v1978 = vadd.f32 %v1608, %v1905
      %v1979 = vadd.f32 %v1609, %v1910
      %v1980 = vadd.f32 %v1610, %v1913
      %v1981 = vadd.f32 %v1611, %v1918
      %v1982 = vadd.f32 %v1612, %v1921
      %v1983 = vadd.f32 %v1613, %v1926
      %v1984 = vadd.f32 %v1614, %v1929
      %v1985 = vadd.f32 %v1615, %v1934
      %v1986 = vadd.f32 %v1616, %v1937
      %v1987 = vadd.f32 %v1617, %v1942
      %v1988 = vld [vmem:[%s210 + $0x21] sm:$0xff]
      %v1989 = vld [vmem:[%s210 + $0x29] sm:$0xff]
      %v1990 = vld [vmem:[%s210 + $0x31] sm:$0xff]
      %v1991 = vld [vmem:[%s210 + $0x39] sm:$0xff]
      %v1992 = vld [vmem:[%s210 + $0x41] sm:$0xff]
      %v1993 = vld [vmem:[%s210 + $0x49] sm:$0xff]
      %v1994 = vld [vmem:[%s210 + $0x51] sm:$0xff]
      %v1995 = vld [vmem:[%s210 + $0x59] sm:$0xff]
      %v1996 = vld [vmem:[%s210 + $0x61] sm:$0xff]
      %v1997 = vld [vmem:[%s210 + $0x69] sm:$0xff]
      %v1998 = vld [vmem:[%s210 + $0x71] sm:$0xff]
      %v1999 = vld [vmem:[%s210 + $0x79] sm:$0xff]
      %v2000 = vld [vmem:[%s210 + $0x81] sm:$0xff]
      %v2001 = vld [vmem:[%s210 + $0x89] sm:$0xff]
      %v2002 = vld [vmem:[%s210 + $0x91] sm:$0xff]
      %v2003 = vld [vmem:[%s210 + $0x99] sm:$0xff]
      %v2004 = vld [vmem:[%s210 + $0xa1] sm:$0xff]
      %v2005 = vld [vmem:[%s210 + $0xa9] sm:$0xff]
      %v2006 = vld [vmem:[%s210 + $0xb1] sm:$0xff]
      %v2007 = vld [vmem:[%s210 + $0xb9] sm:$0xff]
      %v2008 = vld [vmem:[%s210 + $0xc1] sm:$0xff]
      %v2009 = vld [vmem:[%s210 + $0xc9] sm:$0xff]
      %v2010 = vld [vmem:[%s210 + $0xd1] sm:$0xff]
      %v2011 = vld [vmem:[%s210 + $0xd9] sm:$0xff]
      %v2012 = vld [vmem:[%s210 + $0xe1] sm:$0xff]
      %v2013 = vld [vmem:[%s210 + $0xe9] sm:$0xff]
      %v2014 = vld [vmem:[%s210 + $0xf1] sm:$0xff]
      %v2015 = vld [vmem:[%s210 + $0xf9] sm:$0xff]
      %v2016 = vld [vmem:[%s210 + $0x101] sm:$0xff]
      %v2017 = vld [vmem:[%s210 + $0x109] sm:$0xff]
      %v2018 = vld [vmem:[%s210 + $0x111] sm:$0xff]
      %v2019 = vld [vmem:[%s210 + $0x119] sm:$0xff]
      %v2020 = vld [vmem:[%s210 + $0x121] sm:$0xff]
      %v2021 = vld [vmem:[%s210 + $0x129] sm:$0xff]
      %v2022 = vld [vmem:[%s210 + $0x131] sm:$0xff]
      %v2023 = vld [vmem:[%s210 + $0x139] sm:$0xff]
      %v2024 = vld [vmem:[%s210 + $0x141] sm:$0xff]
      %v2025 = vld [vmem:[%s210 + $0x149] sm:$0xff]
      %v2026 = vld [vmem:[%s210 + $0x151] sm:$0xff]
      %v2027 = vld [vmem:[%s210 + $0x159] sm:$0xff]
      %v2028 = vld [vmem:[%s210 + $0x161] sm:$0xff]
      %v2029 = vpack.c.bf16 %v1989, %v1988
      %v2030 = vpack.c.bf16 %v1991, %v1990
      %v2031 = vpack.c.bf16 %v1993, %v1992
      %v2032 = vpack.c.bf16 %v1995, %v1994
      %v2033 = vpack.c.bf16 %v1997, %v1996
      %v2034 = vpack.c.bf16 %v1999, %v1998
      %v2035 = vpack.c.bf16 %v2001, %v2000
      %v2036 = vpack.c.bf16 %v2003, %v2002
      %v2037 = vpack.c.bf16 %v2005, %v2004
      %v2038 = vpack.c.bf16 %v2007, %v2006
      %v2039 = vpack.c.bf16 %v2009, %v2008
      %v2040 = vpack.c.bf16 %v2011, %v2010
      %v2041 = vpack.c.bf16 %v2013, %v2012
      %v2042 = vpack.c.bf16 %v2015, %v2014
      %v2043 = vpack.c.bf16 %v2017, %v2016
      %v2044 = vpack.c.bf16 %v2019, %v2018
      %v2045 = vpack.c.bf16 %v2021, %v2020
      %v2046 = vpack.c.bf16 %v2023, %v2022
      %v2047 = vpack.c.bf16 %v2025, %v2024
      %v2048 = vpack.c.bf16 %v2027, %v2026
      %v2049 = vpack.c.bf16 %v2028, %v2028
      %v2050 = vld [vmem:[%s2 + $0x14] sm:$0xf]
      %v2052 = vsel %vm344, %v2029, 0
      %v2055 = vsel %vm344, %v2030, 0
      %v2058 = vsel %vm344, %v2031, 0
      %v2061 = vsel %vm344, %v2032, 0
      %v2064 = vsel %vm344, %v2033, 0
      %v2067 = vsel %vm344, %v2034, 0
      %v2070 = vsel %vm344, %v2035, 0
      %v2073 = vsel %vm344, %v2036, 0
      %v2076 = vsel %vm344, %v2037, 0
      %v2079 = vsel %vm344, %v2038, 0
      %v2082 = vsel %vm344, %v2039, 0
      %v2085 = vsel %vm344, %v2040, 0
      %v2088 = vsel %vm344, %v2041, 0
      %v2091 = vsel %vm344, %v2042, 0
      %v2094 = vsel %vm344, %v2043, 0
      %v2097 = vsel %vm344, %v2044, 0
      %v2100 = vsel %vm344, %v2045, 0
      %v2103 = vsel %vm344, %v2046, 0
      %v2106 = vsel %vm344, %v2047, 0
      %v2109 = vsel %vm344, %v2048, 0
      %v2112 = vsel %vm344, %v2049, 0
      %v2115 = vsel %vm408, %v2050, 0
      %2117 = vmatprep.subr.bf16.mxu0 0
      %2118 = vmatpush1.bf16.msra.mxu0 %v2115
      %2119 = vmatprep.subr.bf16.mxu0 0
      %2120 = vmatpush1.bf16.msra.mxu0 0
      %2121 = vmatprep.subr.bf16.mxu0 0
      %2122 = vmatpush1.bf16.msra.mxu0 0
      %2123 = vmatprep.subr.bf16.mxu0 0
      %2124 = vmatpush1.bf16.msra.mxu0 0
      %2125 = vmatprep.subr.bf16.mxu0 0
      %2126 = vmatpush1.bf16.msra.mxu0 0
      %2127 = vmatprep.subr.bf16.mxu0 0
      %2128 = vmatpush1.bf16.msra.mxu0 0
      %2129 = vmatprep.subr.bf16.mxu0 0
      %2130 = vmatpush1.bf16.msra.mxu0 0
      %2131 = vmatprep.subr.bf16.mxu0 0
      %2132 = vmatpush1.bf16.msra.mxu0 0
      %2133 = vmatprep.subr.bf16.mxu0 0
      %2134 = vmatpush1.bf16.msra.mxu0 0
      %2135 = vmatprep.subr.bf16.mxu0 0
      %2136 = vmatpush1.bf16.msra.mxu0 0
      %2137 = vmatprep.subr.bf16.mxu0 0
      %2138 = vmatpush1.bf16.msra.mxu0 0
      %2139 = vmatprep.subr.bf16.mxu0 0
      %2140 = vmatpush1.bf16.msra.mxu0 0
      %2141 = vmatprep.subr.bf16.mxu0 0
      %2142 = vmatpush1.bf16.msra.mxu0 0
      %2143 = vmatprep.subr.bf16.mxu0 0
      %2144 = vmatpush1.bf16.msra.mxu0 0
      %2145 = vmatprep.subr.bf16.mxu0 0
      %2146 = vmatpush1.bf16.msra.mxu0 0
      %2147 = vmatprep.subr.bf16.mxu0 0
      %2148 = vmatpush1.bf16.msra.mxu0 0
      %2149 = vmatprep.mubr.bf16.mxu0 0
      %2150 = vmatmul.mubr.bf16.gmra.mrb[0].mxu0 %v2052
      %v2151 = vpop.f32.mrb[0].mxu0
      %v2152 = vadd.f32 0.0, %v2151
      %v2153 = vpop.f32.mrb[0].mxu0
      %v2154 = vpop.f32.mrb[0].mxu0
      %v2155 = vadd.f32 0.0, %v2154
      %v2156 = vpop.f32.mrb[0].mxu0
      %2157 = vmatprep.mubr.bf16.mxu0 0
      %2158 = vmatmul.mubr.bf16.gmra.mrb[0].mxu0 %v2055
      %v2159 = vpop.f32.mrb[0].mxu0
      %v2160 = vadd.f32 0.0, %v2159
      %v2161 = vpop.f32.mrb[0].mxu0
      %v2162 = vpop.f32.mrb[0].mxu0
      %v2163 = vadd.f32 0.0, %v2162
      %v2164 = vpop.f32.mrb[0].mxu0
      %2165 = vmatprep.mubr.bf16.mxu0 0
      %2166 = vmatmul.mubr.bf16.gmra.mrb[0].mxu0 %v2058
      %v2167 = vpop.f32.mrb[0].mxu0
      %v2168 = vadd.f32 0.0, %v2167
      %v2169 = vpop.f32.mrb[0].mxu0
      %v2170 = vpop.f32.mrb[0].mxu0
      %v2171 = vadd.f32 0.0, %v2170
      %v2172 = vpop.f32.mrb[0].mxu0
      %2173 = vmatprep.mubr.bf16.mxu0 0
      %2174 = vmatmul.mubr.bf16.gmra.mrb[0].mxu0 %v2061
      %v2175 = vpop.f32.mrb[0].mxu0
      %v2176 = vadd.f32 0.0, %v2175
      %v2177 = vpop.f32.mrb[0].mxu0
      %v2178 = vpop.f32.mrb[0].mxu0
      %v2179 = vadd.f32 0.0, %v2178
      %v2180 = vpop.f32.mrb[0].mxu0
      %2181 = vmatprep.mubr.bf16.mxu0 0
      %2182 = vmatmul.mubr.bf16.gmra.mrb[0].mxu0 %v2064
      %v2183 = vpop.f32.mrb[0].mxu0
      %v2184 = vadd.f32 0.0, %v2183
      %v2185 = vpop.f32.mrb[0].mxu0
      %v2186 = vpop.f32.mrb[0].mxu0
      %v2187 = vadd.f32 0.0, %v2186
      %v2188 = vpop.f32.mrb[0].mxu0
      %2189 = vmatprep.mubr.bf16.mxu0 0
      %2190 = vmatmul.mubr.bf16.gmra.mrb[0].mxu0 %v2067
      %v2191 = vpop.f32.mrb[0].mxu0
      %v2192 = vadd.f32 0.0, %v2191
      %v2193 = vpop.f32.mrb[0].mxu0
      %v2194 = vpop.f32.mrb[0].mxu0
      %v2195 = vadd.f32 0.0, %v2194
      %v2196 = vpop.f32.mrb[0].mxu0
      %2197 = vmatprep.mubr.bf16.mxu0 0
      %2198 = vmatmul.mubr.bf16.gmra.mrb[0].mxu0 %v2070
      %v2199 = vpop.f32.mrb[0].mxu0
      %v2200 = vadd.f32 0.0, %v2199
      %v2201 = vpop.f32.mrb[0].mxu0
      %v2202 = vpop.f32.mrb[0].mxu0
      %v2203 = vadd.f32 0.0, %v2202
      %v2204 = vpop.f32.mrb[0].mxu0
      %2205 = vmatprep.mubr.bf16.mxu0 0
      %2206 = vmatmul.mubr.bf16.gmra.mrb[0].mxu0 %v2073
      %v2207 = vpop.f32.mrb[0].mxu0
      %v2208 = vadd.f32 0.0, %v2207
      %v2209 = vpop.f32.mrb[0].mxu0
      %v2210 = vpop.f32.mrb[0].mxu0
      %v2211 = vadd.f32 0.0, %v2210
      %v2212 = vpop.f32.mrb[0].mxu0
      %2213 = vmatprep.mubr.bf16.mxu0 0
      %2214 = vmatmul.mubr.bf16.gmra.mrb[0].mxu0 %v2076
      %v2215 = vpop.f32.mrb[0].mxu0
      %v2216 = vadd.f32 0.0, %v2215
      %v2217 = vpop.f32.mrb[0].mxu0
      %v2218 = vpop.f32.mrb[0].mxu0
      %v2219 = vadd.f32 0.0, %v2218
      %v2220 = vpop.f32.mrb[0].mxu0
      %2221 = vmatprep.mubr.bf16.mxu0 0
      %2222 = vmatmul.mubr.bf16.gmra.mrb[0].mxu0 %v2079
      %v2223 = vpop.f32.mrb[0].mxu0
      %v2224 = vadd.f32 0.0, %v2223
      %v2225 = vpop.f32.mrb[0].mxu0
      %v2226 = vpop.f32.mrb[0].mxu0
      %v2227 = vadd.f32 0.0, %v2226
      %v2228 = vpop.f32.mrb[0].mxu0
      %2229 = vmatprep.mubr.bf16.mxu0 0
      %2230 = vmatmul.mubr.bf16.gmra.mrb[0].mxu0 %v2082
      %v2231 = vpop.f32.mrb[0].mxu0
      %v2232 = vadd.f32 0.0, %v2231
      %v2233 = vpop.f32.mrb[0].mxu0
      %v2234 = vpop.f32.mrb[0].mxu0
      %v2235 = vadd.f32 0.0, %v2234
      %v2236 = vpop.f32.mrb[0].mxu0
      %2237 = vmatprep.mubr.bf16.mxu0 0
      %2238 = vmatmul.mubr.bf16.gmra.mrb[0].mxu0 %v2085
      %v2239 = vpop.f32.mrb[0].mxu0
      %v2240 = vadd.f32 0.0, %v2239
      %v2241 = vpop.f32.mrb[0].mxu0
      %v2242 = vpop.f32.mrb[0].mxu0
      %v2243 = vadd.f32 0.0, %v2242
      %v2244 = vpop.f32.mrb[0].mxu0
      %2245 = vmatprep.mubr.bf16.mxu0 0
      %2246 = vmatmul.mubr.bf16.gmra.mrb[0].mxu0 %v2088
      %v2247 = vpop.f32.mrb[0].mxu0
      %v2248 = vadd.f32 0.0, %v2247
      %v2249 = vpop.f32.mrb[0].mxu0
      %v2250 = vpop.f32.mrb[0].mxu0
      %v2251 = vadd.f32 0.0, %v2250
      %v2252 = vpop.f32.mrb[0].mxu0
      %2253 = vmatprep.mubr.bf16.mxu0 0
      %2254 = vmatmul.mubr.bf16.gmra.mrb[0].mxu0 %v2091
      %v2255 = vpop.f32.mrb[0].mxu0
      %v2256 = vadd.f32 0.0, %v2255
      %v2257 = vpop.f32.mrb[0].mxu0
      %v2258 = vpop.f32.mrb[0].mxu0
      %v2259 = vadd.f32 0.0, %v2258
      %v2260 = vpop.f32.mrb[0].mxu0
      %2261 = vmatprep.mubr.bf16.mxu0 0
      %2262 = vmatmul.mubr.bf16.gmra.mrb[0].mxu0 %v2094
      %v2263 = vpop.f32.mrb[0].mxu0
      %v2264 = vadd.f32 0.0, %v2263
      %v2265 = vpop.f32.mrb[0].mxu0
      %v2266 = vpop.f32.mrb[0].mxu0
      %v2267 = vadd.f32 0.0, %v2266
      %v2268 = vpop.f32.mrb[0].mxu0
      %2269 = vmatprep.mubr.bf16.mxu0 0
      %2270 = vmatmul.mubr.bf16.gmra.mrb[0].mxu0 %v2097
      %v2271 = vpop.f32.mrb[0].mxu0
      %v2272 = vadd.f32 0.0, %v2271
      %v2273 = vpop.f32.mrb[0].mxu0
      %v2274 = vpop.f32.mrb[0].mxu0
      %v2275 = vadd.f32 0.0, %v2274
      %v2276 = vpop.f32.mrb[0].mxu0
      %2277 = vmatprep.mubr.bf16.mxu0 0
      %2278 = vmatmul.mubr.bf16.gmra.mrb[0].mxu0 %v2100
      %v2279 = vpop.f32.mrb[0].mxu0
      %v2280 = vadd.f32 0.0, %v2279
      %v2281 = vpop.f32.mrb[0].mxu0
      %v2282 = vpop.f32.mrb[0].mxu0
      %v2283 = vadd.f32 0.0, %v2282
      %v2284 = vpop.f32.mrb[0].mxu0
      %2285 = vmatprep.mubr.bf16.mxu0 0
      %2286 = vmatmul.mubr.bf16.gmra.mrb[0].mxu0 %v2103
      %v2287 = vpop.f32.mrb[0].mxu0
      %v2288 = vadd.f32 0.0, %v2287
      %v2289 = vpop.f32.mrb[0].mxu0
      %v2290 = vpop.f32.mrb[0].mxu0
      %v2291 = vadd.f32 0.0, %v2290
      %v2292 = vpop.f32.mrb[0].mxu0
      %2293 = vmatprep.mubr.bf16.mxu0 0
      %2294 = vmatmul.mubr.bf16.gmra.mrb[0].mxu0 %v2106
      %v2295 = vpop.f32.mrb[0].mxu0
      %v2296 = vadd.f32 0.0, %v2295
      %v2297 = vpop.f32.mrb[0].mxu0
      %v2298 = vpop.f32.mrb[0].mxu0
      %v2299 = vadd.f32 0.0, %v2298
      %v2300 = vpop.f32.mrb[0].mxu0
      %2301 = vmatprep.mubr.bf16.mxu0 0
      %2302 = vmatmul.mubr.bf16.gmra.mrb[0].mxu0 %v2109
      %v2303 = vpop.f32.mrb[0].mxu0
      %v2304 = vadd.f32 0.0, %v2303
      %v2305 = vpop.f32.mrb[0].mxu0
      %v2306 = vpop.f32.mrb[0].mxu0
      %v2307 = vadd.f32 0.0, %v2306
      %v2308 = vpop.f32.mrb[0].mxu0
      %2309 = vmatprep.mubr.bf16.mxu0 0
      %2310 = vmatmul.mubr.bf16.gmra.mrb[0].mxu0 %v2112
      %v2311 = vpop.f32.mrb[0].mxu0
      %v2312 = vadd.f32 0.0, %v2311
      %v2313 = vpop.f32.mrb[0].mxu0
      %v2314 = vpop.f32.mrb[0].mxu0
      %v2315 = vpop.f32.mrb[0].mxu0
      %2316 = vdwg.mxu0
      %v2317 = vadd.f32 %v1947, %v2152
      %v2318 = vadd.f32 %v1948, %v2155
      %v2319 = vadd.f32 %v1949, %v2160
      %v2320 = vadd.f32 %v1950, %v2163
      %v2321 = vadd.f32 %v1951, %v2168
      %v2322 = vadd.f32 %v1952, %v2171
      %v2323 = vadd.f32 %v1953, %v2176
      %v2324 = vadd.f32 %v1954, %v2179
      %v2325 = vadd.f32 %v1955, %v2184
      %v2326 = vadd.f32 %v1956, %v2187
      %v2327 = vadd.f32 %v1957, %v2192
      %v2328 = vadd.f32 %v1958, %v2195
      %v2329 = vadd.f32 %v1959, %v2200
      %v2330 = vadd.f32 %v1960, %v2203
      %v2331 = vadd.f32 %v1961, %v2208
      %v2332 = vadd.f32 %v1962, %v2211
      %v2333 = vadd.f32 %v1963, %v2216
      %v2334 = vadd.f32 %v1964, %v2219
      %v2335 = vadd.f32 %v1965, %v2224
      %v2336 = vadd.f32 %v1966, %v2227
      %v2337 = vadd.f32 %v1967, %v2232
      %v2338 = vadd.f32 %v1968, %v2235
      %v2339 = vadd.f32 %v1969, %v2240
      %v2340 = vadd.f32 %v1970, %v2243
      %v2341 = vadd.f32 %v1971, %v2248
      %v2342 = vadd.f32 %v1972, %v2251
      %v2343 = vadd.f32 %v1973, %v2256
      %v2344 = vadd.f32 %v1974, %v2259
      %v2345 = vadd.f32 %v1975, %v2264
      %v2346 = vadd.f32 %v1976, %v2267
      %v2347 = vadd.f32 %v1977, %v2272
      %v2348 = vadd.f32 %v1978, %v2275
      %v2349 = vadd.f32 %v1979, %v2280
      %v2350 = vadd.f32 %v1980, %v2283
      %v2351 = vadd.f32 %v1981, %v2288
      %v2352 = vadd.f32 %v1982, %v2291
      %v2353 = vadd.f32 %v1983, %v2296
      %v2354 = vadd.f32 %v1984, %v2299
      %v2355 = vadd.f32 %v1985, %v2304
      %v2356 = vadd.f32 %v1986, %v2307
      %v2357 = vadd.f32 %v1987, %v2312
      %v2358 = vld [vmem:[%s210 + $0x31] sm:$0xff]
      %v2359 = vld [vmem:[%s210 + $0x39] sm:$0xff]
      %v2360 = vld [vmem:[%s210 + $0x41] sm:$0xff]
      %v2361 = vld [vmem:[%s210 + $0x49] sm:$0xff]
      %v2362 = vld [vmem:[%s210 + $0x51] sm:$0xff]
      %v2363 = vld [vmem:[%s210 + $0x59] sm:$0xff]
      %v2364 = vld [vmem:[%s210 + $0x61] sm:$0xff]
      %v2365 = vld [vmem:[%s210 + $0x69] sm:$0xff]
      %v2366 = vld [vmem:[%s210 + $0x71] sm:$0xff]
      %v2367 = vld [vmem:[%s210 + $0x79] sm:$0xff]
      %v2368 = vld [vmem:[%s210 + $0x81] sm:$0xff]
      %v2369 = vld [vmem:[%s210 + $0x89] sm:$0xff]
      %v2370 = vld [vmem:[%s210 + $0x91] sm:$0xff]
      %v2371 = vld [vmem:[%s210 + $0x99] sm:$0xff]
      %v2372 = vld [vmem:[%s210 + $0xa1] sm:$0xff]
      %v2373 = vld [vmem:[%s210 + $0xa9] sm:$0xff]
      %v2374 = vld [vmem:[%s210 + $0xb1] sm:$0xff]
      %v2375 = vld [vmem:[%s210 + $0xb9] sm:$0xff]
      %v2376 = vld [vmem:[%s210 + $0xc1] sm:$0xff]
      %v2377 = vld [vmem:[%s210 + $0xc9] sm:$0xff]
      %v2378 = vld [vmem:[%s210 + $0xd1] sm:$0xff]
      %v2379 = vld [vmem:[%s210 + $0xd9] sm:$0xff]
      %v2380 = vld [vmem:[%s210 + $0xe1] sm:$0xff]
      %v2381 = vld [vmem:[%s210 + $0xe9] sm:$0xff]
      %v2382 = vld [vmem:[%s210 + $0xf1] sm:$0xff]
      %v2383 = vld [vmem:[%s210 + $0xf9] sm:$0xff]
      %v2384 = vld [vmem:[%s210 + $0x101] sm:$0xff]
      %v2385 = vld [vmem:[%s210 + $0x109] sm:$0xff]
      %v2386 = vld [vmem:[%s210 + $0x111] sm:$0xff]
      %v2387 = vld [vmem:[%s210 + $0x119] sm:$0xff]
      %v2388 = vld [vmem:[%s210 + $0x121] sm:$0xff]
      %v2389 = vld [vmem:[%s210 + $0x129] sm:$0xff]
      %v2390 = vld [vmem:[%s210 + $0x131] sm:$0xff]
      %v2391 = vld [vmem:[%s210 + $0x139] sm:$0xff]
      %v2392 = vld [vmem:[%s210 + $0x141] sm:$0xff]
      %v2393 = vld [vmem:[%s210 + $0x149] sm:$0xff]
      %v2394 = vld [vmem:[%s210 + $0x151] sm:$0xff]
      %v2395 = vld [vmem:[%s210 + $0x159] sm:$0xff]
      %v2396 = vld [vmem:[%s210 + $0x161] sm:$0xff]
      %v2397 = vld [vmem:[%s210 + $0x169] sm:$0xff]
      %v2398 = vld [vmem:[%s210 + $0x171] sm:$0xff]
      %v2399 = vpack.c.bf16 %v2359, %v2358
      %v2400 = vpack.c.bf16 %v2361, %v2360
      %v2401 = vpack.c.bf16 %v2363, %v2362
      %v2402 = vpack.c.bf16 %v2365, %v2364
      %v2403 = vpack.c.bf16 %v2367, %v2366
      %v2404 = vpack.c.bf16 %v2369, %v2368
      %v2405 = vpack.c.bf16 %v2371, %v2370
      %v2406 = vpack.c.bf16 %v2373, %v2372
      %v2407 = vpack.c.bf16 %v2375, %v2374
      %v2408 = vpack.c.bf16 %v2377, %v2376
      %v2409 = vpack.c.bf16 %v2379, %v2378
      %v2410 = vpack.c.bf16 %v2381, %v2380
      %v2411 = vpack.c.bf16 %v2383, %v2382
      %v2412 = vpack.c.bf16 %v2385, %v2384
      %v2413 = vpack.c.bf16 %v2387, %v2386
      %v2414 = vpack.c.bf16 %v2389, %v2388
      %v2415 = vpack.c.bf16 %v2391, %v2390
      %v2416 = vpack.c.bf16 %v2393, %v2392
      %v2417 = vpack.c.bf16 %v2395, %v2394
      %v2418 = vpack.c.bf16 %v2397, %v2396
      %v2419 = vpack.c.bf16 %v2398, %v2398
      %v2420 = vld [vmem:[%s2 + $0x18] sm:$0xf]
      %v2422 = vsel %vm344, %v2399, 0
      %v2425 = vsel %vm344, %v2400, 0
      %v2428 = vsel %vm344, %v2401, 0
      %v2431 = vsel %vm344, %v2402, 0
      %v2434 = vsel %vm344, %v2403, 0
      %v2437 = vsel %vm344, %v2404, 0
      %v2440 = vsel %vm344, %v2405, 0
      %v2443 = vsel %vm344, %v2406, 0
      %v2446 = vsel %vm344, %v2407, 0
      %v2449 = vsel %vm344, %v2408, 0
      %v2452 = vsel %vm344, %v2409, 0
      %v2455 = vsel %vm344, %v2410, 0
      %v2458 = vsel %vm344, %v2411, 0
      %v2461 = vsel %vm344, %v2412, 0
      %v2464 = vsel %vm344, %v2413, 0
      %v2467 = vsel %vm344, %v2414, 0
      %v2470 = vsel %vm344, %v2415, 0
      %v2473 = vsel %vm344, %v2416, 0
      %v2476 = vsel %vm344, %v2417, 0
      %v2479 = vsel %vm344, %v2418, 0
      %v2482 = vsel %vm344, %v2419, 0
      %v2485 = vsel %vm408, %v2420, 0
      %2487 = vmatprep.subr.bf16.mxu0 0
      %2488 = vmatpush1.bf16.msra.mxu0 %v2485
      %2489 = vmatprep.subr.bf16.mxu0 0
      %2490 = vmatpush1.bf16.msra.mxu0 0
      %2491 = vmatprep.subr.bf16.mxu0 0
      %2492 = vmatpush1.bf16.msra.mxu0 0
      %2493 = vmatprep.subr.bf16.mxu0 0
      %2494 = vmatpush1.bf16.msra.mxu0 0
      %2495 = vmatprep.subr.bf16.mxu0 0
      %2496 = vmatpush1.bf16.msra.mxu0 0
      %2497 = vmatprep.subr.bf16.mxu0 0
      %2498 = vmatpush1.bf16.msra.mxu0 0
      %2499 = vmatprep.subr.bf16.mxu0 0
      %2500 = vmatpush1.bf16.msra.mxu0 0
      %2501 = vmatprep.subr.bf16.mxu0 0
      %2502 = vmatpush1.bf16.msra.mxu0 0
      %2503 = vmatprep.subr.bf16.mxu0 0
      %2504 = vmatpush1.bf16.msra.mxu0 0
      %2505 = vmatprep.subr.bf16.mxu0 0
      %2506 = vmatpush1.bf16.msra.mxu0 0
      %2507 = vmatprep.subr.bf16.mxu0 0
      %2508 = vmatpush1.bf16.msra.mxu0 0
      %2509 = vmatprep.subr.bf16.mxu0 0
      %2510 = vmatpush1.bf16.msra.mxu0 0
      %2511 = vmatprep.subr.bf16.mxu0 0
      %2512 = vmatpush1.bf16.msra.mxu0 0
      %2513 = vmatprep.subr.bf16.mxu0 0
      %2514 = vmatpush1.bf16.msra.mxu0 0
      %2515 = vmatprep.subr.bf16.mxu0 0
      %2516 = vmatpush1.bf16.msra.mxu0 0
      %2517 = vmatprep.subr.bf16.mxu0 0
      %2518 = vmatpush1.bf16.msra.mxu0 0
      %2519 = vmatprep.mubr.bf16.mxu0 0
      %2520 = vmatmul.mubr.bf16.gmra.mrb[0].mxu0 %v2422
      %v2521 = vpop.f32.mrb[0].mxu0
      %v2522 = vadd.f32 0.0, %v2521
      %v2523 = vpop.f32.mrb[0].mxu0
      %v2524 = vpop.f32.mrb[0].mxu0
      %v2525 = vadd.f32 0.0, %v2524
      %v2526 = vpop.f32.mrb[0].mxu0
      %2527 = vmatprep.mubr.bf16.mxu0 0
      %2528 = vmatmul.mubr.bf16.gmra.mrb[0].mxu0 %v2425
      %v2529 = vpop.f32.mrb[0].mxu0
      %v2530 = vadd.f32 0.0, %v2529
      %v2531 = vpop.f32.mrb[0].mxu0
      %v2532 = vpop.f32.mrb[0].mxu0
      %v2533 = vadd.f32 0.0, %v2532
      %v2534 = vpop.f32.mrb[0].mxu0
      %2535 = vmatprep.mubr.bf16.mxu0 0
      %2536 = vmatmul.mubr.bf16.gmra.mrb[0].mxu0 %v2428
      %v2537 = vpop.f32.mrb[0].mxu0
      %v2538 = vadd.f32 0.0, %v2537
      %v2539 = vpop.f32.mrb[0].mxu0
      %v2540 = vpop.f32.mrb[0].mxu0
      %v2541 = vadd.f32 0.0, %v2540
      %v2542 = vpop.f32.mrb[0].mxu0
      %2543 = vmatprep.mubr.bf16.mxu0 0
      %2544 = vmatmul.mubr.bf16.gmra.mrb[0].mxu0 %v2431
      %v2545 = vpop.f32.mrb[0].mxu0
      %v2546 = vadd.f32 0.0, %v2545
      %v2547 = vpop.f32.mrb[0].mxu0
      %v2548 = vpop.f32.mrb[0].mxu0
      %v2549 = vadd.f32 0.0, %v2548
      %v2550 = vpop.f32.mrb[0].mxu0
      %2551 = vmatprep.mubr.bf16.mxu0 0
      %2552 = vmatmul.mubr.bf16.gmra.mrb[0].mxu0 %v2434
      %v2553 = vpop.f32.mrb[0].mxu0
      %v2554 = vadd.f32 0.0, %v2553
      %v2555 = vpop.f32.mrb[0].mxu0
      %v2556 = vpop.f32.mrb[0].mxu0
      %v2557 = vadd.f32 0.0, %v2556
      %v2558 = vpop.f32.mrb[0].mxu0
      %2559 = vmatprep.mubr.bf16.mxu0 0
      %2560 = vmatmul.mubr.bf16.gmra.mrb[0].mxu0 %v2437
      %v2561 = vpop.f32.mrb[0].mxu0
      %v2562 = vadd.f32 0.0, %v2561
      %v2563 = vpop.f32.mrb[0].mxu0
      %v2564 = vpop.f32.mrb[0].mxu0
      %v2565 = vadd.f32 0.0, %v2564
      %v2566 = vpop.f32.mrb[0].mxu0
      %2567 = vmatprep.mubr.bf16.mxu0 0
      %2568 = vmatmul.mubr.bf16.gmra.mrb[0].mxu0 %v2440
      %v2569 = vpop.f32.mrb[0].mxu0
      %v2570 = vadd.f32 0.0, %v2569
      %v2571 = vpop.f32.mrb[0].mxu0
      %v2572 = vpop.f32.mrb[0].mxu0
      %v2573 = vadd.f32 0.0, %v2572
      %v2574 = vpop.f32.mrb[0].mxu0
      %2575 = vmatprep.mubr.bf16.mxu0 0
      %2576 = vmatmul.mubr.bf16.gmra.mrb[0].mxu0 %v2443
      %v2577 = vpop.f32.mrb[0].mxu0
      %v2578 = vadd.f32 0.0, %v2577
      %v2579 = vpop.f32.mrb[0].mxu0
      %v2580 = vpop.f32.mrb[0].mxu0
      %v2581 = vadd.f32 0.0, %v2580
      %v2582 = vpop.f32.mrb[0].mxu0
      %2583 = vmatprep.mubr.bf16.mxu0 0
      %2584 = vmatmul.mubr.bf16.gmra.mrb[0].mxu0 %v2446
      %v2585 = vpop.f32.mrb[0].mxu0
      %v2586 = vadd.f32 0.0, %v2585
      %v2587 = vpop.f32.mrb[0].mxu0
      %v2588 = vpop.f32.mrb[0].mxu0
      %v2589 = vadd.f32 0.0, %v2588
      %v2590 = vpop.f32.mrb[0].mxu0
      %2591 = vmatprep.mubr.bf16.mxu0 0
      %2592 = vmatmul.mubr.bf16.gmra.mrb[0].mxu0 %v2449
      %v2593 = vpop.f32.mrb[0].mxu0
      %v2594 = vadd.f32 0.0, %v2593
      %v2595 = vpop.f32.mrb[0].mxu0
      %v2596 = vpop.f32.mrb[0].mxu0
      %v2597 = vadd.f32 0.0, %v2596
      %v2598 = vpop.f32.mrb[0].mxu0
      %2599 = vmatprep.mubr.bf16.mxu0 0
      %2600 = vmatmul.mubr.bf16.gmra.mrb[0].mxu0 %v2452
      %v2601 = vpop.f32.mrb[0].mxu0
      %v2602 = vadd.f32 0.0, %v2601
      %v2603 = vpop.f32.mrb[0].mxu0
      %v2604 = vpop.f32.mrb[0].mxu0
      %v2605 = vadd.f32 0.0, %v2604
      %v2606 = vpop.f32.mrb[0].mxu0
      %2607 = vmatprep.mubr.bf16.mxu0 0
      %2608 = vmatmul.mubr.bf16.gmra.mrb[0].mxu0 %v2455
      %v2609 = vpop.f32.mrb[0].mxu0
      %v2610 = vadd.f32 0.0, %v2609
      %v2611 = vpop.f32.mrb[0].mxu0
      %v2612 = vpop.f32.mrb[0].mxu0
      %v2613 = vadd.f32 0.0, %v2612
      %v2614 = vpop.f32.mrb[0].mxu0
      %2615 = vmatprep.mubr.bf16.mxu0 0
      %2616 = vmatmul.mubr.bf16.gmra.mrb[0].mxu0 %v2458
      %v2617 = vpop.f32.mrb[0].mxu0
      %v2618 = vadd.f32 0.0, %v2617
      %v2619 = vpop.f32.mrb[0].mxu0
      %v2620 = vpop.f32.mrb[0].mxu0
      %v2621 = vadd.f32 0.0, %v2620
      %v2622 = vpop.f32.mrb[0].mxu0
      %2623 = vmatprep.mubr.bf16.mxu0 0
      %2624 = vmatmul.mubr.bf16.gmra.mrb[0].mxu0 %v2461
      %v2625 = vpop.f32.mrb[0].mxu0
      %v2626 = vadd.f32 0.0, %v2625
      %v2627 = vpop.f32.mrb[0].mxu0
      %v2628 = vpop.f32.mrb[0].mxu0
      %v2629 = vadd.f32 0.0, %v2628
      %v2630 = vpop.f32.mrb[0].mxu0
      %2631 = vmatprep.mubr.bf16.mxu0 0
      %2632 = vmatmul.mubr.bf16.gmra.mrb[0].mxu0 %v2464
      %v2633 = vpop.f32.mrb[0].mxu0
      %v2634 = vadd.f32 0.0, %v2633
      %v2635 = vpop.f32.mrb[0].mxu0
      %v2636 = vpop.f32.mrb[0].mxu0
      %v2637 = vadd.f32 0.0, %v2636
      %v2638 = vpop.f32.mrb[0].mxu0
      %2639 = vmatprep.mubr.bf16.mxu0 0
      %2640 = vmatmul.mubr.bf16.gmra.mrb[0].mxu0 %v2467
      %v2641 = vpop.f32.mrb[0].mxu0
      %v2642 = vadd.f32 0.0, %v2641
      %v2643 = vpop.f32.mrb[0].mxu0
      %v2644 = vpop.f32.mrb[0].mxu0
      %v2645 = vadd.f32 0.0, %v2644
      %v2646 = vpop.f32.mrb[0].mxu0
      %2647 = vmatprep.mubr.bf16.mxu0 0
      %2648 = vmatmul.mubr.bf16.gmra.mrb[0].mxu0 %v2470
      %v2649 = vpop.f32.mrb[0].mxu0
      %v2650 = vadd.f32 0.0, %v2649
      %v2651 = vpop.f32.mrb[0].mxu0
      %v2652 = vpop.f32.mrb[0].mxu0
      %v2653 = vadd.f32 0.0, %v2652
      %v2654 = vpop.f32.mrb[0].mxu0
      %2655 = vmatprep.mubr.bf16.mxu0 0
      %2656 = vmatmul.mubr.bf16.gmra.mrb[0].mxu0 %v2473
      %v2657 = vpop.f32.mrb[0].mxu0
      %v2658 = vadd.f32 0.0, %v2657
      %v2659 = vpop.f32.mrb[0].mxu0
      %v2660 = vpop.f32.mrb[0].mxu0
      %v2661 = vadd.f32 0.0, %v2660
      %v2662 = vpop.f32.mrb[0].mxu0
      %2663 = vmatprep.mubr.bf16.mxu0 0
      %2664 = vmatmul.mubr.bf16.gmra.mrb[0].mxu0 %v2476
      %v2665 = vpop.f32.mrb[0].mxu0
      %v2666 = vadd.f32 0.0, %v2665
      %v2667 = vpop.f32.mrb[0].mxu0
      %v2668 = vpop.f32.mrb[0].mxu0
      %v2669 = vadd.f32 0.0, %v2668
      %v2670 = vpop.f32.mrb[0].mxu0
      %2671 = vmatprep.mubr.bf16.mxu0 0
      %2672 = vmatmul.mubr.bf16.gmra.mrb[0].mxu0 %v2479
      %v2673 = vpop.f32.mrb[0].mxu0
      %v2674 = vadd.f32 0.0, %v2673
      %v2675 = vpop.f32.mrb[0].mxu0
      %v2676 = vpop.f32.mrb[0].mxu0
      %v2677 = vadd.f32 0.0, %v2676
      %v2678 = vpop.f32.mrb[0].mxu0
      %2679 = vmatprep.mubr.bf16.mxu0 0
      %2680 = vmatmul.mubr.bf16.gmra.mrb[0].mxu0 %v2482
      %v2681 = vpop.f32.mrb[0].mxu0
      %v2682 = vadd.f32 0.0, %v2681
      %v2683 = vpop.f32.mrb[0].mxu0
      %v2684 = vpop.f32.mrb[0].mxu0
      %v2685 = vpop.f32.mrb[0].mxu0
      %2686 = vdwg.mxu0
      %v2687 = vadd.f32 %v2317, %v2522
      %v2688 = vadd.f32 %v2318, %v2525
      %v2689 = vadd.f32 %v2319, %v2530
      %v2690 = vadd.f32 %v2320, %v2533
      %v2691 = vadd.f32 %v2321, %v2538
      %v2692 = vadd.f32 %v2322, %v2541
      %v2693 = vadd.f32 %v2323, %v2546
      %v2694 = vadd.f32 %v2324, %v2549
      %v2695 = vadd.f32 %v2325, %v2554
      %v2696 = vadd.f32 %v2326, %v2557
      %v2697 = vadd.f32 %v2327, %v2562
      %v2698 = vadd.f32 %v2328, %v2565
      %v2699 = vadd.f32 %v2329, %v2570
      %v2700 = vadd.f32 %v2330, %v2573
      %v2701 = vadd.f32 %v2331, %v2578
      %v2702 = vadd.f32 %v2332, %v2581
      %v2703 = vadd.f32 %v2333, %v2586
      %v2704 = vadd.f32 %v2334, %v2589
      %v2705 = vadd.f32 %v2335, %v2594
      %v2706 = vadd.f32 %v2336, %v2597
      %v2707 = vadd.f32 %v2337, %v2602
      %v2708 = vadd.f32 %v2338, %v2605
      %v2709 = vadd.f32 %v2339, %v2610
      %v2710 = vadd.f32 %v2340, %v2613
      %v2711 = vadd.f32 %v2341, %v2618
      %v2712 = vadd.f32 %v2342, %v2621
      %v2713 = vadd.f32 %v2343, %v2626
      %v2714 = vadd.f32 %v2344, %v2629
      %v2715 = vadd.f32 %v2345, %v2634
      %v2716 = vadd.f32 %v2346, %v2637
      %v2717 = vadd.f32 %v2347, %v2642
      %v2718 = vadd.f32 %v2348, %v2645
      %v2719 = vadd.f32 %v2349, %v2650
      %v2720 = vadd.f32 %v2350, %v2653
      %v2721 = vadd.f32 %v2351, %v2658
      %v2722 = vadd.f32 %v2352, %v2661
      %v2723 = vadd.f32 %v2353, %v2666
      %v2724 = vadd.f32 %v2354, %v2669
      %v2725 = vadd.f32 %v2355, %v2674
      %v2726 = vadd.f32 %v2356, %v2677
      %v2727 = vadd.f32 %v2357, %v2682
      %v2728 = vld [vmem:[%s210 + $0x32] sm:$0xff]
      %v2729 = vld [vmem:[%s210 + $0x3a] sm:$0xff]
      %v2730 = vld [vmem:[%s210 + $0x42] sm:$0xff]
      %v2731 = vld [vmem:[%s210 + $0x4a] sm:$0xff]
      %v2732 = vld [vmem:[%s210 + $0x52] sm:$0xff]
      %v2733 = vld [vmem:[%s210 + $0x5a] sm:$0xff]
      %v2734 = vld [vmem:[%s210 + $0x62] sm:$0xff]
      %v2735 = vld [vmem:[%s210 + $0x6a] sm:$0xff]
      %v2736 = vld [vmem:[%s210 + $0x72] sm:$0xff]
      %v2737 = vld [vmem:[%s210 + $0x7a] sm:$0xff]
      %v2738 = vld [vmem:[%s210 + $0x82] sm:$0xff]
      %v2739 = vld [vmem:[%s210 + $0x8a] sm:$0xff]
      %v2740 = vld [vmem:[%s210 + $0x92] sm:$0xff]
      %v2741 = vld [vmem:[%s210 + $0x9a] sm:$0xff]
      %v2742 = vld [vmem:[%s210 + $0xa2] sm:$0xff]
      %v2743 = vld [vmem:[%s210 + $0xaa] sm:$0xff]
      %v2744 = vld [vmem:[%s210 + $0xb2] sm:$0xff]
      %v2745 = vld [vmem:[%s210 + $0xba] sm:$0xff]
      %v2746 = vld [vmem:[%s210 + $0xc2] sm:$0xff]
      %v2747 = vld [vmem:[%s210 + $0xca] sm:$0xff]
      %v2748 = vld [vmem:[%s210 + $0xd2] sm:$0xff]
      %v2749 = vld [vmem:[%s210 + $0xda] sm:$0xff]
      %v2750 = vld [vmem:[%s210 + $0xe2] sm:$0xff]
      %v2751 = vld [vmem:[%s210 + $0xea] sm:$0xff]
      %v2752 = vld [vmem:[%s210 + $0xf2] sm:$0xff]
      %v2753 = vld [vmem:[%s210 + $0xfa] sm:$0xff]
      %v2754 = vld [vmem:[%s210 + $0x102] sm:$0xff]
      %v2755 = vld [vmem:[%s210 + $0x10a] sm:$0xff]
      %v2756 = vld [vmem:[%s210 + $0x112] sm:$0xff]
      %v2757 = vld [vmem:[%s210 + $0x11a] sm:$0xff]
      %v2758 = vld [vmem:[%s210 + $0x122] sm:$0xff]
      %v2759 = vld [vmem:[%s210 + $0x12a] sm:$0xff]
      %v2760 = vld [vmem:[%s210 + $0x132] sm:$0xff]
      %v2761 = vld [vmem:[%s210 + $0x13a] sm:$0xff]
      %v2762 = vld [vmem:[%s210 + $0x142] sm:$0xff]
      %v2763 = vld [vmem:[%s210 + $0x14a] sm:$0xff]
      %v2764 = vld [vmem:[%s210 + $0x152] sm:$0xff]
      %v2765 = vld [vmem:[%s210 + $0x15a] sm:$0xff]
      %v2766 = vld [vmem:[%s210 + $0x162] sm:$0xff]
      %v2767 = vld [vmem:[%s210 + $0x16a] sm:$0xff]
      %v2768 = vld [vmem:[%s210 + $0x172] sm:$0xff]
      %v2769 = vpack.c.bf16 %v2729, %v2728
      %v2770 = vpack.c.bf16 %v2731, %v2730
      %v2771 = vpack.c.bf16 %v2733, %v2732
      %v2772 = vpack.c.bf16 %v2735, %v2734
      %v2773 = vpack.c.bf16 %v2737, %v2736
      %v2774 = vpack.c.bf16 %v2739, %v2738
      %v2775 = vpack.c.bf16 %v2741, %v2740
      %v2776 = vpack.c.bf16 %v2743, %v2742
      %v2777 = vpack.c.bf16 %v2745, %v2744
      %v2778 = vpack.c.bf16 %v2747, %v2746
      %v2779 = vpack.c.bf16 %v2749, %v2748
      %v2780 = vpack.c.bf16 %v2751, %v2750
      %v2781 = vpack.c.bf16 %v2753, %v2752
      %v2782 = vpack.c.bf16 %v2755, %v2754
      %v2783 = vpack.c.bf16 %v2757, %v2756
      %v2784 = vpack.c.bf16 %v2759, %v2758
      %v2785 = vpack.c.bf16 %v2761, %v2760
      %v2786 = vpack.c.bf16 %v2763, %v2762
      %v2787 = vpack.c.bf16 %v2765, %v2764
      %v2788 = vpack.c.bf16 %v2767, %v2766
      %v2789 = vpack.c.bf16 %v2768, %v2768
      %v2790 = vld [vmem:[%s2 + $0x1c] sm:$0xf]
      %v2792 = vsel %vm344, %v2769, 0
      %v2795 = vsel %vm344, %v2770, 0
      %v2798 = vsel %vm344, %v2771, 0
      %v2801 = vsel %vm344, %v2772, 0
      %v2804 = vsel %vm344, %v2773, 0
      %v2807 = vsel %vm344, %v2774, 0
      %v2810 = vsel %vm344, %v2775, 0
      %v2813 = vsel %vm344, %v2776, 0
      %v2816 = vsel %vm344, %v2777, 0
      %v2819 = vsel %vm344, %v2778, 0
      %v2822 = vsel %vm344, %v2779, 0
      %v2825 = vsel %vm344, %v2780, 0
      %v2828 = vsel %vm344, %v2781, 0
      %v2831 = vsel %vm344, %v2782, 0
      %v2834 = vsel %vm344, %v2783, 0
      %v2837 = vsel %vm344, %v2784, 0
      %v2840 = vsel %vm344, %v2785, 0
      %v2843 = vsel %vm344, %v2786, 0
      %v2846 = vsel %vm344, %v2787, 0
      %v2849 = vsel %vm344, %v2788, 0
      %v2852 = vsel %vm344, %v2789, 0
      %v2855 = vsel %vm408, %v2790, 0
      %2857 = vmatprep.subr.bf16.mxu0 0
      %2858 = vmatpush1.bf16.msra.mxu0 %v2855
      %2859 = vmatprep.subr.bf16.mxu0 0
      %2860 = vmatpush1.bf16.msra.mxu0 0
      %2861 = vmatprep.subr.bf16.mxu0 0
      %2862 = vmatpush1.bf16.msra.mxu0 0
      %2863 = vmatprep.subr.bf16.mxu0 0
      %2864 = vmatpush1.bf16.msra.mxu0 0
      %2865 = vmatprep.subr.bf16.mxu0 0
      %2866 = vmatpush1.bf16.msra.mxu0 0
      %2867 = vmatprep.subr.bf16.mxu0 0
      %2868 = vmatpush1.bf16.msra.mxu0 0
      %2869 = vmatprep.subr.bf16.mxu0 0
      %2870 = vmatpush1.bf16.msra.mxu0 0
      %2871 = vmatprep.subr.bf16.mxu0 0
      %2872 = vmatpush1.bf16.msra.mxu0 0
      %2873 = vmatprep.subr.bf16.mxu0 0
      %2874 = vmatpush1.bf16.msra.mxu0 0
      %2875 = vmatprep.subr.bf16.mxu0 0
      %2876 = vmatpush1.bf16.msra.mxu0 0
      %2877 = vmatprep.subr.bf16.mxu0 0
      %2878 = vmatpush1.bf16.msra.mxu0 0
      %2879 = vmatprep.subr.bf16.mxu0 0
      %2880 = vmatpush1.bf16.msra.mxu0 0
      %2881 = vmatprep.subr.bf16.mxu0 0
      %2882 = vmatpush1.bf16.msra.mxu0 0
      %2883 = vmatprep.subr.bf16.mxu0 0
      %2884 = vmatpush1.bf16.msra.mxu0 0
      %2885 = vmatprep.subr.bf16.mxu0 0
      %2886 = vmatpush1.bf16.msra.mxu0 0
      %2887 = vmatprep.subr.bf16.mxu0 0
      %2888 = vmatpush1.bf16.msra.mxu0 0
      %2889 = vmatprep.mubr.bf16.mxu0 0
      %2890 = vmatmul.mubr.bf16.gmra.mrb[0].mxu0 %v2792
      %v2891 = vpop.f32.mrb[0].mxu0
      %v2892 = vadd.f32 0.0, %v2891
      %v2893 = vpop.f32.mrb[0].mxu0
      %v2894 = vpop.f32.mrb[0].mxu0
      %v2895 = vadd.f32 0.0, %v2894
      %v2896 = vpop.f32.mrb[0].mxu0
      %2897 = vmatprep.mubr.bf16.mxu0 0
      %2898 = vmatmul.mubr.bf16.gmra.mrb[0].mxu0 %v2795
      %v2899 = vpop.f32.mrb[0].mxu0
      %v2900 = vadd.f32 0.0, %v2899
      %v2901 = vpop.f32.mrb[0].mxu0
      %v2902 = vpop.f32.mrb[0].mxu0
      %v2903 = vadd.f32 0.0, %v2902
      %v2904 = vpop.f32.mrb[0].mxu0
      %2905 = vmatprep.mubr.bf16.mxu0 0
      %2906 = vmatmul.mubr.bf16.gmra.mrb[0].mxu0 %v2798
      %v2907 = vpop.f32.mrb[0].mxu0
      %v2908 = vadd.f32 0.0, %v2907
      %v2909 = vpop.f32.mrb[0].mxu0
      %v2910 = vpop.f32.mrb[0].mxu0
      %v2911 = vadd.f32 0.0, %v2910
      %v2912 = vpop.f32.mrb[0].mxu0
      %2913 = vmatprep.mubr.bf16.mxu0 0
      %2914 = vmatmul.mubr.bf16.gmra.mrb[0].mxu0 %v2801
      %v2915 = vpop.f32.mrb[0].mxu0
      %v2916 = vadd.f32 0.0, %v2915
      %v2917 = vpop.f32.mrb[0].mxu0
      %v2918 = vpop.f32.mrb[0].mxu0
      %v2919 = vadd.f32 0.0, %v2918
      %v2920 = vpop.f32.mrb[0].mxu0
      %2921 = vmatprep.mubr.bf16.mxu0 0
      %2922 = vmatmul.mubr.bf16.gmra.mrb[0].mxu0 %v2804
      %v2923 = vpop.f32.mrb[0].mxu0
      %v2924 = vadd.f32 0.0, %v2923
      %v2925 = vpop.f32.mrb[0].mxu0
      %v2926 = vpop.f32.mrb[0].mxu0
      %v2927 = vadd.f32 0.0, %v2926
      %v2928 = vpop.f32.mrb[0].mxu0
      %2929 = vmatprep.mubr.bf16.mxu0 0
      %2930 = vmatmul.mubr.bf16.gmra.mrb[0].mxu0 %v2807
      %v2931 = vpop.f32.mrb[0].mxu0
      %v2932 = vadd.f32 0.0, %v2931
      %v2933 = vpop.f32.mrb[0].mxu0
      %v2934 = vpop.f32.mrb[0].mxu0
      %v2935 = vadd.f32 0.0, %v2934
      %v2936 = vpop.f32.mrb[0].mxu0
      %2937 = vmatprep.mubr.bf16.mxu0 0
      %2938 = vmatmul.mubr.bf16.gmra.mrb[0].mxu0 %v2810
      %v2939 = vpop.f32.mrb[0].mxu0
      %v2940 = vadd.f32 0.0, %v2939
      %v2941 = vpop.f32.mrb[0].mxu0
      %v2942 = vpop.f32.mrb[0].mxu0
      %v2943 = vadd.f32 0.0, %v2942
      %v2944 = vpop.f32.mrb[0].mxu0
      %2945 = vmatprep.mubr.bf16.mxu0 0
      %2946 = vmatmul.mubr.bf16.gmra.mrb[0].mxu0 %v2813
      %v2947 = vpop.f32.mrb[0].mxu0
      %v2948 = vadd.f32 0.0, %v2947
      %v2949 = vpop.f32.mrb[0].mxu0
      %v2950 = vpop.f32.mrb[0].mxu0
      %v2951 = vadd.f32 0.0, %v2950
      %v2952 = vpop.f32.mrb[0].mxu0
      %2953 = vmatprep.mubr.bf16.mxu0 0
      %2954 = vmatmul.mubr.bf16.gmra.mrb[0].mxu0 %v2816
      %v2955 = vpop.f32.mrb[0].mxu0
      %v2956 = vadd.f32 0.0, %v2955
      %v2957 = vpop.f32.mrb[0].mxu0
      %v2958 = vpop.f32.mrb[0].mxu0
      %v2959 = vadd.f32 0.0, %v2958
      %v2960 = vpop.f32.mrb[0].mxu0
      %2961 = vmatprep.mubr.bf16.mxu0 0
      %2962 = vmatmul.mubr.bf16.gmra.mrb[0].mxu0 %v2819
      %v2963 = vpop.f32.mrb[0].mxu0
      %v2964 = vadd.f32 0.0, %v2963
      %v2965 = vpop.f32.mrb[0].mxu0
      %v2966 = vpop.f32.mrb[0].mxu0
      %v2967 = vadd.f32 0.0, %v2966
      %v2968 = vpop.f32.mrb[0].mxu0
      %2969 = vmatprep.mubr.bf16.mxu0 0
      %2970 = vmatmul.mubr.bf16.gmra.mrb[0].mxu0 %v2822
      %v2971 = vpop.f32.mrb[0].mxu0
      %v2972 = vadd.f32 0.0, %v2971
      %v2973 = vpop.f32.mrb[0].mxu0
      %v2974 = vpop.f32.mrb[0].mxu0
      %v2975 = vadd.f32 0.0, %v2974
      %v2976 = vpop.f32.mrb[0].mxu0
      %2977 = vmatprep.mubr.bf16.mxu0 0
      %2978 = vmatmul.mubr.bf16.gmra.mrb[0].mxu0 %v2825
      %v2979 = vpop.f32.mrb[0].mxu0
      %v2980 = vadd.f32 0.0, %v2979
      %v2981 = vpop.f32.mrb[0].mxu0
      %v2982 = vpop.f32.mrb[0].mxu0
      %v2983 = vadd.f32 0.0, %v2982
      %v2984 = vpop.f32.mrb[0].mxu0
      %2985 = vmatprep.mubr.bf16.mxu0 0
      %2986 = vmatmul.mubr.bf16.gmra.mrb[0].mxu0 %v2828
      %v2987 = vpop.f32.mrb[0].mxu0
      %v2988 = vadd.f32 0.0, %v2987
      %v2989 = vpop.f32.mrb[0].mxu0
      %v2990 = vpop.f32.mrb[0].mxu0
      %v2991 = vadd.f32 0.0, %v2990
      %v2992 = vpop.f32.mrb[0].mxu0
      %2993 = vmatprep.mubr.bf16.mxu0 0
      %2994 = vmatmul.mubr.bf16.gmra.mrb[0].mxu0 %v2831
      %v2995 = vpop.f32.mrb[0].mxu0
      %v2996 = vadd.f32 0.0, %v2995
      %v2997 = vpop.f32.mrb[0].mxu0
      %v2998 = vpop.f32.mrb[0].mxu0
      %v2999 = vadd.f32 0.0, %v2998
      %v3000 = vpop.f32.mrb[0].mxu0
      %3001 = vmatprep.mubr.bf16.mxu0 0
      %3002 = vmatmul.mubr.bf16.gmra.mrb[0].mxu0 %v2834
      %v3003 = vpop.f32.mrb[0].mxu0
      %v3004 = vadd.f32 0.0, %v3003
      %v3005 = vpop.f32.mrb[0].mxu0
      %v3006 = vpop.f32.mrb[0].mxu0
      %v3007 = vadd.f32 0.0, %v3006
      %v3008 = vpop.f32.mrb[0].mxu0
      %3009 = vmatprep.mubr.bf16.mxu0 0
      %3010 = vmatmul.mubr.bf16.gmra.mrb[0].mxu0 %v2837
      %v3011 = vpop.f32.mrb[0].mxu0
      %v3012 = vadd.f32 0.0, %v3011
      %v3013 = vpop.f32.mrb[0].mxu0
      %v3014 = vpop.f32.mrb[0].mxu0
      %v3015 = vadd.f32 0.0, %v3014
      %v3016 = vpop.f32.mrb[0].mxu0
      %3017 = vmatprep.mubr.bf16.mxu0 0
      %3018 = vmatmul.mubr.bf16.gmra.mrb[0].mxu0 %v2840
      %v3019 = vpop.f32.mrb[0].mxu0
      %v3020 = vadd.f32 0.0, %v3019
      %v3021 = vpop.f32.mrb[0].mxu0
      %v3022 = vpop.f32.mrb[0].mxu0
      %v3023 = vadd.f32 0.0, %v3022
      %v3024 = vpop.f32.mrb[0].mxu0
      %3025 = vmatprep.mubr.bf16.mxu0 0
      %3026 = vmatmul.mubr.bf16.gmra.mrb[0].mxu0 %v2843
      %v3027 = vpop.f32.mrb[0].mxu0
      %v3028 = vadd.f32 0.0, %v3027
      %v3029 = vpop.f32.mrb[0].mxu0
      %v3030 = vpop.f32.mrb[0].mxu0
      %v3031 = vadd.f32 0.0, %v3030
      %v3032 = vpop.f32.mrb[0].mxu0
      %3033 = vmatprep.mubr.bf16.mxu0 0
      %3034 = vmatmul.mubr.bf16.gmra.mrb[0].mxu0 %v2846
      %v3035 = vpop.f32.mrb[0].mxu0
      %v3036 = vadd.f32 0.0, %v3035
      %v3037 = vpop.f32.mrb[0].mxu0
      %v3038 = vpop.f32.mrb[0].mxu0
      %v3039 = vadd.f32 0.0, %v3038
      %v3040 = vpop.f32.mrb[0].mxu0
      %3041 = vmatprep.mubr.bf16.mxu0 0
      %3042 = vmatmul.mubr.bf16.gmra.mrb[0].mxu0 %v2849
      %v3043 = vpop.f32.mrb[0].mxu0
      %v3044 = vadd.f32 0.0, %v3043
      %v3045 = vpop.f32.mrb[0].mxu0
      %v3046 = vpop.f32.mrb[0].mxu0
      %v3047 = vadd.f32 0.0, %v3046
      %v3048 = vpop.f32.mrb[0].mxu0
      %3049 = vmatprep.mubr.bf16.mxu0 0
      %3050 = vmatmul.mubr.bf16.gmra.mrb[0].mxu0 %v2852
      %v3051 = vpop.f32.mrb[0].mxu0
      %v3052 = vadd.f32 0.0, %v3051
      %v3053 = vpop.f32.mrb[0].mxu0
      %v3054 = vpop.f32.mrb[0].mxu0
      %v3055 = vpop.f32.mrb[0].mxu0
      %3056 = vdwg.mxu0
      %v3057 = vadd.f32 %v2687, %v2892
      %v3058 = vadd.f32 %v2688, %v2895
      %v3059 = vadd.f32 %v2689, %v2900
      %v3060 = vadd.f32 %v2690, %v2903
      %v3061 = vadd.f32 %v2691, %v2908
      %v3062 = vadd.f32 %v2692, %v2911
      %v3063 = vadd.f32 %v2693, %v2916
      %v3064 = vadd.f32 %v2694, %v2919
      %v3065 = vadd.f32 %v2695, %v2924
      %v3066 = vadd.f32 %v2696, %v2927
      %v3067 = vadd.f32 %v2697, %v2932
      %v3068 = vadd.f32 %v2698, %v2935
      %v3069 = vadd.f32 %v2699, %v2940
      %v3070 = vadd.f32 %v2700, %v2943
      %v3071 = vadd.f32 %v2701, %v2948
      %v3072 = vadd.f32 %v2702, %v2951
      %v3073 = vadd.f32 %v2703, %v2956
      %v3074 = vadd.f32 %v2704, %v2959
      %v3075 = vadd.f32 %v2705, %v2964
      %v3076 = vadd.f32 %v2706, %v2967
      %v3077 = vadd.f32 %v2707, %v2972
      %v3078 = vadd.f32 %v2708, %v2975
      %v3079 = vadd.f32 %v2709, %v2980
      %v3080 = vadd.f32 %v2710, %v2983
      %v3081 = vadd.f32 %v2711, %v2988
      %v3082 = vadd.f32 %v2712, %v2991
      %v3083 = vadd.f32 %v2713, %v2996
      %v3084 = vadd.f32 %v2714, %v2999
      %v3085 = vadd.f32 %v2715, %v3004
      %v3086 = vadd.f32 %v2716, %v3007
      %v3087 = vadd.f32 %v2717, %v3012
      %v3088 = vadd.f32 %v2718, %v3015
      %v3089 = vadd.f32 %v2719, %v3020
      %v3090 = vadd.f32 %v2720, %v3023
      %v3091 = vadd.f32 %v2721, %v3028
      %v3092 = vadd.f32 %v2722, %v3031
      %v3093 = vadd.f32 %v2723, %v3036
      %v3094 = vadd.f32 %v2724, %v3039
      %v3095 = vadd.f32 %v2725, %v3044
      %v3096 = vadd.f32 %v2726, %v3047
      %v3097 = vadd.f32 %v2727, %v3052
      %v3098 = vld [vmem:[%s210 + $0x33] sm:$0xff]
      %v3099 = vld [vmem:[%s210 + $0x3b] sm:$0xff]
      %v3100 = vld [vmem:[%s210 + $0x43] sm:$0xff]
      %v3101 = vld [vmem:[%s210 + $0x4b] sm:$0xff]
      %v3102 = vld [vmem:[%s210 + $0x53] sm:$0xff]
      %v3103 = vld [vmem:[%s210 + $0x5b] sm:$0xff]
      %v3104 = vld [vmem:[%s210 + $0x63] sm:$0xff]
      %v3105 = vld [vmem:[%s210 + $0x6b] sm:$0xff]
      %v3106 = vld [vmem:[%s210 + $0x73] sm:$0xff]
      %v3107 = vld [vmem:[%s210 + $0x7b] sm:$0xff]
      %v3108 = vld [vmem:[%s210 + $0x83] sm:$0xff]
      %v3109 = vld [vmem:[%s210 + $0x8b] sm:$0xff]
      %v3110 = vld [vmem:[%s210 + $0x93] sm:$0xff]
      %v3111 = vld [vmem:[%s210 + $0x9b] sm:$0xff]
      %v3112 = vld [vmem:[%s210 + $0xa3] sm:$0xff]
      %v3113 = vld [vmem:[%s210 + $0xab] sm:$0xff]
      %v3114 = vld [vmem:[%s210 + $0xb3] sm:$0xff]
      %v3115 = vld [vmem:[%s210 + $0xbb] sm:$0xff]
      %v3116 = vld [vmem:[%s210 + $0xc3] sm:$0xff]
      %v3117 = vld [vmem:[%s210 + $0xcb] sm:$0xff]
      %v3118 = vld [vmem:[%s210 + $0xd3] sm:$0xff]
      %v3119 = vld [vmem:[%s210 + $0xdb] sm:$0xff]
      %v3120 = vld [vmem:[%s210 + $0xe3] sm:$0xff]
      %v3121 = vld [vmem:[%s210 + $0xeb] sm:$0xff]
      %v3122 = vld [vmem:[%s210 + $0xf3] sm:$0xff]
      %v3123 = vld [vmem:[%s210 + $0xfb] sm:$0xff]
      %v3124 = vld [vmem:[%s210 + $0x103] sm:$0xff]
      %v3125 = vld [vmem:[%s210 + $0x10b] sm:$0xff]
      %v3126 = vld [vmem:[%s210 + $0x113] sm:$0xff]
      %v3127 = vld [vmem:[%s210 + $0x11b] sm:$0xff]
      %v3128 = vld [vmem:[%s210 + $0x123] sm:$0xff]
      %v3129 = vld [vmem:[%s210 + $0x12b] sm:$0xff]
      %v3130 = vld [vmem:[%s210 + $0x133] sm:$0xff]
      %v3131 = vld [vmem:[%s210 + $0x13b] sm:$0xff]
      %v3132 = vld [vmem:[%s210 + $0x143] sm:$0xff]
      %v3133 = vld [vmem:[%s210 + $0x14b] sm:$0xff]
      %v3134 = vld [vmem:[%s210 + $0x153] sm:$0xff]
      %v3135 = vld [vmem:[%s210 + $0x15b] sm:$0xff]
      %v3136 = vld [vmem:[%s210 + $0x163] sm:$0xff]
      %v3137 = vld [vmem:[%s210 + $0x16b] sm:$0xff]
      %v3138 = vld [vmem:[%s210 + $0x173] sm:$0xff]
      %v3139 = vpack.c.bf16 %v3099, %v3098
      %v3140 = vpack.c.bf16 %v3101, %v3100
      %v3141 = vpack.c.bf16 %v3103, %v3102
      %v3142 = vpack.c.bf16 %v3105, %v3104
      %v3143 = vpack.c.bf16 %v3107, %v3106
      %v3144 = vpack.c.bf16 %v3109, %v3108
      %v3145 = vpack.c.bf16 %v3111, %v3110
      %v3146 = vpack.c.bf16 %v3113, %v3112
      %v3147 = vpack.c.bf16 %v3115, %v3114
      %v3148 = vpack.c.bf16 %v3117, %v3116
      %v3149 = vpack.c.bf16 %v3119, %v3118
      %v3150 = vpack.c.bf16 %v3121, %v3120
      %v3151 = vpack.c.bf16 %v3123, %v3122
      %v3152 = vpack.c.bf16 %v3125, %v3124
      %v3153 = vpack.c.bf16 %v3127, %v3126
      %v3154 = vpack.c.bf16 %v3129, %v3128
      %v3155 = vpack.c.bf16 %v3131, %v3130
      %v3156 = vpack.c.bf16 %v3133, %v3132
      %v3157 = vpack.c.bf16 %v3135, %v3134
      %v3158 = vpack.c.bf16 %v3137, %v3136
      %v3159 = vpack.c.bf16 %v3138, %v3138
      %v3160 = vld [vmem:[%s2 + $0x20] sm:$0xf]
      %v3162 = vsel %vm344, %v3139, 0
      %v3165 = vsel %vm344, %v3140, 0
      %v3168 = vsel %vm344, %v3141, 0
      %v3171 = vsel %vm344, %v3142, 0
      %v3174 = vsel %vm344, %v3143, 0
      %v3177 = vsel %vm344, %v3144, 0
      %v3180 = vsel %vm344, %v3145, 0
      %v3183 = vsel %vm344, %v3146, 0
      %v3186 = vsel %vm344, %v3147, 0
      %v3189 = vsel %vm344, %v3148, 0
      %v3192 = vsel %vm344, %v3149, 0
      %v3195 = vsel %vm344, %v3150, 0
      %v3198 = vsel %vm344, %v3151, 0
      %v3201 = vsel %vm344, %v3152, 0
      %v3204 = vsel %vm344, %v3153, 0
      %v3207 = vsel %vm344, %v3154, 0
      %v3210 = vsel %vm344, %v3155, 0
      %v3213 = vsel %vm344, %v3156, 0
      %v3216 = vsel %vm344, %v3157, 0
      %v3219 = vsel %vm344, %v3158, 0
      %v3222 = vsel %vm344, %v3159, 0
      %v3225 = vsel %vm408, %v3160, 0
      %3227 = vmatprep.subr.bf16.mxu0 0
      %3228 = vmatpush1.bf16.msra.mxu0 %v3225
      %3229 = vmatprep.subr.bf16.mxu0 0
      %3230 = vmatpush1.bf16.msra.mxu0 0
      %3231 = vmatprep.subr.bf16.mxu0 0
      %3232 = vmatpush1.bf16.msra.mxu0 0
      %3233 = vmatprep.subr.bf16.mxu0 0
      %3234 = vmatpush1.bf16.msra.mxu0 0
      %3235 = vmatprep.subr.bf16.mxu0 0
      %3236 = vmatpush1.bf16.msra.mxu0 0
      %3237 = vmatprep.subr.bf16.mxu0 0
      %3238 = vmatpush1.bf16.msra.mxu0 0
      %3239 = vmatprep.subr.bf16.mxu0 0
      %3240 = vmatpush1.bf16.msra.mxu0 0
      %3241 = vmatprep.subr.bf16.mxu0 0
      %3242 = vmatpush1.bf16.msra.mxu0 0
      %3243 = vmatprep.subr.bf16.mxu0 0
      %3244 = vmatpush1.bf16.msra.mxu0 0
      %3245 = vmatprep.subr.bf16.mxu0 0
      %3246 = vmatpush1.bf16.msra.mxu0 0
      %3247 = vmatprep.subr.bf16.mxu0 0
      %3248 = vmatpush1.bf16.msra.mxu0 0
      %3249 = vmatprep.subr.bf16.mxu0 0
      %3250 = vmatpush1.bf16.msra.mxu0 0
      %3251 = vmatprep.subr.bf16.mxu0 0
      %3252 = vmatpush1.bf16.msra.mxu0 0
      %3253 = vmatprep.subr.bf16.mxu0 0
      %3254 = vmatpush1.bf16.msra.mxu0 0
      %3255 = vmatprep.subr.bf16.mxu0 0
      %3256 = vmatpush1.bf16.msra.mxu0 0
      %3257 = vmatprep.subr.bf16.mxu0 0
      %3258 = vmatpush1.bf16.msra.mxu0 0
      %3259 = vmatprep.mubr.bf16.mxu0 0
      %3260 = vmatmul.mubr.bf16.gmra.mrb[0].mxu0 %v3162
      %v3261 = vpop.f32.mrb[0].mxu0
      %v3262 = vadd.f32 0.0, %v3261
      %v3263 = vpop.f32.mrb[0].mxu0
      %v3264 = vpop.f32.mrb[0].mxu0
      %v3265 = vadd.f32 0.0, %v3264
      %v3266 = vpop.f32.mrb[0].mxu0
      %3267 = vmatprep.mubr.bf16.mxu0 0
      %3268 = vmatmul.mubr.bf16.gmra.mrb[0].mxu0 %v3165
      %v3269 = vpop.f32.mrb[0].mxu0
      %v3270 = vadd.f32 0.0, %v3269
      %v3271 = vpop.f32.mrb[0].mxu0
      %v3272 = vpop.f32.mrb[0].mxu0
      %v3273 = vadd.f32 0.0, %v3272
      %v3274 = vpop.f32.mrb[0].mxu0
      %3275 = vmatprep.mubr.bf16.mxu0 0
      %3276 = vmatmul.mubr.bf16.gmra.mrb[0].mxu0 %v3168
      %v3277 = vpop.f32.mrb[0].mxu0
      %v3278 = vadd.f32 0.0, %v3277
      %v3279 = vpop.f32.mrb[0].mxu0
      %v3280 = vpop.f32.mrb[0].mxu0
      %v3281 = vadd.f32 0.0, %v3280
      %v3282 = vpop.f32.mrb[0].mxu0
      %3283 = vmatprep.mubr.bf16.mxu0 0
      %3284 = vmatmul.mubr.bf16.gmra.mrb[0].mxu0 %v3171
      %v3285 = vpop.f32.mrb[0].mxu0
      %v3286 = vadd.f32 0.0, %v3285
      %v3287 = vpop.f32.mrb[0].mxu0
      %v3288 = vpop.f32.mrb[0].mxu0
      %v3289 = vadd.f32 0.0, %v3288
      %v3290 = vpop.f32.mrb[0].mxu0
      %3291 = vmatprep.mubr.bf16.mxu0 0
      %3292 = vmatmul.mubr.bf16.gmra.mrb[0].mxu0 %v3174
      %v3293 = vpop.f32.mrb[0].mxu0
      %v3294 = vadd.f32 0.0, %v3293
      %v3295 = vpop.f32.mrb[0].mxu0
      %v3296 = vpop.f32.mrb[0].mxu0
      %v3297 = vadd.f32 0.0, %v3296
      %v3298 = vpop.f32.mrb[0].mxu0
      %3299 = vmatprep.mubr.bf16.mxu0 0
      %3300 = vmatmul.mubr.bf16.gmra.mrb[0].mxu0 %v3177
      %v3301 = vpop.f32.mrb[0].mxu0
      %v3302 = vadd.f32 0.0, %v3301
      %v3303 = vpop.f32.mrb[0].mxu0
      %v3304 = vpop.f32.mrb[0].mxu0
      %v3305 = vadd.f32 0.0, %v3304
      %v3306 = vpop.f32.mrb[0].mxu0
      %3307 = vmatprep.mubr.bf16.mxu0 0
      %3308 = vmatmul.mubr.bf16.gmra.mrb[0].mxu0 %v3180
      %v3309 = vpop.f32.mrb[0].mxu0
      %v3310 = vadd.f32 0.0, %v3309
      %v3311 = vpop.f32.mrb[0].mxu0
      %v3312 = vpop.f32.mrb[0].mxu0
      %v3313 = vadd.f32 0.0, %v3312
      %v3314 = vpop.f32.mrb[0].mxu0
      %3315 = vmatprep.mubr.bf16.mxu0 0
      %3316 = vmatmul.mubr.bf16.gmra.mrb[0].mxu0 %v3183
      %v3317 = vpop.f32.mrb[0].mxu0
      %v3318 = vadd.f32 0.0, %v3317
      %v3319 = vpop.f32.mrb[0].mxu0
      %v3320 = vpop.f32.mrb[0].mxu0
      %v3321 = vadd.f32 0.0, %v3320
      %v3322 = vpop.f32.mrb[0].mxu0
      %3323 = vmatprep.mubr.bf16.mxu0 0
      %3324 = vmatmul.mubr.bf16.gmra.mrb[0].mxu0 %v3186
      %v3325 = vpop.f32.mrb[0].mxu0
      %v3326 = vadd.f32 0.0, %v3325
      %v3327 = vpop.f32.mrb[0].mxu0
      %v3328 = vpop.f32.mrb[0].mxu0
      %v3329 = vadd.f32 0.0, %v3328
      %v3330 = vpop.f32.mrb[0].mxu0
      %3331 = vmatprep.mubr.bf16.mxu0 0
      %3332 = vmatmul.mubr.bf16.gmra.mrb[0].mxu0 %v3189
      %v3333 = vpop.f32.mrb[0].mxu0
      %v3334 = vadd.f32 0.0, %v3333
      %v3335 = vpop.f32.mrb[0].mxu0
      %v3336 = vpop.f32.mrb[0].mxu0
      %v3337 = vadd.f32 0.0, %v3336
      %v3338 = vpop.f32.mrb[0].mxu0
      %3339 = vmatprep.mubr.bf16.mxu0 0
      %3340 = vmatmul.mubr.bf16.gmra.mrb[0].mxu0 %v3192
      %v3341 = vpop.f32.mrb[0].mxu0
      %v3342 = vadd.f32 0.0, %v3341
      %v3343 = vpop.f32.mrb[0].mxu0
      %v3344 = vpop.f32.mrb[0].mxu0
      %v3345 = vadd.f32 0.0, %v3344
      %v3346 = vpop.f32.mrb[0].mxu0
      %3347 = vmatprep.mubr.bf16.mxu0 0
      %3348 = vmatmul.mubr.bf16.gmra.mrb[0].mxu0 %v3195
      %v3349 = vpop.f32.mrb[0].mxu0
      %v3350 = vadd.f32 0.0, %v3349
      %v3351 = vpop.f32.mrb[0].mxu0
      %v3352 = vpop.f32.mrb[0].mxu0
      %v3353 = vadd.f32 0.0, %v3352
      %v3354 = vpop.f32.mrb[0].mxu0
      %3355 = vmatprep.mubr.bf16.mxu0 0
      %3356 = vmatmul.mubr.bf16.gmra.mrb[0].mxu0 %v3198
      %v3357 = vpop.f32.mrb[0].mxu0
      %v3358 = vadd.f32 0.0, %v3357
      %v3359 = vpop.f32.mrb[0].mxu0
      %v3360 = vpop.f32.mrb[0].mxu0
      %v3361 = vadd.f32 0.0, %v3360
      %v3362 = vpop.f32.mrb[0].mxu0
      %3363 = vmatprep.mubr.bf16.mxu0 0
      %3364 = vmatmul.mubr.bf16.gmra.mrb[0].mxu0 %v3201
      %v3365 = vpop.f32.mrb[0].mxu0
      %v3366 = vadd.f32 0.0, %v3365
      %v3367 = vpop.f32.mrb[0].mxu0
      %v3368 = vpop.f32.mrb[0].mxu0
      %v3369 = vadd.f32 0.0, %v3368
      %v3370 = vpop.f32.mrb[0].mxu0
      %3371 = vmatprep.mubr.bf16.mxu0 0
      %3372 = vmatmul.mubr.bf16.gmra.mrb[0].mxu0 %v3204
      %v3373 = vpop.f32.mrb[0].mxu0
      %v3374 = vadd.f32 0.0, %v3373
      %v3375 = vpop.f32.mrb[0].mxu0
      %v3376 = vpop.f32.mrb[0].mxu0
      %v3377 = vadd.f32 0.0, %v3376
      %v3378 = vpop.f32.mrb[0].mxu0
      %3379 = vmatprep.mubr.bf16.mxu0 0
      %3380 = vmatmul.mubr.bf16.gmra.mrb[0].mxu0 %v3207
      %v3381 = vpop.f32.mrb[0].mxu0
      %v3382 = vadd.f32 0.0, %v3381
      %v3383 = vpop.f32.mrb[0].mxu0
      %v3384 = vpop.f32.mrb[0].mxu0
      %v3385 = vadd.f32 0.0, %v3384
      %v3386 = vpop.f32.mrb[0].mxu0
      %3387 = vmatprep.mubr.bf16.mxu0 0
      %3388 = vmatmul.mubr.bf16.gmra.mrb[0].mxu0 %v3210
      %v3389 = vpop.f32.mrb[0].mxu0
      %v3390 = vadd.f32 0.0, %v3389
      %v3391 = vpop.f32.mrb[0].mxu0
      %v3392 = vpop.f32.mrb[0].mxu0
      %v3393 = vadd.f32 0.0, %v3392
      %v3394 = vpop.f32.mrb[0].mxu0
      %3395 = vmatprep.mubr.bf16.mxu0 0
      %3396 = vmatmul.mubr.bf16.gmra.mrb[0].mxu0 %v3213
      %v3397 = vpop.f32.mrb[0].mxu0
      %v3398 = vadd.f32 0.0, %v3397
      %v3399 = vpop.f32.mrb[0].mxu0
      %v3400 = vpop.f32.mrb[0].mxu0
      %v3401 = vadd.f32 0.0, %v3400
      %v3402 = vpop.f32.mrb[0].mxu0
      %3403 = vmatprep.mubr.bf16.mxu0 0
      %3404 = vmatmul.mubr.bf16.gmra.mrb[0].mxu0 %v3216
      %v3405 = vpop.f32.mrb[0].mxu0
      %v3406 = vadd.f32 0.0, %v3405
      %v3407 = vpop.f32.mrb[0].mxu0
      %v3408 = vpop.f32.mrb[0].mxu0
      %v3409 = vadd.f32 0.0, %v3408
      %v3410 = vpop.f32.mrb[0].mxu0
      %3411 = vmatprep.mubr.bf16.mxu0 0
      %3412 = vmatmul.mubr.bf16.gmra.mrb[0].mxu0 %v3219
      %v3413 = vpop.f32.mrb[0].mxu0
      %v3414 = vadd.f32 0.0, %v3413
      %v3415 = vpop.f32.mrb[0].mxu0
      %v3416 = vpop.f32.mrb[0].mxu0
      %v3417 = vadd.f32 0.0, %v3416
      %v3418 = vpop.f32.mrb[0].mxu0
      %3419 = vmatprep.mubr.bf16.mxu0 0
      %3420 = vmatmul.mubr.bf16.gmra.mrb[0].mxu0 %v3222
      %v3421 = vpop.f32.mrb[0].mxu0
      %v3422 = vadd.f32 0.0, %v3421
      %v3423 = vpop.f32.mrb[0].mxu0
      %v3424 = vpop.f32.mrb[0].mxu0
      %v3425 = vpop.f32.mrb[0].mxu0
      %3426 = vdwg.mxu0
      %v3427 = vadd.f32 %v3057, %v3262
      %v3428 = vadd.f32 %v3058, %v3265
      %v3429 = vadd.f32 %v3059, %v3270
      %v3430 = vadd.f32 %v3060, %v3273
      %v3431 = vadd.f32 %v3061, %v3278
      %v3432 = vadd.f32 %v3062, %v3281
      %v3433 = vadd.f32 %v3063, %v3286
      %v3434 = vadd.f32 %v3064, %v3289
      %v3435 = vadd.f32 %v3065, %v3294
      %v3436 = vadd.f32 %v3066, %v3297
      %v3437 = vadd.f32 %v3067, %v3302
      %v3438 = vadd.f32 %v3068, %v3305
      %v3439 = vadd.f32 %v3069, %v3310
      %v3440 = vadd.f32 %v3070, %v3313
      %v3441 = vadd.f32 %v3071, %v3318
      %v3442 = vadd.f32 %v3072, %v3321
      %v3443 = vadd.f32 %v3073, %v3326
      %v3444 = vadd.f32 %v3074, %v3329
      %v3445 = vadd.f32 %v3075, %v3334
      %v3446 = vadd.f32 %v3076, %v3337
      %v3447 = vadd.f32 %v3077, %v3342
      %v3448 = vadd.f32 %v3078, %v3345
      %v3449 = vadd.f32 %v3079, %v3350
      %v3450 = vadd.f32 %v3080, %v3353
      %v3451 = vadd.f32 %v3081, %v3358
      %v3452 = vadd.f32 %v3082, %v3361
      %v3453 = vadd.f32 %v3083, %v3366
      %v3454 = vadd.f32 %v3084, %v3369
      %v3455 = vadd.f32 %v3085, %v3374
      %v3456 = vadd.f32 %v3086, %v3377
      %v3457 = vadd.f32 %v3087, %v3382
      %v3458 = vadd.f32 %v3088, %v3385
      %v3459 = vadd.f32 %v3089, %v3390
      %v3460 = vadd.f32 %v3090, %v3393
      %v3461 = vadd.f32 %v3091, %v3398
      %v3462 = vadd.f32 %v3092, %v3401
      %v3463 = vadd.f32 %v3093, %v3406
      %v3464 = vadd.f32 %v3094, %v3409
      %v3465 = vadd.f32 %v3095, %v3414
      %v3466 = vadd.f32 %v3096, %v3417
      %v3467 = vadd.f32 %v3097, %v3422
      %v3468 = vmax.f32 %v3427, 0.0
      %v3469 = vmax.f32 %v3428, 0.0
      %v3470 = vmax.f32 %v3429, 0.0
      %v3471 = vmax.f32 %v3430, 0.0
      %v3472 = vmax.f32 %v3431, 0.0
      %v3473 = vmax.f32 %v3432, 0.0
      %v3474 = vmax.f32 %v3433, 0.0
      %v3475 = vmax.f32 %v3434, 0.0
      %v3476 = vmax.f32 %v3435, 0.0
      %v3477 = vmax.f32 %v3436, 0.0
      %v3478 = vmax.f32 %v3437, 0.0
      %v3479 = vmax.f32 %v3438, 0.0
      %v3480 = vmax.f32 %v3439, 0.0
      %v3481 = vmax.f32 %v3440, 0.0
      %v3482 = vmax.f32 %v3441, 0.0
      %v3483 = vmax.f32 %v3442, 0.0
      %v3484 = vmax.f32 %v3443, 0.0
      %v3485 = vmax.f32 %v3444, 0.0
      %v3486 = vmax.f32 %v3445, 0.0
      %v3487 = vmax.f32 %v3446, 0.0
      %v3488 = vmax.f32 %v3447, 0.0
      %v3489 = vmax.f32 %v3448, 0.0
      %v3490 = vmax.f32 %v3449, 0.0
      %v3491 = vmax.f32 %v3450, 0.0
      %v3492 = vmax.f32 %v3451, 0.0
      %v3493 = vmax.f32 %v3452, 0.0
      %v3494 = vmax.f32 %v3453, 0.0
      %v3495 = vmax.f32 %v3454, 0.0
      %v3496 = vmax.f32 %v3455, 0.0
      %v3497 = vmax.f32 %v3456, 0.0
      %v3498 = vmax.f32 %v3457, 0.0
      %v3499 = vmax.f32 %v3458, 0.0
      %v3500 = vmax.f32 %v3459, 0.0
      %v3501 = vmax.f32 %v3460, 0.0
      %v3502 = vmax.f32 %v3461, 0.0
      %v3503 = vmax.f32 %v3462, 0.0
      %v3504 = vmax.f32 %v3463, 0.0
      %v3505 = vmax.f32 %v3464, 0.0
      %v3506 = vmax.f32 %v3465, 0.0
      %v3507 = vmax.f32 %v3466, 0.0
      %v3508 = vmax.f32 %v3467, 0.0
      %v3509 = vld [vmem:[%s1] sm:$0xff]
      %v3510 = vld [vmem:[%s1 + $0x8] sm:$0xff]
      %v3511 = vld [vmem:[%s1 + $0x10] sm:$0xff]
      %v3512 = vld [vmem:[%s1 + $0x18] sm:$0xff]
      %v3513 = vld [vmem:[%s1 + $0x20] sm:$0xff]
      %v3514 = vld [vmem:[%s1 + $0x28] sm:$0xff]
      %v3515 = vld [vmem:[%s1 + $0x30] sm:$0xff]
      %v3516 = vld [vmem:[%s1 + $0x38] sm:$0xff]
      %v3517 = vld [vmem:[%s1 + $0x40] sm:$0xff]
      %v3518 = vld [vmem:[%s1 + $0x48] sm:$0xff]
      %v3519 = vld [vmem:[%s1 + $0x50] sm:$0xff]
      %v3520 = vld [vmem:[%s1 + $0x58] sm:$0xff]
      %v3521 = vld [vmem:[%s1 + $0x60] sm:$0xff]
      %v3522 = vld [vmem:[%s1 + $0x68] sm:$0xff]
      %v3523 = vld [vmem:[%s1 + $0x70] sm:$0xff]
      %v3524 = vld [vmem:[%s1 + $0x78] sm:$0xff]
      %v3525 = vld [vmem:[%s1 + $0x80] sm:$0xff]
      %v3526 = vld [vmem:[%s1 + $0x88] sm:$0xff]
      %v3527 = vld [vmem:[%s1 + $0x90] sm:$0xff]
      %v3528 = vld [vmem:[%s1 + $0x98] sm:$0xff]
      %v3529 = vld [vmem:[%s1 + $0xa0] sm:$0xff]
      %v3530 = vld [vmem:[%s1 + $0xa8] sm:$0xff]
      %v3531 = vld [vmem:[%s1 + $0xb0] sm:$0xff]
      %v3532 = vld [vmem:[%s1 + $0xb8] sm:$0xff]
      %v3533 = vld [vmem:[%s1 + $0xc0] sm:$0xff]
      %v3534 = vld [vmem:[%s1 + $0xc8] sm:$0xff]
      %v3535 = vld [vmem:[%s1 + $0xd0] sm:$0xff]
      %v3536 = vld [vmem:[%s1 + $0xd8] sm:$0xff]
      %v3537 = vld [vmem:[%s1 + $0xe0] sm:$0xff]
      %v3538 = vld [vmem:[%s1 + $0xe8] sm:$0xff]
      %v3539 = vld [vmem:[%s1 + $0xf0] sm:$0xff]
      %v3540 = vld [vmem:[%s1 + $0xf8] sm:$0xff]
      %v3541 = vld [vmem:[%s1 + $0x100] sm:$0xff]
      %v3542 = vld [vmem:[%s1 + $0x108] sm:$0xff]
      %v3543 = vld [vmem:[%s1 + $0x110] sm:$0xff]
      %v3544 = vld [vmem:[%s1 + $0x118] sm:$0xff]
      %v3545 = vld [vmem:[%s1 + $0x120] sm:$0xff]
      %v3546 = vld [vmem:[%s1 + $0x128] sm:$0xff]
      %v3547 = vld [vmem:[%s1 + $0x130] sm:$0xff]
      %v3548 = vld [vmem:[%s1 + $0x138] sm:$0xff]
      %v3549 = vld [vmem:[%s1 + $0x140] sm:$0xff]
      %3551 = vset.pattern.permute.xlu0 0
      %3552 = vperm.xlu0 %3551, %v3509
      %v3553 = vpop.permute.xlu0 %3552
      %3556 = vset.pattern.permute.xlu0 0
      %3557 = vperm.xlu0 %3556, %v3510
      %v3558 = vpop.permute.xlu0 %3557
      %3561 = vset.pattern.permute.xlu0 0
      %3562 = vperm.xlu0 %3561, %v3511
      %v3563 = vpop.permute.xlu0 %3562
      %3566 = vset.pattern.permute.xlu0 0
      %3567 = vperm.xlu0 %3566, %v3512
      %v3568 = vpop.permute.xlu0 %3567
      %3571 = vset.pattern.permute.xlu0 0
      %3572 = vperm.xlu0 %3571, %v3513
      %v3573 = vpop.permute.xlu0 %3572
      %3576 = vset.pattern.permute.xlu0 0
      %3577 = vperm.xlu0 %3576, %v3514
      %v3578 = vpop.permute.xlu0 %3577
      %3581 = vset.pattern.permute.xlu0 0
      %3582 = vperm.xlu0 %3581, %v3515
      %v3583 = vpop.permute.xlu0 %3582
      %3586 = vset.pattern.permute.xlu0 0
      %3587 = vperm.xlu0 %3586, %v3516
      %v3588 = vpop.permute.xlu0 %3587
      %3591 = vset.pattern.permute.xlu0 0
      %3592 = vperm.xlu0 %3591, %v3517
      %v3593 = vpop.permute.xlu0 %3592
      %3596 = vset.pattern.permute.xlu0 0
      %3597 = vperm.xlu0 %3596, %v3518
      %v3598 = vpop.permute.xlu0 %3597
      %3601 = vset.pattern.permute.xlu0 0
      %3602 = vperm.xlu0 %3601, %v3519
      %v3603 = vpop.permute.xlu0 %3602
      %3606 = vset.pattern.permute.xlu0 0
      %3607 = vperm.xlu0 %3606, %v3520
      %v3608 = vpop.permute.xlu0 %3607
      %3611 = vset.pattern.permute.xlu0 0
      %3612 = vperm.xlu0 %3611, %v3521
      %v3613 = vpop.permute.xlu0 %3612
      %3616 = vset.pattern.permute.xlu0 0
      %3617 = vperm.xlu0 %3616, %v3522
      %v3618 = vpop.permute.xlu0 %3617
      %3621 = vset.pattern.permute.xlu0 0
      %3622 = vperm.xlu0 %3621, %v3523
      %v3623 = vpop.permute.xlu0 %3622
      %3626 = vset.pattern.permute.xlu0 0
      %3627 = vperm.xlu0 %3626, %v3524
      %v3628 = vpop.permute.xlu0 %3627
      %3631 = vset.pattern.permute.xlu0 0
      %3632 = vperm.xlu0 %3631, %v3525
      %v3633 = vpop.permute.xlu0 %3632
      %3636 = vset.pattern.permute.xlu0 0
      %3637 = vperm.xlu0 %3636, %v3526
      %v3638 = vpop.permute.xlu0 %3637
      %3641 = vset.pattern.permute.xlu0 0
      %3642 = vperm.xlu0 %3641, %v3527
      %v3643 = vpop.permute.xlu0 %3642
      %3646 = vset.pattern.permute.xlu0 0
      %3647 = vperm.xlu0 %3646, %v3528
      %v3648 = vpop.permute.xlu0 %3647
      %3651 = vset.pattern.permute.xlu0 0
      %3652 = vperm.xlu0 %3651, %v3529
      %v3653 = vpop.permute.xlu0 %3652
      %3656 = vset.pattern.permute.xlu0 0
      %3657 = vperm.xlu0 %3656, %v3530
      %v3658 = vpop.permute.xlu0 %3657
      %3661 = vset.pattern.permute.xlu0 0
      %3662 = vperm.xlu0 %3661, %v3531
      %v3663 = vpop.permute.xlu0 %3662
      %3666 = vset.pattern.permute.xlu0 0
      %3667 = vperm.xlu0 %3666, %v3532
      %v3668 = vpop.permute.xlu0 %3667
      %3671 = vset.pattern.permute.xlu0 0
      %3672 = vperm.xlu0 %3671, %v3533
      %v3673 = vpop.permute.xlu0 %3672
      %3676 = vset.pattern.permute.xlu0 0
      %3677 = vperm.xlu0 %3676, %v3534
      %v3678 = vpop.permute.xlu0 %3677
      %3681 = vset.pattern.permute.xlu0 0
      %3682 = vperm.xlu0 %3681, %v3535
      %v3683 = vpop.permute.xlu0 %3682
      %3686 = vset.pattern.permute.xlu0 0
      %3687 = vperm.xlu0 %3686, %v3536
      %v3688 = vpop.permute.xlu0 %3687
      %3691 = vset.pattern.permute.xlu0 0
      %3692 = vperm.xlu0 %3691, %v3537
      %v3693 = vpop.permute.xlu0 %3692
      %3696 = vset.pattern.permute.xlu0 0
      %3697 = vperm.xlu0 %3696, %v3538
      %v3698 = vpop.permute.xlu0 %3697
      %3701 = vset.pattern.permute.xlu0 0
      %3702 = vperm.xlu0 %3701, %v3539
      %v3703 = vpop.permute.xlu0 %3702
      %3706 = vset.pattern.permute.xlu0 0
      %3707 = vperm.xlu0 %3706, %v3540
      %v3708 = vpop.permute.xlu0 %3707
      %3711 = vset.pattern.permute.xlu0 0
      %3712 = vperm.xlu0 %3711, %v3541
      %v3713 = vpop.permute.xlu0 %3712
      %3716 = vset.pattern.permute.xlu0 0
      %3717 = vperm.xlu0 %3716, %v3542
      %v3718 = vpop.permute.xlu0 %3717
      %3721 = vset.pattern.permute.xlu0 0
      %3722 = vperm.xlu0 %3721, %v3543
      %v3723 = vpop.permute.xlu0 %3722
      %3726 = vset.pattern.permute.xlu0 0
      %3727 = vperm.xlu0 %3726, %v3544
      %v3728 = vpop.permute.xlu0 %3727
      %3731 = vset.pattern.permute.xlu0 0
      %3732 = vperm.xlu0 %3731, %v3545
      %v3733 = vpop.permute.xlu0 %3732
      %3736 = vset.pattern.permute.xlu0 0
      %3737 = vperm.xlu0 %3736, %v3546
      %v3738 = vpop.permute.xlu0 %3737
      %3741 = vset.pattern.permute.xlu0 0
      %3742 = vperm.xlu0 %3741, %v3547
      %v3743 = vpop.permute.xlu0 %3742
      %3746 = vset.pattern.permute.xlu0 0
      %3747 = vperm.xlu0 %3746, %v3548
      %v3748 = vpop.permute.xlu0 %3747
      %3751 = vset.pattern.permute.xlu0 0
      %3752 = vperm.xlu0 %3751, %v3549
      %v3753 = vpop.permute.xlu0 %3752
      %v3755 = vmul.f32 %v3468, %v3553
      %v3756 = vmul.f32 %v3469, %v3558
      %v3757 = vmul.f32 %v3470, %v3563
      %v3758 = vmul.f32 %v3471, %v3568
      %v3759 = vmul.f32 %v3472, %v3573
      %v3760 = vmul.f32 %v3473, %v3578
      %v3761 = vmul.f32 %v3474, %v3583
      %v3762 = vmul.f32 %v3475, %v3588
      %v3763 = vmul.f32 %v3476, %v3593
      %v3764 = vmul.f32 %v3477, %v3598
      %v3765 = vmul.f32 %v3478, %v3603
      %v3766 = vmul.f32 %v3479, %v3608
      %v3767 = vmul.f32 %v3480, %v3613
      %v3768 = vmul.f32 %v3481, %v3618
      %v3769 = vmul.f32 %v3482, %v3623
      %v3770 = vmul.f32 %v3483, %v3628
      %v3771 = vmul.f32 %v3484, %v3633
      %v3772 = vmul.f32 %v3485, %v3638
      %v3773 = vmul.f32 %v3486, %v3643
      %v3774 = vmul.f32 %v3487, %v3648
      %v3775 = vmul.f32 %v3488, %v3653
      %v3776 = vmul.f32 %v3489, %v3658
      %v3777 = vmul.f32 %v3490, %v3663
      %v3778 = vmul.f32 %v3491, %v3668
      %v3779 = vmul.f32 %v3492, %v3673
      %v3780 = vmul.f32 %v3493, %v3678
      %v3781 = vmul.f32 %v3494, %v3683
      %v3782 = vmul.f32 %v3495, %v3688
      %v3783 = vmul.f32 %v3496, %v3693
      %v3784 = vmul.f32 %v3497, %v3698
      %v3785 = vmul.f32 %v3498, %v3703
      %v3786 = vmul.f32 %v3499, %v3708
      %v3787 = vmul.f32 %v3500, %v3713
      %v3788 = vmul.f32 %v3501, %v3718
      %v3789 = vmul.f32 %v3502, %v3723
      %v3790 = vmul.f32 %v3503, %v3728
      %v3791 = vmul.f32 %v3504, %v3733
      %v3792 = vmul.f32 %v3505, %v3738
      %v3793 = vmul.f32 %v3506, %v3743
      %v3794 = vmul.f32 %v3507, %v3748
      %v3795 = vmul.f32 %v3508, %v3753
      %v3796 = vadd.f32 %v3755, %v3756
      %v3797 = vadd.f32 %v3796, %v3757
      %v3798 = vadd.f32 %v3797, %v3758
      %v3799 = vadd.f32 %v3798, %v3759
      %v3800 = vadd.f32 %v3799, %v3760
      %v3801 = vadd.f32 %v3800, %v3761
      %v3802 = vadd.f32 %v3801, %v3762
      %v3803 = vadd.f32 %v3802, %v3763
      %v3804 = vadd.f32 %v3803, %v3764
      %v3805 = vadd.f32 %v3804, %v3765
      %v3806 = vadd.f32 %v3805, %v3766
      %v3807 = vadd.f32 %v3806, %v3767
      %v3808 = vadd.f32 %v3807, %v3768
      %v3809 = vadd.f32 %v3808, %v3769
      %v3810 = vadd.f32 %v3809, %v3770
      %v3811 = vadd.f32 %v3810, %v3771
      %v3812 = vadd.f32 %v3811, %v3772
      %v3813 = vadd.f32 %v3812, %v3773
      %v3814 = vadd.f32 %v3813, %v3774
      %v3815 = vadd.f32 %v3814, %v3775
      %v3816 = vadd.f32 %v3815, %v3776
      %v3817 = vadd.f32 %v3816, %v3777
      %v3818 = vadd.f32 %v3817, %v3778
      %v3819 = vadd.f32 %v3818, %v3779
      %v3820 = vadd.f32 %v3819, %v3780
      %v3821 = vadd.f32 %v3820, %v3781
      %v3822 = vadd.f32 %v3821, %v3782
      %v3823 = vadd.f32 %v3822, %v3783
      %v3824 = vadd.f32 %v3823, %v3784
      %v3825 = vadd.f32 %v3824, %v3785
      %v3826 = vadd.f32 %v3825, %v3786
      %v3827 = vadd.f32 %v3826, %v3787
      %v3828 = vadd.f32 %v3827, %v3788
      %v3829 = vadd.f32 %v3828, %v3789
      %v3830 = vadd.f32 %v3829, %v3790
      %v3831 = vadd.f32 %v3830, %v3791
      %v3832 = vadd.f32 %v3831, %v3792
      %v3833 = vadd.f32 %v3832, %v3793
      %v3834 = vadd.f32 %v3833, %v3794
      %v3835 = vadd.f32 %v3834, %v3795
      %v3836 = vrot.slane %v3835, 4
      %v3837 = vadd.f32 %v3835, %v3836
      %v3838 = vrot.slane %v3837, 2
      %v3839 = vadd.f32 %v3837, %v3838
      %v3840 = vrot.slane %v3839, 1
      %v3841 = vadd.f32 %v3839, %v3840
      %s3842 = scalar_lea.vmem [#allocation2], %s16
      %3843 = vst [vmem:[%s3842] sm:$0x1] %v3841
      %p3844 = scmp.eq.s32.totalorder %s16, 1
      // Predicated region
      $region45: #{encoder_cnn_forward.1} parent=39 // pred_check
        %p3845 = pneg %p3844
      $region46: #{encoder_cnn_forward.1} parent=39 // pred_check_branch
        %3847 = sbr.rel (%p3845) target = $region48
      $region47: #{encoder_cnn_forward.1} parent=39 // pred_region
        %v3848 = vld [vmem:[#allocation2] sm:$0xff]
        %v3849 = vpack.c.bf16 %v3848, %v3848
        %v3850 = vld [vmem:[%s3] sm:$0xf]
        %v3851 = vld [vmem:[%s3 + $0x4] sm:$0xf]
        %v3852 = vld [vmem:[%s3 + $0x8] sm:$0xf]
        %v3853 = vld [vmem:[%s3 + $0xc] sm:$0xf]
        %v3854 = vld [vmem:[%s3 + $0x10] sm:$0xf]
        %v3855 = vld [vmem:[%s3 + $0x14] sm:$0xf]
        %v3856 = vld [vmem:[%s3 + $0x18] sm:$0xf]
        %v3857 = vld [vmem:[%s3 + $0x1c] sm:$0xf]
        %v3858 = vld [vmem:[%s3 + $0x20] sm:$0xf]
        %v3859 = vld [vmem:[%s3 + $0x24] sm:$0xf]
        %v3860 = vld [vmem:[%s3 + $0x28] sm:$0xf]
        %v3861 = vld [vmem:[%s3 + $0x2c] sm:$0xf]
        %v3862 = vld [vmem:[%s3 + $0x30] sm:$0xf]
        %v3863 = vld [vmem:[%s3 + $0x34] sm:$0xf]
        %v3864 = vld [vmem:[%s3 + $0x38] sm:$0xf]
        %v3865 = vld [vmem:[%s3 + $0x3c] sm:$0xf]
        %v3866 = vld [vmem:[%s4] sm:$0x1]
        %v3867 = vlaneseq
        %v3868 = vshrl.u32 %v3867, 7
        %v3869 = vsub.s32 0, %v3868
        %v3870 = vrot.slane %v3866, %v3869
        %v3887 = vunpack.c.l.b16 %v3850
        %v3888 = vunpack.c.l.b16 %v3851
        %v3889 = vunpack.c.l.b16 %v3852
        %v3890 = vunpack.c.l.b16 %v3853
        %v3891 = vunpack.c.l.b16 %v3854
        %v3892 = vunpack.c.l.b16 %v3855
        %v3893 = vunpack.c.l.b16 %v3856
        %v3894 = vunpack.c.l.b16 %v3857
        %v3895 = vunpack.c.l.b16 %v3858
        %v3896 = vunpack.c.l.b16 %v3859
        %v3897 = vunpack.c.l.b16 %v3860
        %v3898 = vunpack.c.l.b16 %v3861
        %v3899 = vunpack.c.l.b16 %v3862
        %v3900 = vunpack.c.l.b16 %v3863
        %v3901 = vunpack.c.l.b16 %v3864
        %v3902 = vunpack.c.l.b16 %v3865
        %v3903 = vpack.c.b16 %v3888, %v3887
        %v3904 = vpack.c.b16 %v3890, %v3889
        %v3905 = vpack.c.b16 %v3892, %v3891
        %v3906 = vpack.c.b16 %v3894, %v3893
        %v3907 = vpack.c.b16 %v3896, %v3895
        %v3908 = vpack.c.b16 %v3898, %v3897
        %v3909 = vpack.c.b16 %v3900, %v3899
        %v3910 = vpack.c.b16 %v3902, %v3901
        %3919 = vmatprep.subr.bf16.mxu0 0
        %3920 = vmatpush1.bf16.msra.mxu0 %v3903
        %3921 = vmatprep.subr.bf16.mxu0 0
        %3922 = vmatpush1.bf16.msra.mxu0 %v3904
        %3923 = vmatprep.subr.bf16.mxu0 0
        %3924 = vmatpush1.bf16.msra.mxu0 %v3905
        %3925 = vmatprep.subr.bf16.mxu0 0
        %3926 = vmatpush1.bf16.msra.mxu0 %v3906
        %3927 = vmatprep.subr.bf16.mxu0 0
        %3928 = vmatpush1.bf16.msra.mxu0 %v3907
        %3929 = vmatprep.subr.bf16.mxu0 0
        %3930 = vmatpush1.bf16.msra.mxu0 %v3908
        %3931 = vmatprep.subr.bf16.mxu0 0
        %3932 = vmatpush1.bf16.msra.mxu0 %v3909
        %3933 = vmatprep.subr.bf16.mxu0 0
        %3934 = vmatpush1.bf16.msra.mxu0 %v3910
        %3935 = vmatprep.subr.bf16.mxu0 0
        %3936 = vmatpush1.bf16.msra.mxu0 0
        %3937 = vmatprep.subr.bf16.mxu0 0
        %3938 = vmatpush1.bf16.msra.mxu0 0
        %3939 = vmatprep.subr.bf16.mxu0 0
        %3940 = vmatpush1.bf16.msra.mxu0 0
        %3941 = vmatprep.subr.bf16.mxu0 0
        %3942 = vmatpush1.bf16.msra.mxu0 0
        %3943 = vmatprep.subr.bf16.mxu0 0
        %3944 = vmatpush1.bf16.msra.mxu0 0
        %3945 = vmatprep.subr.bf16.mxu0 0
        %3946 = vmatpush1.bf16.msra.mxu0 0
        %3947 = vmatprep.subr.bf16.mxu0 0
        %3948 = vmatpush1.bf16.msra.mxu0 0
        %3949 = vmatprep.subr.bf16.mxu0 0
        %3950 = vmatpush1.bf16.msra.mxu0 0
        %3951 = vmatprep.mubr.bf16.mxu0 0
        %3952 = vmatmul.mubr.bf16.gmra.mrb[0].mxu0 %v3849
        %v3953 = vpop.f32.mrb[0].mxu0
        %v3954 = vadd.f32 %v3870, %v3953
        %v3955 = vpop.f32.mrb[0].mxu0
        %v3956 = vpop.f32.mrb[0].mxu0
        %v3957 = vpop.f32.mrb[0].mxu0
        %3958 = vdwg.mxu0
        %v3959 = vlaneseq
        %v3960 = vshrl.u32 %v3959, 7
        %vm3961 = vcmp.lt.s32.totalorder %v3960, 2
        %v3962 = vsel %vm3961, 1, 0
        %v3963 = vcvt.s32.f32 %v3962
        %v3964 = vmul.f32 %v3954, %v3963
        %v3965 = vrot.slane %v3964, 4
        %v3966 = vadd.f32 %v3964, %v3965
        %v3967 = vrot.slane %v3966, 2
        %v3968 = vadd.f32 %v3966, %v3967
        %v3969 = vrot.slane %v3968, 1
        %v3970 = vadd.f32 %v3968, %v3969
        %v3971 = vmul.f32 %v3970, 0.5
        %v3972 = vsub.f32 %v3954, %v3971
        %v3973 = vmul.f32 %v3972, %v3972
        %v3974 = vmul.f32 %v3973, %v3963
        %v3975 = vrot.slane %v3974, 4
        %v3976 = vadd.f32 %v3974, %v3975
        %v3977 = vrot.slane %v3976, 2
        %v3978 = vadd.f32 %v3976, %v3977
        %v3979 = vrot.slane %v3978, 1
        %v3980 = vadd.f32 %v3978, %v3979
        %v3981 = vmul.f32 %v3980, 0.5
        %v3982 = vld [vmem:[%s4 + $0x1] sm:$0x1]
        %v3983 = vlaneseq
        %v3984 = vshrl.u32 %v3983, 7
        %v3985 = vsub.s32 0, %v3984
        %v3986 = vrot.slane %v3982, %v3985
        %v3987 = vmul.f32 %v3986, %v3972
        %v3988 = vadd.f32 %v3981, 1e-05
        %v3989 = vrsqrt.pop %v3988
        %v3990 = vmul.f32 %v3987, %v3989
        %v3991 = vld [vmem:[%s4 + $0x2] sm:$0x1]
        %v3992 = vlaneseq
        %v3993 = vshrl.u32 %v3992, 7
        %v3994 = vsub.s32 0, %v3993
        %v3995 = vrot.slane %v3991, %v3994
        %v3996 = vadd.f32 %v3990, %v3995
        %v3997 = vmul.f32 %v3996, %v3963
        %3998 = vst [vmem:[%s5] sm:$0xff] %v3997
      $region48: #{encoder_cnn_forward.1} parent=39 // pred_fallthru
        _
      // Predicated region
      $region49: #{encoder_cnn_forward.1} parent=39 // pred_check
        %p3999 = pneg %p139
      $region50: #{encoder_cnn_forward.1} parent=39 // pred_check_branch
        %4001 = sbr.rel (%p3999) target = $region52
      $region51: #{encoder_cnn_forward.1} parent=39 // pred_region
        _
      $region52: #{encoder_cnn_forward.1} parent=39 // pred_fallthru
        _
      // Predicated region
      $region53: #{encoder_cnn_forward.1} parent=39 // pred_check
        %p4002 = pneg %p139
      $region54: #{encoder_cnn_forward.1} parent=39 // pred_check_branch
        %4004 = sbr.rel (%p4002) target = $region56
      $region55: #{encoder_cnn_forward.1} parent=39 // pred_region
        _
      $region56: #{encoder_cnn_forward.1} parent=39 // pred_fallthru
        _
    $region40: #{encoder_cnn_forward.1} parent=5 // pred_fallthru
      _
    %p4005 = scmp.le.s32.totalorder 2, %s11
    // Predicated region
    $region57: #{encoder_cnn_forward.1} parent=5 // pred_check
      %p4006 = pneg %p4005
    $region58: #{encoder_cnn_forward.1} parent=5 // pred_check_branch
      %4008 = sbr.rel (%p4006) target = $region60
    $region59: #{encoder_cnn_forward.1} parent=5 // pred_region
      %s4009 = ssub.s32 %s11, 2
    $region60: #{encoder_cnn_forward.1} parent=5 // pred_fallthru
      _
  $region6: #{encoder_cnn_forward.1} parent=0 // loop_footer
    %s15 = sadd.s32 1, %s11
  $region7: #{encoder_cnn_forward.1} parent=0 // loop_footer_branch
    %10 = sbr.rel target = $region3
  $region8: #{encoder_cnn_forward.1} parent=0 // loop_exit
    _

</llo_original>
